<compile_context>
chip_gen: v6e
topology: v6e:2x2x1
jax: 0.10.0
libtpu: 0.0.40
codegen_flags: <defaults>
</compile_context>

<pallas_src>
import jax
import jax.numpy as jnp
from jax import lax
from jax.experimental import pallas as pl
from jax.experimental.pallas import tpu as pltpu

EIG_EPS = 1e-6         # eigenvalue floor before sqrt / rsqrt / log
KARCHER_ITERS = 1      # functional.BaryGeom uses k = 1


# ----------------------------- Pallas kernels --------------------------------

def _bimap_mean_kernel(xbd_ref, wwt_ref, wstack_ref, yp_ref, gmean_ref):
    """BiMap + fused Euclidean batch mean.

    xbd_ref:    (B, Ci*n, Ci*n)  block-diagonal of X[b, ci] over ci
    wwt_ref:    (Co*n, Ci*n)     row block co = [W[co,0]^T | ... | W[co,Ci-1]^T]
    wstack_ref: (Co, Ci*n, n)    vertical stack of W[co, ci] over ci
    yp_ref:     (n, B*Co*n)      lane-packed Y[b,co] = sum_ci W[co,ci]^T X[b,ci] W[co,ci]
    gmean_ref:  (n, n)           mean over the B*Co output matrices
    """
    B = xbd_ref.shape[0]
    Co, _, n = wstack_ref.shape
    wwt = wwt_ref[...]
    blocks = []
    for b in range(B):
        # One K = Ci*n matmul computes every W[co,ci]^T X[b,ci] product at once.
        u = jnp.dot(wwt, xbd_ref[b], preferred_element_type=jnp.float32)   # (Co*n, Ci*n)
        for co in range(Co):
            # Second stage: the sum over ci is folded into the MXU K dimension.
            y = jnp.dot(u[co * n:(co + 1) * n, :], wstack_ref[co],
                        preferred_element_type=jnp.float32)                # (n, n)
            blocks.append(y)
    # Single lane-dense store of the packed output (unmasked vst when B*Co*n % 128 == 0).
    yp_ref[...] = jnp.concatenate(blocks, axis=1).astype(yp_ref.dtype)
    acc = blocks[0]
    for blk in blocks[1:]:
        acc = acc + blk
    gmean_ref[...] = (acc * (1.0 / len(blocks))).astype(gmean_ref.dtype)


def pallas_bimap_mean(xbd, wwt, wstack):
    B, cin_n, _ = xbd.shape
    Co, _, n = wstack.shape
    M = B * Co
    return pl.pallas_call(
        _bimap_mean_kernel,
        out_shape=(jax.ShapeDtypeStruct((n, M * n), xbd.dtype),
                   jax.ShapeDtypeStruct((n, n), xbd.dtype)),
        grid_spec=pltpu.PrefetchScalarGridSpec(
            num_scalar_prefetch=0,
            grid=(1,),
            in_specs=[
                pl.BlockSpec((B, cin_n, cin_n), lambda i: (0, 0, 0)),
                pl.BlockSpec((Co * n, cin_n), lambda i: (0, 0)),
                pl.BlockSpec((Co, cin_n, n), lambda i: (0, 0, 0)),
            ],
            out_specs=[pl.BlockSpec((n, M * n), lambda i: (0, 0)),
                       pl.BlockSpec((n, n), lambda i: (0, 0))],
        ),
        compiler_params=pltpu.CompilerParams(dimension_semantics=("arbitrary",)),
    )(xbd, wwt, wstack)


def _congr_kernel(a_ref, bdat_ref, xp_ref, op_ref):
    """Yp = A @ Xp @ blockdiag(A^T): congruence of all M packed matrices, two matmuls."""
    t = jnp.dot(a_ref[...], xp_ref[...], preferred_element_type=jnp.float32)      # (n, M*n)
    op_ref[...] = jnp.dot(t, bdat_ref[...],
                          preferred_element_type=jnp.float32).astype(op_ref.dtype)


def pallas_congr_packed(xp, a, bd_at):
    n, mn = xp.shape
    return pl.pallas_call(
        _congr_kernel,
        out_shape=jax.ShapeDtypeStruct((n, mn), xp.dtype),
        grid_spec=pltpu.PrefetchScalarGridSpec(
            num_scalar_prefetch=0,
            grid=(1,),
            in_specs=[
                pl.BlockSpec((n, n), lambda i: (0, 0)),
                pl.BlockSpec((mn, mn), lambda i: (0, 0)),
                pl.BlockSpec((n, mn), lambda i: (0, 0)),
            ],
            out_specs=pl.BlockSpec((n, mn), lambda i: (0, 0)),
        ),
        compiler_params=pltpu.CompilerParams(dimension_semantics=("arbitrary",)),
    )(a, bd_at, xp)


def _rebuild_mean_kernel(up_ref, sp_ref, o_ref):
    """o = (1/M) * sum_m U[m] diag(s[m]) U[m]^T as ONE K = M*n MXU contraction."""
    n = o_ref.shape[0]
    m = up_ref.shape[1] // n
    u = up_ref[...]                                   # (n, M*n), lane-packed eigvecs
    us = u * sp_ref[...]                              # scale columns by s (1, M*n)
    acc = lax.dot_general(us, u, (((1,), (1,)), ((), ())),
                          preferred_element_type=jnp.float32)   # (n, n)
    o_ref[...] = (acc * (1.0 / m)).astype(o_ref.dtype)


def pallas_rebuild_mean_packed(up, sp):
    n, mn = up.shape
    return pl.pallas_call(
        _rebuild_mean_kernel,
        out_shape=jax.ShapeDtypeStruct((n, n), up.dtype),
        grid_spec=pltpu.PrefetchScalarGridSpec(
            num_scalar_prefetch=0,
            grid=(1,),
            in_specs=[
                pl.BlockSpec((n, mn), lambda i: (0, 0)),
                pl.BlockSpec((1, mn), lambda i: (0, 0)),
            ],
            out_specs=pl.BlockSpec((n, n), lambda i: (0, 0)),
        ),
        compiler_params=pltpu.CompilerParams(dimension_semantics=("arbitrary",)),
    )(up, sp)


# --------------------------- XLA glue (eigh + layout plumbing) ----------------

def _sym(x):
    return 0.5 * (x + jnp.swapaxes(x, -1, -2))


def _eigh_sym(x):
    # TODO(synk): symmetric eigendecomposition has no Pallas primitive; stays in XLA.
    return jnp.linalg.eigh(_sym(x))


def _spd_fn_xla(x, fn):
    # Matrix function of a single 16x16 SPD matrix: launch+DMA would cost more
    # than the op itself, so this is deliberately plain XLA.
    s, u = _eigh_sym(x)
    return (u * fn(s)[..., None, :]) @ jnp.swapaxes(u, -1, -2)


def _blockdiag_repeat(a, m):
    """(n0, n1) -> (m*n0, m*n1) block diagonal with `a` repeated m times."""
    n0, n1 = a.shape
    eye = jnp.eye(m, dtype=a.dtype)
    return jnp.einsum('pq,ij->piqj', eye, a).reshape(m * n0, m * n1)


def _pack_lanes(x):
    """(M, n, n) -> (n, M*n): matrices side by side along lanes."""
    M, n, _ = x.shape
    return jnp.transpose(x, (1, 0, 2)).reshape(n, M * n)


def _unpack_lanes(xp, m):
    """(n, M*n) -> (M, n, n)."""
    n = xp.shape[0]
    return jnp.transpose(xp.reshape(n, m, n), (1, 0, 2))


# ------------------------------- Forward pass --------------------------------

def bimap_0_normal_forward(x, w_bimap, bn_weight):
    """nn_spd.BiMap(C,C,n,n) -> nn_spd.BatchNormSPD(n), training-mode forward."""
    B, Ci, n, _ = x.shape
    Co = w_bimap.shape[0]
    M = B * Co

    # ---- nn_spd.BiMap (+ fused Euclidean-mean init of the barycenter) -------
    eye_ci = jnp.eye(Ci, dtype=x.dtype)
    xbd = jnp.einsum('pq,bpij->bpiqj', eye_ci, x).reshape(B, Ci * n, Ci * n)
    wwt = jnp.transpose(w_bimap, (0, 3, 1, 2)).reshape(Co * n, Ci * n)   # Wwide^T
    wstack = w_bimap.reshape(Co, Ci * n, n)
    yp, g = pallas_bimap_mean(xbd, wwt, wstack)        # (n, M*n) packed Y, (n, n) mean

    # ---- nn_spd.BatchNormSPD: Riemannian barycenter (Karcher flow, k=1) -----
    # TODO(synk): running-mean geodesic update (momentum) of BatchNormSPD not carried.
    for _ in range(KARCHER_ITERS):
        sg, ug = _eigh_sym(g)
        sg = jnp.maximum(sg, EIG_EPS)
        g_sq = (ug * jnp.sqrt(sg)) @ ug.T              # G^{1/2}  (single matrix, XLA)
        g_isq = (ug * lax.rsqrt(sg)) @ ug.T            # G^{-1/2}
        centered_p = pallas_congr_packed(yp, g_isq, _blockdiag_repeat(g_isq, M))
        sc, uc = _eigh_sym(_unpack_lanes(centered_p, M))     # batched eigh (XLA)
        log_s = jnp.log(jnp.maximum(sc, EIG_EPS))
        log_mean = pallas_rebuild_mean_packed(_pack_lanes(uc),
                                              log_s.reshape(1, M * n))
        exp_lm = _spd_fn_xla(log_mean, jnp.exp)        # expm (single matrix, XLA)
        g = g_sq @ exp_lm @ g_sq

    # ---- Fused centering + bias: A = W^{1/2} G^{-1/2};  out = A X A^T -------
    sg, ug = _eigh_sym(g)
    sg = jnp.maximum(sg, EIG_EPS)
    g_isq = (ug * lax.rsqrt(sg)) @ ug.T
    sw, uw = _eigh_sym(bn_weight)
    sw = jnp.maximum(sw, EIG_EPS)
    w_sq = (uw * jnp.sqrt(sw)) @ uw.T                  # SPDParameter init = I -> W^{1/2} = I
    a = w_sq @ g_isq
    out_p = pallas_congr_packed(yp, a, _blockdiag_repeat(a.T, M))
    out = _unpack_lanes(out_p, M).reshape(B, Co, n, n)
    return _sym(out)                                   # re-symmetrize (fp rounding only)


# ------------------------------ Parameter init --------------------------------

def init_bimap_weight(key, co, ci, ni, no):
    """Semi-orthogonal init per (co, ci), like nn_spd.BiMap (orthonormal columns
    from the eigenbasis of a random PSD matrix); batched eigh, no Python loop."""
    a = jax.random.uniform(key, (co * ci, ni, ni), dtype=jnp.float32)
    _, v = jnp.linalg.eigh(a @ jnp.swapaxes(a, -1, -2))
    return v[:, :, :no].reshape(co, ci, ni, no)


# ----------------------------------- Main -------------------------------------

if __name__ == "__main__":
    B, C_in, dim_in = 2, 4, 16

    key = jax.random.PRNGKey(0)
    kx, kw = jax.random.split(key)

    # Deterministic SPD inputs: A A^T / n + 0.1 I per (batch, channel)
    a = jax.random.normal(kx, (B, C_in, dim_in, dim_in), dtype=jnp.float32)
    x = jnp.einsum("bcij,bckj->bcik", a, a) / dim_in \
        + 0.1 * jnp.eye(dim_in, dtype=jnp.float32)

    w_bimap = init_bimap_weight(kw, C_in, C_in, dim_in, dim_in)   # (C, C, n, n)
    bn_weight = jnp.eye(dim_in, dtype=jnp.float32)                # SPDParameter init = I

    out = jax.jit(bimap_0_normal_forward)(x, w_bimap, bn_weight)
    out = jax.block_until_ready(out)

    assert out.shape == (B, C_in, dim_in, dim_in)
    assert bool(jnp.all(jnp.isfinite(out)))
    print("KERNEL_OK")
</pallas_src>

<mosaic_0001>
module attributes {stable_mosaic.version = 11 : i64} {
  func.func @_bimap_mean_kernel(%arg0: i32, %arg1: memref<2x64x64xf32, #tpu.memory_space<vmem>>, %arg2: memref<64x64xf32, #tpu.memory_space<vmem>>, %arg3: memref<4x64x16xf32, #tpu.memory_space<vmem>>, %arg4: memref<16x128xf32, #tpu.memory_space<vmem>>, %arg5: memref<16x16xf32, #tpu.memory_space<vmem>>) attributes {dimension_semantics = [#tpu.dimension_semantics<arbitrary>], iteration_bounds = array<i64: 1>, scalar_prefetch = 0 : i64, scratch_operands = 0 : i64, tpu.core_type = #tpu.core_type<tc>, window_params = [{pipeline_mode = #tpu.pipeline_mode<synchronous>, transform_indices = @transform_0, window_bounds = array<i64: 2, 64, 64>}, {pipeline_mode = #tpu.pipeline_mode<synchronous>, transform_indices = @transform_1, window_bounds = array<i64: 64, 64>}, {pipeline_mode = #tpu.pipeline_mode<synchronous>, transform_indices = @transform_2, window_bounds = array<i64: 4, 64, 16>}, {pipeline_mode = #tpu.pipeline_mode<synchronous>, transform_indices = @transform_3, window_bounds = array<i64: 16, 128>}, {pipeline_mode = #tpu.pipeline_mode<synchronous>, transform_indices = @transform_4, window_bounds = array<i64: 16, 16>}]} {
    %c0 = arith.constant 0 : index
    %c0_0 = arith.constant 0 : index
    %0 = vector.load %arg2[%c0, %c0_0] : memref<64x64xf32, #tpu.memory_space<vmem>>, vector<64x64xf32>
    %c0_1 = arith.constant 0 : index
    %c0_2 = arith.constant 0 : index
    %c0_3 = arith.constant 0 : index
    %1 = vector.load %arg1[%c0_1, %c0_2, %c0_3] : memref<2x64x64xf32, #tpu.memory_space<vmem>>, vector<1x64x64xf32>
    %2 = vector.shape_cast %1 : vector<1x64x64xf32> to vector<64x64xf32>
    %cst = arith.constant dense<0.000000e+00> : vector<64x64xf32>
    %3 = tpu.matmul %0, %2, %cst {dimension_numbers = #tpu.dot_dimension_numbers<[1], [0], [0], [1], [0, 0, 1, 1], [], []>} : vector<64x64xf32>, vector<64x64xf32>, vector<64x64xf32> -> vector<64x64xf32>
    %4 = vector.extract_strided_slice %3 {offsets = [0, 0], sizes = [16, 64], strides = [1, 1]} : vector<64x64xf32> to vector<16x64xf32>
    %c0_4 = arith.constant 0 : index
    %c0_5 = arith.constant 0 : index
    %c0_6 = arith.constant 0 : index
    %5 = vector.load %arg3[%c0_4, %c0_5, %c0_6] : memref<4x64x16xf32, #tpu.memory_space<vmem>>, vector<1x64x16xf32>
    %6 = vector.shape_cast %5 : vector<1x64x16xf32> to vector<64x16xf32>
    %cst_7 = arith.constant dense<0.000000e+00> : vector<16x16xf32>
    %7 = tpu.matmul %4, %6, %cst_7 {dimension_numbers = #tpu.dot_dimension_numbers<[1], [0], [0], [1], [0, 0, 1, 1], [], []>} : vector<16x64xf32>, vector<64x16xf32>, vector<16x16xf32> -> vector<16x16xf32>
    %8 = vector.extract_strided_slice %3 {offsets = [16, 0], sizes = [16, 64], strides = [1, 1]} : vector<64x64xf32> to vector<16x64xf32>
    %c1 = arith.constant 1 : index
    %c0_8 = arith.constant 0 : index
    %c0_9 = arith.constant 0 : index
    %9 = vector.load %arg3[%c1, %c0_8, %c0_9] : memref<4x64x16xf32, #tpu.memory_space<vmem>>, vector<1x64x16xf32>
    %10 = vector.shape_cast %9 : vector<1x64x16xf32> to vector<64x16xf32>
    %cst_10 = arith.constant dense<0.000000e+00> : vector<16x16xf32>
    %11 = tpu.matmul %8, %10, %cst_10 {dimension_numbers = #tpu.dot_dimension_numbers<[1], [0], [0], [1], [0, 0, 1, 1], [], []>} : vector<16x64xf32>, vector<64x16xf32>, vector<16x16xf32> -> vector<16x16xf32>
    %12 = vector.extract_strided_slice %3 {offsets = [32, 0], sizes = [16, 64], strides = [1, 1]} : vector<64x64xf32> to vector<16x64xf32>
    %c2 = arith.constant 2 : index
    %c0_11 = arith.constant 0 : index
    %c0_12 = arith.constant 0 : index
    %13 = vector.load %arg3[%c2, %c0_11, %c0_12] : memref<4x64x16xf32, #tpu.memory_space<vmem>>, vector<1x64x16xf32>
    %14 = vector.shape_cast %13 : vector<1x64x16xf32> to vector<64x16xf32>
    %cst_13 = arith.constant dense<0.000000e+00> : vector<16x16xf32>
    %15 = tpu.matmul %12, %14, %cst_13 {dimension_numbers = #tpu.dot_dimension_numbers<[1], [0], [0], [1], [0, 0, 1, 1], [], []>} : vector<16x64xf32>, vector<64x16xf32>, vector<16x16xf32> -> vector<16x16xf32>
    %16 = vector.extract_strided_slice %3 {offsets = [48, 0], sizes = [16, 64], strides = [1, 1]} : vector<64x64xf32> to vector<16x64xf32>
    %c3 = arith.constant 3 : index
    %c0_14 = arith.constant 0 : index
    %c0_15 = arith.constant 0 : index
    %17 = vector.load %arg3[%c3, %c0_14, %c0_15] : memref<4x64x16xf32, #tpu.memory_space<vmem>>, vector<1x64x16xf32>
    %18 = vector.shape_cast %17 : vector<1x64x16xf32> to vector<64x16xf32>
    %cst_16 = arith.constant dense<0.000000e+00> : vector<16x16xf32>
    %19 = tpu.matmul %16, %18, %cst_16 {dimension_numbers = #tpu.dot_dimension_numbers<[1], [0], [0], [1], [0, 0, 1, 1], [], []>} : vector<16x64xf32>, vector<64x16xf32>, vector<16x16xf32> -> vector<16x16xf32>
    %c1_17 = arith.constant 1 : index
    %c0_18 = arith.constant 0 : index
    %c0_19 = arith.constant 0 : index
    %20 = vector.load %arg1[%c1_17, %c0_18, %c0_19] : memref<2x64x64xf32, #tpu.memory_space<vmem>>, vector<1x64x64xf32>
    %21 = vector.shape_cast %20 : vector<1x64x64xf32> to vector<64x64xf32>
    %cst_20 = arith.constant dense<0.000000e+00> : vector<64x64xf32>
    %22 = tpu.matmul %0, %21, %cst_20 {dimension_numbers = #tpu.dot_dimension_numbers<[1], [0], [0], [1], [0, 0, 1, 1], [], []>} : vector<64x64xf32>, vector<64x64xf32>, vector<64x64xf32> -> vector<64x64xf32>
    %23 = vector.extract_strided_slice %22 {offsets = [0, 0], sizes = [16, 64], strides = [1, 1]} : vector<64x64xf32> to vector<16x64xf32>
    %c0_21 = arith.constant 0 : index
    %c0_22 = arith.constant 0 : index
    %c0_23 = arith.constant 0 : index
    %24 = vector.load %arg3[%c0_21, %c0_22, %c0_23] : memref<4x64x16xf32, #tpu.memory_space<vmem>>, vector<1x64x16xf32>
    %25 = vector.shape_cast %24 : vector<1x64x16xf32> to vector<64x16xf32>
    %cst_24 = arith.constant dense<0.000000e+00> : vector<16x16xf32>
    %26 = tpu.matmul %23, %25, %cst_24 {dimension_numbers = #tpu.dot_dimension_numbers<[1], [0], [0], [1], [0, 0, 1, 1], [], []>} : vector<16x64xf32>, vector<64x16xf32>, vector<16x16xf32> -> vector<16x16xf32>
    %27 = vector.extract_strided_slice %22 {offsets = [16, 0], sizes = [16, 64], strides = [1, 1]} : vector<64x64xf32> to vector<16x64xf32>
    %c1_25 = arith.constant 1 : index
    %c0_26 = arith.constant 0 : index
    %c0_27 = arith.constant 0 : index
    %28 = vector.load %arg3[%c1_25, %c0_26, %c0_27] : memref<4x64x16xf32, #tpu.memory_space<vmem>>, vector<1x64x16xf32>
    %29 = vector.shape_cast %28 : vector<1x64x16xf32> to vector<64x16xf32>
    %cst_28 = arith.constant dense<0.000000e+00> : vector<16x16xf32>
    %30 = tpu.matmul %27, %29, %cst_28 {dimension_numbers = #tpu.dot_dimension_numbers<[1], [0], [0], [1], [0, 0, 1, 1], [], []>} : vector<16x64xf32>, vector<64x16xf32>, vector<16x16xf32> -> vector<16x16xf32>
    %31 = vector.extract_strided_slice %22 {offsets = [32, 0], sizes = [16, 64], strides = [1, 1]} : vector<64x64xf32> to vector<16x64xf32>
    %c2_29 = arith.constant 2 : index
    %c0_30 = arith.constant 0 : index
    %c0_31 = arith.constant 0 : index
    %32 = vector.load %arg3[%c2_29, %c0_30, %c0_31] : memref<4x64x16xf32, #tpu.memory_space<vmem>>, vector<1x64x16xf32>
    %33 = vector.shape_cast %32 : vector<1x64x16xf32> to vector<64x16xf32>
    %cst_32 = arith.constant dense<0.000000e+00> : vector<16x16xf32>
    %34 = tpu.matmul %31, %33, %cst_32 {dimension_numbers = #tpu.dot_dimension_numbers<[1], [0], [0], [1], [0, 0, 1, 1], [], []>} : vector<16x64xf32>, vector<64x16xf32>, vector<16x16xf32> -> vector<16x16xf32>
    %35 = vector.extract_strided_slice %22 {offsets = [48, 0], sizes = [16, 64], strides = [1, 1]} : vector<64x64xf32> to vector<16x64xf32>
    %c3_33 = arith.constant 3 : index
    %c0_34 = arith.constant 0 : index
    %c0_35 = arith.constant 0 : index
    %36 = vector.load %arg3[%c3_33, %c0_34, %c0_35] : memref<4x64x16xf32, #tpu.memory_space<vmem>>, vector<1x64x16xf32>
    %37 = vector.shape_cast %36 : vector<1x64x16xf32> to vector<64x16xf32>
    %cst_36 = arith.constant dense<0.000000e+00> : vector<16x16xf32>
    %38 = tpu.matmul %35, %37, %cst_36 {dimension_numbers = #tpu.dot_dimension_numbers<[1], [0], [0], [1], [0, 0, 1, 1], [], []>} : vector<16x64xf32>, vector<64x16xf32>, vector<16x16xf32> -> vector<16x16xf32>
    %39 = tpu.concatenate %7, %11, %15, %19, %26, %30, %34, %38 in 1 : vector<16x16xf32>, vector<16x16xf32>, vector<16x16xf32>, vector<16x16xf32>, vector<16x16xf32>, vector<16x16xf32>, vector<16x16xf32>, vector<16x16xf32> -> vector<16x128xf32>
    %c0_37 = arith.constant 0 : index
    %c0_38 = arith.constant 0 : index
    %40 = vector.load %arg4[%c0_37, %c0_38] : memref<16x128xf32, #tpu.memory_space<vmem>>, vector<16x128xf32>
    tpu.vector_store %arg4[%c0_37, %c0_38], %39 {strides = array<i32>} : memref<16x128xf32, #tpu.memory_space<vmem>>, vector<16x128xf32>,
    %41 = arith.addf %7, %11 : vector<16x16xf32>
    %42 = arith.addf %41, %15 : vector<16x16xf32>
    %43 = arith.addf %42, %19 : vector<16x16xf32>
    %44 = arith.addf %43, %26 : vector<16x16xf32>
    %45 = arith.addf %44, %30 : vector<16x16xf32>
    %46 = arith.addf %45, %34 : vector<16x16xf32>
    %47 = arith.addf %46, %38 : vector<16x16xf32>
    %cst_39 = arith.constant 1.250000e-01 : f32
    %48 = vector.broadcast %cst_39 : f32 to vector<16x16xf32>
    %49 = arith.mulf %47, %48 : vector<16x16xf32>
    %c0_40 = arith.constant 0 : index
    %c0_41 = arith.constant 0 : index
    %50 = vector.load %arg5[%c0_40, %c0_41] : memref<16x16xf32, #tpu.memory_space<vmem>>, vector<16x16xf32>
    tpu.vector_store %arg5[%c0_40, %c0_41], %49 {strides = array<i32>} : memref<16x16xf32, #tpu.memory_space<vmem>>, vector<16x16xf32>,
    return
  }
  func.func @transform_0(%arg0: i32) -> (i32, i32, i32) {
    %c0_i32 = arith.constant 0 : i32
    %c0_i32_0 = arith.constant 0 : i32
    %c0_i32_1 = arith.constant 0 : i32
    %c0_i32_2 = arith.constant 0 : i32
    return %c0_i32, %c0_i32_0, %c0_i32_1 : i32, i32, i32
  }
  func.func @transform_1(%arg0: i32) -> (i32, i32) {
    %c0_i32 = arith.constant 0 : i32
    %c0_i32_0 = arith.constant 0 : i32
    %c0_i32_1 = arith.constant 0 : i32
    return %c0_i32, %c0_i32_0 : i32, i32
  }
  func.func @transform_2(%arg0: i32) -> (i32, i32, i32) {
    %c0_i32 = arith.constant 0 : i32
    %c0_i32_0 = arith.constant 0 : i32
    %c0_i32_1 = arith.constant 0 : i32
    %c0_i32_2 = arith.constant 0 : i32
    return %c0_i32, %c0_i32_0, %c0_i32_1 : i32, i32, i32
  }
  func.func @transform_3(%arg0: i32) -> (i32, i32) {
    %c0_i32 = arith.constant 0 : i32
    %c0_i32_0 = arith.constant 0 : i32
    %c0_i32_1 = arith.constant 0 : i32
    return %c0_i32, %c0_i32_0 : i32, i32
  }
  func.func @transform_4(%arg0: i32) -> (i32, i32) {
    %c0_i32 = arith.constant 0 : i32
    %c0_i32_0 = arith.constant 0 : i32
    %c0_i32_1 = arith.constant 0 : i32
    return %c0_i32, %c0_i32_0 : i32, i32
  }
}

module attributes {stable_mosaic.version = 11 : i64} {
  func.func @_congr_kernel(%arg0: i32, %arg1: memref<16x16xf32, #tpu.memory_space<vmem>>, %arg2: memref<128x128xf32, #tpu.memory_space<vmem>>, %arg3: memref<16x128xf32, #tpu.memory_space<vmem>>, %arg4: memref<16x128xf32, #tpu.memory_space<vmem>>) attributes {dimension_semantics = [#tpu.dimension_semantics<arbitrary>], iteration_bounds = array<i64: 1>, scalar_prefetch = 0 : i64, scratch_operands = 0 : i64, tpu.core_type = #tpu.core_type<tc>, window_params = [{pipeline_mode = #tpu.pipeline_mode<synchronous>, transform_indices = @transform_0, window_bounds = array<i64: 16, 16>}, {pipeline_mode = #tpu.pipeline_mode<synchronous>, transform_indices = @transform_1, window_bounds = array<i64: 128, 128>}, {pipeline_mode = #tpu.pipeline_mode<synchronous>, transform_indices = @transform_2, window_bounds = array<i64: 16, 128>}, {pipeline_mode = #tpu.pipeline_mode<synchronous>, transform_indices = @transform_3, window_bounds = array<i64: 16, 128>}]} {
    %c0 = arith.constant 0 : index
    %c0_0 = arith.constant 0 : index
    %0 = vector.load %arg1[%c0, %c0_0] : memref<16x16xf32, #tpu.memory_space<vmem>>, vector<16x16xf32>
    %c0_1 = arith.constant 0 : index
    %c0_2 = arith.constant 0 : index
    %1 = vector.load %arg3[%c0_1, %c0_2] : memref<16x128xf32, #tpu.memory_space<vmem>>, vector<16x128xf32>
    %cst = arith.constant dense<0.000000e+00> : vector<16x128xf32>
    %2 = tpu.matmul %0, %1, %cst {dimension_numbers = #tpu.dot_dimension_numbers<[1], [0], [0], [1], [0, 0, 1, 1], [], []>} : vector<16x16xf32>, vector<16x128xf32>, vector<16x128xf32> -> vector<16x128xf32>
    %c0_3 = arith.constant 0 : index
    %c0_4 = arith.constant 0 : index
    %3 = vector.load %arg2[%c0_3, %c0_4] : memref<128x128xf32, #tpu.memory_space<vmem>>, vector<128x128xf32>
    %cst_5 = arith.constant dense<0.000000e+00> : vector<16x128xf32>
    %4 = tpu.matmul %2, %3, %cst_5 {dimension_numbers = #tpu.dot_dimension_numbers<[1], [0], [0], [1], [0, 0, 1, 1], [], []>} : vector<16x128xf32>, vector<128x128xf32>, vector<16x128xf32> -> vector<16x128xf32>
    %c0_6 = arith.constant 0 : index
    %c0_7 = arith.constant 0 : index
    %5 = vector.load %arg4[%c0_6, %c0_7] : memref<16x128xf32, #tpu.memory_space<vmem>>, vector<16x128xf32>
    tpu.vector_store %arg4[%c0_6, %c0_7], %4 {strides = array<i32>} : memref<16x128xf32, #tpu.memory_space<vmem>>, vector<16x128xf32>,
    return
  }
  func.func @transform_0(%arg0: i32) -> (i32, i32) {
    %c0_i32 = arith.constant 0 : i32
    %c0_i32_0 = arith.constant 0 : i32
    %c0_i32_1 = arith.constant 0 : i32
    return %c0_i32, %c0_i32_0 : i32, i32
  }
  func.func @transform_1(%arg0: i32) -> (i32, i32) {
    %c0_i32 = arith.constant 0 : i32
    %c0_i32_0 = arith.constant 0 : i32
    %c0_i32_1 = arith.constant 0 : i32
    return %c0_i32, %c0_i32_0 : i32, i32
  }
  func.func @transform_2(%arg0: i32) -> (i32, i32) {
    %c0_i32 = arith.constant 0 : i32
    %c0_i32_0 = arith.constant 0 : i32
    %c0_i32_1 = arith.constant 0 : i32
    return %c0_i32, %c0_i32_0 : i32, i32
  }
  func.func @transform_3(%arg0: i32) -> (i32, i32) {
    %c0_i32 = arith.constant 0 : i32
    %c0_i32_0 = arith.constant 0 : i32
    %c0_i32_1 = arith.constant 0 : i32
    return %c0_i32, %c0_i32_0 : i32, i32
  }
}

module attributes {stable_mosaic.version = 11 : i64} {
  func.func @_rebuild_mean_kernel(%arg0: i32, %arg1: memref<16x128xf32, #tpu.memory_space<vmem>>, %arg2: memref<1x128xf32, #tpu.memory_space<vmem>>, %arg3: memref<16x16xf32, #tpu.memory_space<vmem>>) attributes {dimension_semantics = [#tpu.dimension_semantics<arbitrary>], iteration_bounds = array<i64: 1>, scalar_prefetch = 0 : i64, scratch_operands = 0 : i64, tpu.core_type = #tpu.core_type<tc>, window_params = [{pipeline_mode = #tpu.pipeline_mode<synchronous>, transform_indices = @transform_0, window_bounds = array<i64: 16, 128>}, {pipeline_mode = #tpu.pipeline_mode<synchronous>, transform_indices = @transform_1, window_bounds = array<i64: 1, 128>}, {pipeline_mode = #tpu.pipeline_mode<synchronous>, transform_indices = @transform_2, window_bounds = array<i64: 16, 16>}]} {
    %c0 = arith.constant 0 : index
    %c0_0 = arith.constant 0 : index
    %0 = vector.load %arg1[%c0, %c0_0] : memref<16x128xf32, #tpu.memory_space<vmem>>, vector<16x128xf32>
    %c0_1 = arith.constant 0 : index
    %c0_2 = arith.constant 0 : index
    %1 = vector.load %arg2[%c0_1, %c0_2] : memref<1x128xf32, #tpu.memory_space<vmem>>, vector<1x128xf32>
    %2 = vector.broadcast %1 : vector<1x128xf32> to vector<16x128xf32>
    %3 = arith.mulf %0, %2 : vector<16x128xf32>
    %cst = arith.constant dense<0.000000e+00> : vector<16x16xf32>
    %4 = tpu.matmul %3, %0, %cst {dimension_numbers = #tpu.dot_dimension_numbers<[1], [1], [0], [0], [0, 0, 1, 0], [], []>} : vector<16x128xf32>, vector<16x128xf32>, vector<16x16xf32> -> vector<16x16xf32>
    %cst_3 = arith.constant 1.250000e-01 : f32
    %5 = vector.broadcast %cst_3 : f32 to vector<16x16xf32>
    %6 = arith.mulf %4, %5 : vector<16x16xf32>
    %c0_4 = arith.constant 0 : index
    %c0_5 = arith.constant 0 : index
    %7 = vector.load %arg3[%c0_4, %c0_5] : memref<16x16xf32, #tpu.memory_space<vmem>>, vector<16x16xf32>
    tpu.vector_store %arg3[%c0_4, %c0_5], %6 {strides = array<i32>} : memref<16x16xf32, #tpu.memory_space<vmem>>, vector<16x16xf32>,
    return
  }
  func.func @transform_0(%arg0: i32) -> (i32, i32) {
    %c0_i32 = arith.constant 0 : i32
    %c0_i32_0 = arith.constant 0 : i32
    %c0_i32_1 = arith.constant 0 : i32
    return %c0_i32, %c0_i32_0 : i32, i32
  }
  func.func @transform_1(%arg0: i32) -> (i32, i32) {
    %c0_i32 = arith.constant 0 : i32
    %c0_i32_0 = arith.constant 0 : i32
    %c0_i32_1 = arith.constant 0 : i32
    return %c0_i32, %c0_i32_0 : i32, i32
  }
  func.func @transform_2(%arg0: i32) -> (i32, i32) {
    %c0_i32 = arith.constant 0 : i32
    %c0_i32_0 = arith.constant 0 : i32
    %c0_i32_1 = arith.constant 0 : i32
    return %c0_i32, %c0_i32_0 : i32, i32
  }
}

</mosaic_0001>

<llo_original>
// kernel: custom-call.9
$region0: #{custom-call.9}
  %s0 = inlined_call_operand.vmem [shape: f32[8,8], index: 0, kind: input, shape index: {}]
  %s1 = inlined_call_operand.vmem [shape: f32[8,8], index: 1, kind: input, shape index: {}]
  %s2 = inlined_call_operand.vmem [shape: f32[8,8], index: 2, kind: input, shape index: {}]
  %s3 = inlined_call_operand.vmem [shape: f32[8,8], index: 3, kind: input, shape index: {}]
  %s4 = inlined_call_operand.vmem [shape: f32[8], index: 4, kind: output, shape index: {0}]
  %s5 = inlined_call_operand.vmem [shape: f32[8], index: 5, kind: output, shape index: {1}]
  %s6 = inlined_call_operand.vmem [shape: f32[8,8], index: 6, kind: output, shape index: {2}]
  %s7 = inlined_call_operand.vmem [shape: f32[8,8], index: 7, kind: output, shape index: {3}]
  %s8 = inlined_call_operand.vmem [shape: f32[8,8], index: 8, kind: output, shape index: {4}]
  %s9 = inlined_call_operand.vmem [shape: f32[8,8], index: 9, kind: output, shape index: {5}]
  %10 = xla_tuple %s4, %s5, %s6, %s7, %s8, %s9
  $region1: #{custom-call.9} parent=0
    #allocation0 [shape = 'u8[4096]{0}', space=vmem, size = 0x1000, scoped, tag = 'operand span for operand 0']
    #allocation1 [shape = 'u8[4096]{0}', space=vmem, size = 0x1000, scoped, tag = 'operand span for operand 1']
    #allocation2 [shape = 'u8[4096]{0}', space=vmem, size = 0x1000, scoped, tag = 'operand span for operand 2']
    #allocation3 [shape = 'u8[4096]{0}', space=vmem, size = 0x1000, scoped, tag = 'operand span for operand 3']
    #allocation4 [shape = 'u8[4096]{0}', space=vmem, size = 0x1000, scoped, tag = 'operand span for operand 4']
    #allocation5 [shape = 'u8[512]{0}', space=vmem, size = 0x400, scoped, tag = 'packed  for operand 4']
    #allocation6 [shape = 'u8[4096]{0}', space=vmem, size = 0x1000, scoped, tag = 'operand span for operand 5']
    #allocation7 [shape = 'u8[512]{0}', space=vmem, size = 0x400, scoped, tag = 'packed  for operand 5']
    #allocation8 [shape = 'u8[4096]{0}', space=vmem, size = 0x1000, scoped, tag = 'operand span for operand 6']
    #allocation9 [shape = 'u8[4096]{0}', space=vmem, size = 0x1000, scoped, tag = 'operand span for operand 7']
    #allocation10 [shape = 'u8[4096]{0}', space=vmem, size = 0x1000, scoped, tag = 'operand span for operand 8']
    #allocation11 [shape = 'u8[4096]{0}', space=vmem, size = 0x1000, scoped, tag = 'operand span for operand 9']
    #allocation12 [shape = 'f32[8,8]{1,0}', space=vmem, size = 0x1000, scoped, tag = 'a top-left matrix']
    #allocation13 [shape = 'f32[8,8]{1,0}', space=vmem, size = 0x1000, scoped, tag = 'a top-right matrix']
    #allocation14 [shape = 'f32[8,8]{1,0}', space=vmem, size = 0x1000, scoped, tag = 'a bottom-left matrix']
    #allocation15 [shape = 'f32[8,8]{1,0}', space=vmem, size = 0x1000, scoped, tag = 'a bottom-right matrix']
    %p12 = scmp.gt.s32.totalorder 8, 0
    // Predicated region
    $region2: #{custom-call.9} parent=1 // pred_check
      %p13 = pneg %p12
    $region3: #{custom-call.9} parent=1 // pred_check_branch
      %15 = sbr.rel (%p13) target = $region5
    $region4: #{custom-call.9} parent=1 // pred_region
      %s16 = sshra.s32 8, 3
      %p17 = scmp.gt.s32.totalorder %s16, 0
      // Predicated region
      $region6: #{custom-call.9} parent=4 // pred_check
        %p18 = pneg %p17
      $region7: #{custom-call.9} parent=4 // pred_check_branch
        %20 = sbr.rel (%p18) target = $region9
      $region8: #{custom-call.9} parent=4 // pred_region
        %s21 = ssub.s32 %s16, 1
        %s22 = smul.u32 %s21, 128
        %s23 = sshra.s32 %s22, 4
        %s24 = scalar_lea.vmem %s0, %s23
        %v25 = vld [vmem:[%s0] sm:$0xff]
        // While loop
        $region10: #{custom-call.9} parent=8 // loop_pre_header
          _
        $region11: #{custom-call.9} parent=8 // loop_header
          %s26 = sphi %s0, %s48
          %s27 = sphi [#allocation0], %s49
          %v28 = vphi %v25, %v50
          %s29 = ssub.s32 %s24, 64
          %p30 = scmp.gt.s32.totalorder %s26, %s29
        $region12: #{custom-call.9} parent=8 // loop_header_branch
          %32 = sbr.rel (%p30) target = $region16
        $region13: #{custom-call.9} parent=8 // loop_body
          %33 = vst [vmem:[%s27] sm:$0xff] %v28
          %v34 = vld [vmem:[%s26 + $0x8] sm:$0xff]
          %35 = vst [vmem:[%s27 + $0x8] sm:$0xff] %v34
          %v36 = vld [vmem:[%s26 + $0x10] sm:$0xff]
          %37 = vst [vmem:[%s27 + $0x10] sm:$0xff] %v36
          %v38 = vld [vmem:[%s26 + $0x18] sm:$0xff]
          %39 = vst [vmem:[%s27 + $0x18] sm:$0xff] %v38
          %v40 = vld [vmem:[%s26 + $0x20] sm:$0xff]
          %41 = vst [vmem:[%s27 + $0x20] sm:$0xff] %v40
          %v42 = vld [vmem:[%s26 + $0x28] sm:$0xff]
          %43 = vst [vmem:[%s27 + $0x28] sm:$0xff] %v42
          %v44 = vld [vmem:[%s26 + $0x30] sm:$0xff]
          %45 = vst [vmem:[%s27 + $0x30] sm:$0xff] %v44
          %v46 = vld [vmem:[%s26 + $0x38] sm:$0xff]
          %47 = vst [vmem:[%s27 + $0x38] sm:$0xff] %v46
        $region14: #{custom-call.9} parent=8 // loop_footer
          %s48 = scalar_lea.vmem %s26, 64
          %s49 = scalar_lea.vmem %s27, 64
          %v50 = vld [vmem:[%s26 + $0x40] sm:$0xff]
        $region15: #{custom-call.9} parent=8 // loop_footer_branch
          %51 = sbr.rel target = $region11
        $region16: #{custom-call.9} parent=8 // loop_exit
          _
        // While loop
        $region17: #{custom-call.9} parent=8 // loop_pre_header
          _
        $region18: #{custom-call.9} parent=8 // loop_header
          %s52 = sphi %s26, %s60
          %s53 = sphi %s27, %s61
          %v54 = vphi %v28, %v54
          %p55 = scmp.gt.s32.totalorder %s52, %s24
        $region19: #{custom-call.9} parent=8 // loop_header_branch
          %57 = sbr.rel (%p55) target = $region23
        $region20: #{custom-call.9} parent=8 // loop_body
          %v58 = vld [vmem:[%s52] sm:$0xff]
          %59 = vst [vmem:[%s53] sm:$0xff] %v58
        $region21: #{custom-call.9} parent=8 // loop_footer
          %s60 = scalar_lea.vmem %s52, 8
          %s61 = scalar_lea.vmem %s53, 8
        $region22: #{custom-call.9} parent=8 // loop_footer_branch
          %62 = sbr.rel target = $region18
        $region23: #{custom-call.9} parent=8 // loop_exit
          _
      $region9: #{custom-call.9} parent=4 // pred_fallthru
        _
      %s63 = sand.u32 8, 7
      %s64 = sshll.u32 1, %s63
      %s65 = ssub.s32 %s64, 1
      %s66 = smul.u32 %s16, 128
      %s67 = sshra.s32 %s66, 4
      %s68 = scalar_lea.vmem [#allocation0], %s67
      %s69 = smul.u32 %s16, 128
      %s70 = sshra.s32 %s69, 4
      %s71 = scalar_lea.vmem %s0, %s70
      %v72 = vld [vmem:[%s71] sm:%s65]
      %73 = vst [vmem:[%s68] sm:%s65] %v72
    $region5: #{custom-call.9} parent=1 // pred_fallthru
      _
    %p75 = scmp.gt.s32.totalorder 8, 0
    // Predicated region
    $region24: #{custom-call.9} parent=1 // pred_check
      %p76 = pneg %p75
    $region25: #{custom-call.9} parent=1 // pred_check_branch
      %78 = sbr.rel (%p76) target = $region27
    $region26: #{custom-call.9} parent=1 // pred_region
      %s79 = sshra.s32 8, 3
      %p80 = scmp.gt.s32.totalorder %s79, 0
      // Predicated region
      $region28: #{custom-call.9} parent=26 // pred_check
        %p81 = pneg %p80
      $region29: #{custom-call.9} parent=26 // pred_check_branch
        %83 = sbr.rel (%p81) target = $region31
      $region30: #{custom-call.9} parent=26 // pred_region
        %s84 = ssub.s32 %s79, 1
        %s85 = smul.u32 %s84, 128
        %s86 = sshra.s32 %s85, 4
        %s87 = scalar_lea.vmem %s1, %s86
        %v88 = vld [vmem:[%s1] sm:$0xff]
        // While loop
        $region32: #{custom-call.9} parent=30 // loop_pre_header
          _
        $region33: #{custom-call.9} parent=30 // loop_header
          %s89 = sphi %s1, %s111
          %s90 = sphi [#allocation1], %s112
          %v91 = vphi %v88, %v113
          %s92 = ssub.s32 %s87, 64
          %p93 = scmp.gt.s32.totalorder %s89, %s92
        $region34: #{custom-call.9} parent=30 // loop_header_branch
          %95 = sbr.rel (%p93) target = $region38
        $region35: #{custom-call.9} parent=30 // loop_body
          %96 = vst [vmem:[%s90] sm:$0xff] %v91
          %v97 = vld [vmem:[%s89 + $0x8] sm:$0xff]
          %98 = vst [vmem:[%s90 + $0x8] sm:$0xff] %v97
          %v99 = vld [vmem:[%s89 + $0x10] sm:$0xff]
          %100 = vst [vmem:[%s90 + $0x10] sm:$0xff] %v99
          %v101 = vld [vmem:[%s89 + $0x18] sm:$0xff]
          %102 = vst [vmem:[%s90 + $0x18] sm:$0xff] %v101
          %v103 = vld [vmem:[%s89 + $0x20] sm:$0xff]
          %104 = vst [vmem:[%s90 + $0x20] sm:$0xff] %v103
          %v105 = vld [vmem:[%s89 + $0x28] sm:$0xff]
          %106 = vst [vmem:[%s90 + $0x28] sm:$0xff] %v105
          %v107 = vld [vmem:[%s89 + $0x30] sm:$0xff]
          %108 = vst [vmem:[%s90 + $0x30] sm:$0xff] %v107
          %v109 = vld [vmem:[%s89 + $0x38] sm:$0xff]
          %110 = vst [vmem:[%s90 + $0x38] sm:$0xff] %v109
        $region36: #{custom-call.9} parent=30 // loop_footer
          %s111 = scalar_lea.vmem %s89, 64
          %s112 = scalar_lea.vmem %s90, 64
          %v113 = vld [vmem:[%s89 + $0x40] sm:$0xff]
        $region37: #{custom-call.9} parent=30 // loop_footer_branch
          %114 = sbr.rel target = $region33
        $region38: #{custom-call.9} parent=30 // loop_exit
          _
        // While loop
        $region39: #{custom-call.9} parent=30 // loop_pre_header
          _
        $region40: #{custom-call.9} parent=30 // loop_header
          %s115 = sphi %s89, %s123
          %s116 = sphi %s90, %s124
          %v117 = vphi %v91, %v117
          %p118 = scmp.gt.s32.totalorder %s115, %s87
        $region41: #{custom-call.9} parent=30 // loop_header_branch
          %120 = sbr.rel (%p118) target = $region45
        $region42: #{custom-call.9} parent=30 // loop_body
          %v121 = vld [vmem:[%s115] sm:$0xff]
          %122 = vst [vmem:[%s116] sm:$0xff] %v121
        $region43: #{custom-call.9} parent=30 // loop_footer
          %s123 = scalar_lea.vmem %s115, 8
          %s124 = scalar_lea.vmem %s116, 8
        $region44: #{custom-call.9} parent=30 // loop_footer_branch
          %125 = sbr.rel target = $region40
        $region45: #{custom-call.9} parent=30 // loop_exit
          _
      $region31: #{custom-call.9} parent=26 // pred_fallthru
        _
      %s126 = sand.u32 8, 7
      %s127 = sshll.u32 1, %s126
      %s128 = ssub.s32 %s127, 1
      %s129 = smul.u32 %s79, 128
      %s130 = sshra.s32 %s129, 4
      %s131 = scalar_lea.vmem [#allocation1], %s130
      %s132 = smul.u32 %s79, 128
      %s133 = sshra.s32 %s132, 4
      %s134 = scalar_lea.vmem %s1, %s133
      %v135 = vld [vmem:[%s134] sm:%s128]
      %136 = vst [vmem:[%s131] sm:%s128] %v135
    $region27: #{custom-call.9} parent=1 // pred_fallthru
      _
    %p138 = scmp.gt.s32.totalorder 8, 0
    // Predicated region
    $region46: #{custom-call.9} parent=1 // pred_check
      %p139 = pneg %p138
    $region47: #{custom-call.9} parent=1 // pred_check_branch
      %141 = sbr.rel (%p139) target = $region49
    $region48: #{custom-call.9} parent=1 // pred_region
      %s142 = sshra.s32 8, 3
      %p143 = scmp.gt.s32.totalorder %s142, 0
      // Predicated region
      $region50: #{custom-call.9} parent=48 // pred_check
        %p144 = pneg %p143
      $region51: #{custom-call.9} parent=48 // pred_check_branch
        %146 = sbr.rel (%p144) target = $region53
      $region52: #{custom-call.9} parent=48 // pred_region
        %s147 = ssub.s32 %s142, 1
        %s148 = smul.u32 %s147, 128
        %s149 = sshra.s32 %s148, 4
        %s150 = scalar_lea.vmem %s2, %s149
        %v151 = vld [vmem:[%s2] sm:$0xff]
        // While loop
        $region54: #{custom-call.9} parent=52 // loop_pre_header
          _
        $region55: #{custom-call.9} parent=52 // loop_header
          %s152 = sphi %s2, %s174
          %s153 = sphi [#allocation2], %s175
          %v154 = vphi %v151, %v176
          %s155 = ssub.s32 %s150, 64
          %p156 = scmp.gt.s32.totalorder %s152, %s155
        $region56: #{custom-call.9} parent=52 // loop_header_branch
          %158 = sbr.rel (%p156) target = $region60
        $region57: #{custom-call.9} parent=52 // loop_body
          %159 = vst [vmem:[%s153] sm:$0xff] %v154
          %v160 = vld [vmem:[%s152 + $0x8] sm:$0xff]
          %161 = vst [vmem:[%s153 + $0x8] sm:$0xff] %v160
          %v162 = vld [vmem:[%s152 + $0x10] sm:$0xff]
          %163 = vst [vmem:[%s153 + $0x10] sm:$0xff] %v162
          %v164 = vld [vmem:[%s152 + $0x18] sm:$0xff]
          %165 = vst [vmem:[%s153 + $0x18] sm:$0xff] %v164
          %v166 = vld [vmem:[%s152 + $0x20] sm:$0xff]
          %167 = vst [vmem:[%s153 + $0x20] sm:$0xff] %v166
          %v168 = vld [vmem:[%s152 + $0x28] sm:$0xff]
          %169 = vst [vmem:[%s153 + $0x28] sm:$0xff] %v168
          %v170 = vld [vmem:[%s152 + $0x30] sm:$0xff]
          %171 = vst [vmem:[%s153 + $0x30] sm:$0xff] %v170
          %v172 = vld [vmem:[%s152 + $0x38] sm:$0xff]
          %173 = vst [vmem:[%s153 + $0x38] sm:$0xff] %v172
        $region58: #{custom-call.9} parent=52 // loop_footer
          %s174 = scalar_lea.vmem %s152, 64
          %s175 = scalar_lea.vmem %s153, 64
          %v176 = vld [vmem:[%s152 + $0x40] sm:$0xff]
        $region59: #{custom-call.9} parent=52 // loop_footer_branch
          %177 = sbr.rel target = $region55
        $region60: #{custom-call.9} parent=52 // loop_exit
          _
        // While loop
        $region61: #{custom-call.9} parent=52 // loop_pre_header
          _
        $region62: #{custom-call.9} parent=52 // loop_header
          %s178 = sphi %s152, %s186
          %s179 = sphi %s153, %s187
          %v180 = vphi %v154, %v180
          %p181 = scmp.gt.s32.totalorder %s178, %s150
        $region63: #{custom-call.9} parent=52 // loop_header_branch
          %183 = sbr.rel (%p181) target = $region67
        $region64: #{custom-call.9} parent=52 // loop_body
          %v184 = vld [vmem:[%s178] sm:$0xff]
          %185 = vst [vmem:[%s179] sm:$0xff] %v184
        $region65: #{custom-call.9} parent=52 // loop_footer
          %s186 = scalar_lea.vmem %s178, 8
          %s187 = scalar_lea.vmem %s179, 8
        $region66: #{custom-call.9} parent=52 // loop_footer_branch
          %188 = sbr.rel target = $region62
        $region67: #{custom-call.9} parent=52 // loop_exit
          _
      $region53: #{custom-call.9} parent=48 // pred_fallthru
        _
      %s189 = sand.u32 8, 7
      %s190 = sshll.u32 1, %s189
      %s191 = ssub.s32 %s190, 1
      %s192 = smul.u32 %s142, 128
      %s193 = sshra.s32 %s192, 4
      %s194 = scalar_lea.vmem [#allocation2], %s193
      %s195 = smul.u32 %s142, 128
      %s196 = sshra.s32 %s195, 4
      %s197 = scalar_lea.vmem %s2, %s196
      %v198 = vld [vmem:[%s197] sm:%s191]
      %199 = vst [vmem:[%s194] sm:%s191] %v198
    $region49: #{custom-call.9} parent=1 // pred_fallthru
      _
    %p201 = scmp.gt.s32.totalorder 8, 0
    // Predicated region
    $region68: #{custom-call.9} parent=1 // pred_check
      %p202 = pneg %p201
    $region69: #{custom-call.9} parent=1 // pred_check_branch
      %204 = sbr.rel (%p202) target = $region71
    $region70: #{custom-call.9} parent=1 // pred_region
      %s205 = sshra.s32 8, 3
      %p206 = scmp.gt.s32.totalorder %s205, 0
      // Predicated region
      $region72: #{custom-call.9} parent=70 // pred_check
        %p207 = pneg %p206
      $region73: #{custom-call.9} parent=70 // pred_check_branch
        %209 = sbr.rel (%p207) target = $region75
      $region74: #{custom-call.9} parent=70 // pred_region
        %s210 = ssub.s32 %s205, 1
        %s211 = smul.u32 %s210, 128
        %s212 = sshra.s32 %s211, 4
        %s213 = scalar_lea.vmem %s3, %s212
        %v214 = vld [vmem:[%s3] sm:$0xff]
        // While loop
        $region76: #{custom-call.9} parent=74 // loop_pre_header
          _
        $region77: #{custom-call.9} parent=74 // loop_header
          %s215 = sphi %s3, %s237
          %s216 = sphi [#allocation3], %s238
          %v217 = vphi %v214, %v239
          %s218 = ssub.s32 %s213, 64
          %p219 = scmp.gt.s32.totalorder %s215, %s218
        $region78: #{custom-call.9} parent=74 // loop_header_branch
          %221 = sbr.rel (%p219) target = $region82
        $region79: #{custom-call.9} parent=74 // loop_body
          %222 = vst [vmem:[%s216] sm:$0xff] %v217
          %v223 = vld [vmem:[%s215 + $0x8] sm:$0xff]
          %224 = vst [vmem:[%s216 + $0x8] sm:$0xff] %v223
          %v225 = vld [vmem:[%s215 + $0x10] sm:$0xff]
          %226 = vst [vmem:[%s216 + $0x10] sm:$0xff] %v225
          %v227 = vld [vmem:[%s215 + $0x18] sm:$0xff]
          %228 = vst [vmem:[%s216 + $0x18] sm:$0xff] %v227
          %v229 = vld [vmem:[%s215 + $0x20] sm:$0xff]
          %230 = vst [vmem:[%s216 + $0x20] sm:$0xff] %v229
          %v231 = vld [vmem:[%s215 + $0x28] sm:$0xff]
          %232 = vst [vmem:[%s216 + $0x28] sm:$0xff] %v231
          %v233 = vld [vmem:[%s215 + $0x30] sm:$0xff]
          %234 = vst [vmem:[%s216 + $0x30] sm:$0xff] %v233
          %v235 = vld [vmem:[%s215 + $0x38] sm:$0xff]
          %236 = vst [vmem:[%s216 + $0x38] sm:$0xff] %v235
        $region80: #{custom-call.9} parent=74 // loop_footer
          %s237 = scalar_lea.vmem %s215, 64
          %s238 = scalar_lea.vmem %s216, 64
          %v239 = vld [vmem:[%s215 + $0x40] sm:$0xff]
        $region81: #{custom-call.9} parent=74 // loop_footer_branch
          %240 = sbr.rel target = $region77
        $region82: #{custom-call.9} parent=74 // loop_exit
          _
        // While loop
        $region83: #{custom-call.9} parent=74 // loop_pre_header
          _
        $region84: #{custom-call.9} parent=74 // loop_header
          %s241 = sphi %s215, %s249
          %s242 = sphi %s216, %s250
          %v243 = vphi %v217, %v243
          %p244 = scmp.gt.s32.totalorder %s241, %s213
        $region85: #{custom-call.9} parent=74 // loop_header_branch
          %246 = sbr.rel (%p244) target = $region89
        $region86: #{custom-call.9} parent=74 // loop_body
          %v247 = vld [vmem:[%s241] sm:$0xff]
          %248 = vst [vmem:[%s242] sm:$0xff] %v247
        $region87: #{custom-call.9} parent=74 // loop_footer
          %s249 = scalar_lea.vmem %s241, 8
          %s250 = scalar_lea.vmem %s242, 8
        $region88: #{custom-call.9} parent=74 // loop_footer_branch
          %251 = sbr.rel target = $region84
        $region89: #{custom-call.9} parent=74 // loop_exit
          _
      $region75: #{custom-call.9} parent=70 // pred_fallthru
        _
      %s252 = sand.u32 8, 7
      %s253 = sshll.u32 1, %s252
      %s254 = ssub.s32 %s253, 1
      %s255 = smul.u32 %s205, 128
      %s256 = sshra.s32 %s255, 4
      %s257 = scalar_lea.vmem [#allocation3], %s256
      %s258 = smul.u32 %s205, 128
      %s259 = sshra.s32 %s258, 4
      %s260 = scalar_lea.vmem %s3, %s259
      %v261 = vld [vmem:[%s260] sm:%s254]
      %262 = vst [vmem:[%s257] sm:%s254] %v261
    $region71: #{custom-call.9} parent=1 // pred_fallthru
      _
    %s263 = smov [#allocation12]
    %v264 = vld [vmem:[#allocation0] sm:$0xff]
    %265 = vst [vmem:[%s263] sm:$0xff] %v264
    %s266 = smov [#allocation13]
    %v267 = vld [vmem:[#allocation1] sm:$0xff]
    %268 = vst [vmem:[%s266] sm:$0xff] %v267
    %s269 = smov [#allocation14]
    %v270 = vld [vmem:[#allocation2] sm:$0xff]
    %271 = vst [vmem:[%s269] sm:$0xff] %v270
    %s272 = smov [#allocation15]
    %v273 = vld [vmem:[#allocation3] sm:$0xff]
    %274 = vst [vmem:[%s272] sm:$0xff] %v273
    %275 = vst [vmem:[#allocation8] sm:$0xff] 0.0
    %276 = vst [vmem:[#allocation9] sm:$0xff] 0.0
    %277 = vst [vmem:[#allocation10] sm:$0xff] 0.0
    %278 = vst [vmem:[#allocation11] sm:$0xff] 0.0
    %s279 = smov [#allocation8]
    %v280 = vlaneseq
    %v281 = vand.u32 %v280, 127
    %v282 = vmov %v281
    %v283 = vlaneseq
    %v284 = vshrl.u32 %v283, 7
    %v285 = vmov %v284
    %v286 = vld [vmem:[%s279] sm:$0xff]
    %vm289 = vcmp.eq.s32.totalorder %v285, %v282
    %v290 = vsel %vm289, 1.0, %v286
    %291 = vst [vmem:[%s279] sm:$0xff] %v290
    %s292 = smov [#allocation11]
    %v293 = vlaneseq
    %v294 = vand.u32 %v293, 127
    %v295 = vmov %v294
    %v296 = vlaneseq
    %v297 = vshrl.u32 %v296, 7
    %v298 = vmov %v297
    %v299 = vld [vmem:[%s292] sm:$0xff]
    %vm302 = vcmp.eq.s32.totalorder %v298, %v295
    %v303 = vsel %vm302, 1.0, %v299
    %304 = vst [vmem:[%s292] sm:$0xff] %v303
    // While loop
    $region90: #{custom-call.9} parent=1 // loop_pre_header
      _
    $region91: #{custom-call.9} parent=1 // loop_header
      %s306 = sphi 0, %s848
      %v307 = vlaneseq
      %v308 = vand.u32 %v307, 127
      %v309 = vmov %v308
      %v310 = vlaneseq
      %v311 = vshrl.u32 %v310, 7
      %v312 = vmov %v311
      %s313 = smov [#allocation12]
      %v314 = vlaneseq
      %v315 = vand.u32 %v314, 127
      %vm316 = vcmp.ge.s32.totalorder %v315, 0
      %vm317 = vcmp.lt.s32.totalorder %v315, 8
      %vm318 = vmand %vm316, %vm317
      %v319 = vld [vmem:[%s313] sm:$0xff]
      %v320 = vsel %vm318, %v319, 0.0
      %v321 = vmul.f32 %v320, %v320
      %vm324 = vcmp.eq.s32.totalorder %v312, %v309
      %v325 = vsel %vm324, 0.0, %v321
      %v326 = vlaneseq
      %v327 = vand.u32 %v326, 127
      %v328 = vmov %v327
      %v329 = vlaneseq
      %v330 = vshrl.u32 %v329, 7
      %v331 = vmov %v330
      %s332 = smov [#allocation13]
      %v333 = vlaneseq
      %v334 = vand.u32 %v333, 127
      %vm335 = vcmp.ge.s32.totalorder %v334, 0
      %vm336 = vcmp.lt.s32.totalorder %v334, 8
      %vm337 = vmand %vm335, %vm336
      %v338 = vld [vmem:[%s332] sm:$0xff]
      %v339 = vsel %vm337, %v338, 0.0
      %v340 = vmul.f32 %v339, %v339
      %v341 = vadd.f32 %v325, %v340
      %v342 = vadd.f32 %v321, %v340
      %v343 = vlaneseq
      %v344 = vand.u32 %v343, 127
      %v345 = vmov %v344
      %v346 = vlaneseq
      %v347 = vshrl.u32 %v346, 7
      %v348 = vmov %v347
      %s349 = smov [#allocation14]
      %v350 = vlaneseq
      %v351 = vand.u32 %v350, 127
      %vm352 = vcmp.ge.s32.totalorder %v351, 0
      %vm353 = vcmp.lt.s32.totalorder %v351, 8
      %vm354 = vmand %vm352, %vm353
      %v355 = vld [vmem:[%s349] sm:$0xff]
      %v356 = vsel %vm354, %v355, 0.0
      %v357 = vmul.f32 %v356, %v356
      %v358 = vadd.f32 %v341, %v357
      %v359 = vadd.f32 %v342, %v357
      %v360 = vlaneseq
      %v361 = vand.u32 %v360, 127
      %v362 = vmov %v361
      %v363 = vlaneseq
      %v364 = vshrl.u32 %v363, 7
      %v365 = vmov %v364
      %s366 = smov [#allocation15]
      %v367 = vlaneseq
      %v368 = vand.u32 %v367, 127
      %vm369 = vcmp.ge.s32.totalorder %v368, 0
      %vm370 = vcmp.lt.s32.totalorder %v368, 8
      %vm371 = vmand %vm369, %vm370
      %v372 = vld [vmem:[%s366] sm:$0xff]
      %v373 = vsel %vm371, %v372, 0.0
      %v374 = vmul.f32 %v373, %v373
      %vm377 = vcmp.eq.s32.totalorder %v365, %v362
      %v378 = vsel %vm377, 0.0, %v374
      %v379 = vadd.f32 %v358, %v378
      %v380 = vadd.f32 %v359, %v374
      %381 = vadd.xlane.f32.xlu0 %v380
      %v382 = vpop.xlane.xlu0 %381
      %v383 = vrot.slane %v382, 4
      %v384 = vadd.f32 %v382, %v383
      %v385 = vrot.slane %v384, 2
      %v386 = vadd.f32 %v384, %v385
      %v387 = vrot.slane %v386, 1
      %v388 = vadd.f32 %v386, %v387
      %389 = vadd.xlane.f32.xlu0 %v379
      %v390 = vpop.xlane.xlu0 %389
      %v391 = vrot.slane %v390, 4
      %v392 = vadd.f32 %v390, %v391
      %v393 = vrot.slane %v392, 2
      %v394 = vadd.f32 %v392, %v393
      %v395 = vrot.slane %v394, 1
      %v396 = vadd.f32 %v394, %v395
      %s397 = vtos %v396
      %s398 = vtos %v388
      %s399 = smul.f32 1e-10, %s398
      %p400 = scmp.le.f32.partialorder %s397, %s399
      %p401 = scmp.ge.s32.totalorder %s306, 15
      %p402 = por %p400, %p401
    $region92: #{custom-call.9} parent=1 // loop_header_branch
      %850 = sbr.rel (%p402) target = $region96
    $region93: #{custom-call.9} parent=1 // loop_body
      loop: start=0, step=1, limit=15
      $region97: #{custom-call.9} parent=93 // loop_pre_header
        _
      $region98: #{custom-call.9} parent=93 // loop_header
        %s404 = sphi 0, %s408
        %p405 = scmp.ge.s32.totalorder %s404, 15
      $region99: #{custom-call.9} parent=93 // loop_header_branch
        %407 = sbr.rel (%p405) target = $region103
      $region100: #{custom-call.9} parent=93 // loop_body
        #allocation16 [shape = 'f32[1024]{0}', space=vmem, size = 0x1000, scoped, tag = 'a_tl_diag vmem']
        #allocation17 [shape = 'f32[1024]{0}', space=vmem, size = 0x1000, scoped, tag = 'a_tr_diag vmem']
        #allocation18 [shape = 'f32[1024]{0}', space=vmem, size = 0x1000, scoped, tag = 'a_br_diag vmem']
        #allocation19 [shape = 'f32[1024]{0}', space=vmem, size = 0x1000, scoped, tag = 'rt1 vmem']
        #allocation20 [shape = 'f32[1024]{0}', space=vmem, size = 0x1000, scoped, tag = 'rt2 vmem']
        #allocation21 [shape = 'f32[1024]{0}', space=vmem, size = 0x1000, scoped, tag = 'c vmem']
        #allocation22 [shape = 'f32[1024]{0}', space=vmem, size = 0x1000, scoped, tag = 's vmem']
        #allocation23 [shape = 'f32[4096]{0}', space=vmem, size = 0x4000, scoped, tag = 'c broadcast']
        #allocation24 [shape = 'f32[4096]{0}', space=vmem, size = 0x4000, scoped, tag = 's broadcast']
        %s409 = smov [#allocation12]
        %s410 = smov [#allocation16]
        %v411 = vlaneseq
        %v412 = vand.u32 %v411, 127
        %v413 = vmov %v412
        %v414 = vlaneseq
        %v415 = vshrl.u32 %v414, 7
        %v416 = vmov %v415
        %v417 = vld [vmem:[%s409] sm:$0xff]
        %vm420 = vcmp.eq.s32.totalorder %v416, %v413
        %v421 = vsel %vm420, %v417, 0.0
        %v422 = vrot.slane %v421, 4
        %v423 = vadd.f32 %v421, %v422
        %v424 = vrot.slane %v423, 2
        %v425 = vadd.f32 %v423, %v424
        %v426 = vrot.slane %v425, 1
        %v427 = vadd.f32 %v425, %v426
        %428 = vst [vmem:[%s410] sm:$0x1] %v427
        %s429 = smov [#allocation13]
        %s430 = smov [#allocation17]
        %v431 = vlaneseq
        %v432 = vand.u32 %v431, 127
        %v433 = vmov %v432
        %v434 = vlaneseq
        %v435 = vshrl.u32 %v434, 7
        %v436 = vmov %v435
        %v437 = vld [vmem:[%s429] sm:$0xff]
        %vm440 = vcmp.eq.s32.totalorder %v436, %v433
        %v441 = vsel %vm440, %v437, 0.0
        %v442 = vrot.slane %v441, 4
        %v443 = vadd.f32 %v441, %v442
        %v444 = vrot.slane %v443, 2
        %v445 = vadd.f32 %v443, %v444
        %v446 = vrot.slane %v445, 1
        %v447 = vadd.f32 %v445, %v446
        %448 = vst [vmem:[%s430] sm:$0x1] %v447
        %s449 = smov [#allocation15]
        %s450 = smov [#allocation18]
        %v451 = vlaneseq
        %v452 = vand.u32 %v451, 127
        %v453 = vmov %v452
        %v454 = vlaneseq
        %v455 = vshrl.u32 %v454, 7
        %v456 = vmov %v455
        %v457 = vld [vmem:[%s449] sm:$0xff]
        %vm460 = vcmp.eq.s32.totalorder %v456, %v453
        %v461 = vsel %vm460, %v457, 0.0
        %v462 = vrot.slane %v461, 4
        %v463 = vadd.f32 %v461, %v462
        %v464 = vrot.slane %v463, 2
        %v465 = vadd.f32 %v463, %v464
        %v466 = vrot.slane %v465, 1
        %v467 = vadd.f32 %v465, %v466
        %468 = vst [vmem:[%s450] sm:$0x1] %v467
        %s469 = smov [#allocation21]
        %s470 = smov [#allocation22]
        %s471 = smov [#allocation16]
        %v472 = vld [vmem:[%s471] sm:$0xff]
        %s473 = smov [#allocation17]
        %v474 = vld [vmem:[%s473] sm:$0xff]
        %s475 = smov [#allocation18]
        %v476 = vld [vmem:[%s475] sm:$0xff]
        %v477 = vsub.f32 %v476, %v472
        %v478 = vmul.f32 2.0, %v474
        %v479 = vrcp.pop %v478
        %v480 = vmul.f32 %v477, %v479
        %vm481 = vcmp.ge.f32.partialorder %v480, 0.0
        %v482 = vmul.f32 %v480, %v480
        %v483 = vadd.f32 1.0, %v482
        %v484 = vrsqrt.pop %v483
        %v485 = vmul.f32 %v483, %v484
        %vm486 = vcmp.eq.f32.partialorder %v483, inf
        %v487 = vsel %vm486, %v483, %v485
        %vm488 = vcmp.eq.f32.partialorder %v483, 0.0
        %v489 = vand.u32 %v483, 2147483648
        %v490 = vsel %vm488, %v489, %v487
        %v491 = vxor.u32 %v490, 2147483648
        %v492 = vsel %vm481, %v490, %v491
        %v493 = vadd.f32 %v480, %v492
        %v494 = vrcp.pop %v493
        %v495 = vand.u32 2147483647, %v472
        %v496 = vand.u32 2147483647, %v474
        %v497 = vand.u32 2147483647, %v476
        %v498 = vmin.f32 %v495, %v497
        %v499 = vmul.f32 1.1920929e-08, %v498
        %vm500 = vcmp.le.f32.partialorder %v496, %v499
        %v501 = vsel %vm500, 0.0, %v494
        %v502 = vmul.f32 %v501, %v501
        %v503 = vadd.f32 1.0, %v502
        %v504 = vrsqrt.pop %v503
        %v505 = vmul.f32 %v501, %v504
        %v506 = vmul.f32 %v501, %v474
        %v507 = vsub.f32 %v472, %v506
        %v508 = vmul.f32 %v501, %v474
        %v509 = vadd.f32 %v476, %v508
        %s510 = smov [#allocation19]
        %511 = vst [vmem:[%s510] sm:$0xff] %v507
        %s512 = smov [#allocation20]
        %513 = vst [vmem:[%s512] sm:$0xff] %v509
        %s514 = smov %s469
        %515 = vst [vmem:[%s514] sm:$0xff] %v504
        %s516 = smov %s470
        %517 = vst [vmem:[%s516] sm:$0xff] %v505
        %s518 = smov [#allocation21]
        %v519 = vld [vmem:[%s518] ss:$0 sm:$0xff]
        %v520 = vlaneseq
        %v521 = vand.u32 %v520, 127
        %v522 = vmov %v521
        %v523 = vlaneseq
        %v524 = vshrl.u32 %v523, 7
        %v525 = vmov %v524
        %vm527 = vcmp.eq.s32.totalorder %v525, %v522
        %v528 = vsel %vm527, %v519, 0.0
        %529 = vadd.xlane.f32.xlu0 %v528
        %v530 = vpop.xlane.xlu0 %529
        %s531 = smov [#allocation23]
        %532 = vst [vmem:[%s531] sm:$0xff] %v530
        %s533 = smov [#allocation22]
        %v534 = vld [vmem:[%s533] ss:$0 sm:$0xff]
        %v535 = vlaneseq
        %v536 = vand.u32 %v535, 127
        %v537 = vmov %v536
        %v538 = vlaneseq
        %v539 = vshrl.u32 %v538, 7
        %v540 = vmov %v539
        %vm542 = vcmp.eq.s32.totalorder %v540, %v537
        %v543 = vsel %vm542, %v534, 0.0
        %544 = vadd.xlane.f32.xlu0 %v543
        %v545 = vpop.xlane.xlu0 %544
        %s546 = smov [#allocation24]
        %547 = vst [vmem:[%s546] sm:$0xff] %v545
        %s548 = smov [#allocation23]
        %v549 = vld [vmem:[%s548] sm:$0xff]
        %s550 = smov [#allocation24]
        %v551 = vld [vmem:[%s550] sm:$0xff]
        %s552 = smov [#allocation12]
        %s553 = smov [#allocation13]
        %s554 = smov [#allocation14]
        %s555 = smov [#allocation15]
        %v556 = vld [vmem:[%s552] sm:$0xff]
        %v557 = vld [vmem:[%s553] sm:$0xff]
        %v558 = vld [vmem:[%s554] sm:$0xff]
        %v559 = vld [vmem:[%s555] sm:$0xff]
        %v560 = vmul.f32 %v549, %v556
        %v561 = vmul.f32 %v551, %v558
        %v562 = vsub.f32 %v560, %v561
        %v563 = vmul.f32 %v549, %v557
        %v564 = vmul.f32 %v551, %v559
        %v565 = vsub.f32 %v563, %v564
        %v566 = vmul.f32 %v551, %v556
        %v567 = vmul.f32 %v549, %v558
        %v568 = vadd.f32 %v566, %v567
        %v569 = vmul.f32 %v551, %v557
        %v570 = vmul.f32 %v549, %v559
        %v571 = vadd.f32 %v569, %v570
        %572 = vst [vmem:[%s552] sm:$0xff] %v562
        %573 = vst [vmem:[%s553] sm:$0xff] %v565
        %574 = vst [vmem:[%s554] sm:$0xff] %v568
        %575 = vst [vmem:[%s555] sm:$0xff] %v571
        %s576 = smov [#allocation21]
        %v577 = vld [vmem:[%s576] ss:$0 sm:$0xff]
        %s578 = smov [#allocation22]
        %v579 = vld [vmem:[%s578] ss:$0 sm:$0xff]
        %s580 = smov [#allocation12]
        %s581 = smov [#allocation13]
        %s582 = smov [#allocation14]
        %s583 = smov [#allocation15]
        %v584 = vld [vmem:[%s580] sm:$0xff]
        %v585 = vld [vmem:[%s581] sm:$0xff]
        %v586 = vld [vmem:[%s582] sm:$0xff]
        %v587 = vld [vmem:[%s583] sm:$0xff]
        %v588 = vmul.f32 %v577, %v584
        %v589 = vmul.f32 %v579, %v585
        %v590 = vsub.f32 %v588, %v589
        %v591 = vmul.f32 %v579, %v584
        %v592 = vmul.f32 %v577, %v585
        %v593 = vadd.f32 %v591, %v592
        %v594 = vmul.f32 %v577, %v586
        %v595 = vmul.f32 %v579, %v587
        %v596 = vsub.f32 %v594, %v595
        %v597 = vmul.f32 %v579, %v586
        %v598 = vmul.f32 %v577, %v587
        %v599 = vadd.f32 %v597, %v598
        %600 = vst [vmem:[%s580] sm:$0xff] %v590
        %601 = vst [vmem:[%s581] sm:$0xff] %v593
        %602 = vst [vmem:[%s582] sm:$0xff] %v596
        %603 = vst [vmem:[%s583] sm:$0xff] %v599
        %s604 = smov [#allocation12]
        %s605 = smov [#allocation19]
        %v606 = vlaneseq
        %v607 = vand.u32 %v606, 127
        %v608 = vmov %v607
        %v609 = vlaneseq
        %v610 = vshrl.u32 %v609, 7
        %v611 = vmov %v610
        %v612 = vld [vmem:[%s605] ss:$0 sm:$0xff]
        %v613 = vld [vmem:[%s604] sm:$0xff]
        %vm616 = vcmp.eq.s32.totalorder %v611, %v608
        %v617 = vsel %vm616, %v612, %v613
        %618 = vst [vmem:[%s604] sm:$0xff] %v617
        %s619 = smov [#allocation13]
        %v620 = vlaneseq
        %v621 = vand.u32 %v620, 127
        %v622 = vmov %v621
        %v623 = vlaneseq
        %v624 = vshrl.u32 %v623, 7
        %v625 = vmov %v624
        %v626 = vld [vmem:[%s619] sm:$0xff]
        %vm629 = vcmp.eq.s32.totalorder %v625, %v622
        %v630 = vsel %vm629, 0.0, %v626
        %631 = vst [vmem:[%s619] sm:$0xff] %v630
        %s632 = smov [#allocation14]
        %v633 = vlaneseq
        %v634 = vand.u32 %v633, 127
        %v635 = vmov %v634
        %v636 = vlaneseq
        %v637 = vshrl.u32 %v636, 7
        %v638 = vmov %v637
        %v639 = vld [vmem:[%s632] sm:$0xff]
        %vm642 = vcmp.eq.s32.totalorder %v638, %v635
        %v643 = vsel %vm642, 0.0, %v639
        %644 = vst [vmem:[%s632] sm:$0xff] %v643
        %s645 = smov [#allocation15]
        %s646 = smov [#allocation20]
        %v647 = vlaneseq
        %v648 = vand.u32 %v647, 127
        %v649 = vmov %v648
        %v650 = vlaneseq
        %v651 = vshrl.u32 %v650, 7
        %v652 = vmov %v651
        %v653 = vld [vmem:[%s646] ss:$0 sm:$0xff]
        %v654 = vld [vmem:[%s645] sm:$0xff]
        %vm657 = vcmp.eq.s32.totalorder %v652, %v649
        %v658 = vsel %vm657, %v653, %v654
        %659 = vst [vmem:[%s645] sm:$0xff] %v658
        %s660 = smov [#allocation12]
        %s661 = smov [#allocation13]
        %v662 = vld [vmem:[%s661] sm:$0xff]
        %663 = vrot.lane.b32.xlu0 %v662, 1
        %v664 = vpop.permute.xlu0 %663
        %v665 = vld [vmem:[%s660] sm:$0xff]
        %v666 = vld [vmem:[%s660] sm:$0xff]
        %667 = vrot.lane.b32.xlu0 %v666, 1
        %v668 = vpop.permute.xlu0 %667
        %v669 = vlaneseq
        %v670 = vand.u32 %v669, 127
        %vm671 = vcmp.eq.s32.totalorder %v670, 0
        %v672 = vsel %vm671, %v666, %v668
        %v673 = vlaneseq
        %v674 = vand.u32 %v673, 127
        %vm675 = vcmp.eq.s32.totalorder %v674, 1
        %v676 = vsel %vm675, %v664, %v672
        %v677 = vlaneseq
        %v678 = vand.u32 %v677, 127
        %vm679 = vcmp.ge.s32.totalorder %v678, 0
        %vm680 = vcmp.lt.s32.totalorder %v678, 8
        %vm681 = vmand %vm679, %vm680
        %v682 = vsel %vm681, %v676, 0.0
        %v683 = vld [vmem:[%s661] sm:$0xff]
        %684 = vrot.lane.b32.xlu0 %v683, 127
        %v685 = vpop.permute.xlu0 %684
        %v686 = vlaneseq
        %v687 = vand.u32 %v686, 127
        %vm688 = vcmp.eq.s32.totalorder %v687, 7
        %v689 = vsel %vm688, %v665, %v685
        %690 = vst [vmem:[%s660] sm:$0xff] %v682
        %691 = vst [vmem:[%s661] sm:$0xff] %v689
        %s692 = smov [#allocation14]
        %s693 = smov [#allocation15]
        %v694 = vld [vmem:[%s693] sm:$0xff]
        %695 = vrot.lane.b32.xlu0 %v694, 1
        %v696 = vpop.permute.xlu0 %695
        %v697 = vld [vmem:[%s692] sm:$0xff]
        %v698 = vld [vmem:[%s692] sm:$0xff]
        %699 = vrot.lane.b32.xlu0 %v698, 1
        %v700 = vpop.permute.xlu0 %699
        %v701 = vlaneseq
        %v702 = vand.u32 %v701, 127
        %vm703 = vcmp.eq.s32.totalorder %v702, 0
        %v704 = vsel %vm703, %v698, %v700
        %v705 = vlaneseq
        %v706 = vand.u32 %v705, 127
        %vm707 = vcmp.eq.s32.totalorder %v706, 1
        %v708 = vsel %vm707, %v696, %v704
        %v709 = vlaneseq
        %v710 = vand.u32 %v709, 127
        %vm711 = vcmp.ge.s32.totalorder %v710, 0
        %vm712 = vcmp.lt.s32.totalorder %v710, 8
        %vm713 = vmand %vm711, %vm712
        %v714 = vsel %vm713, %v708, 0.0
        %v715 = vld [vmem:[%s693] sm:$0xff]
        %716 = vrot.lane.b32.xlu0 %v715, 127
        %v717 = vpop.permute.xlu0 %716
        %v718 = vlaneseq
        %v719 = vand.u32 %v718, 127
        %vm720 = vcmp.eq.s32.totalorder %v719, 7
        %v721 = vsel %vm720, %v697, %v717
        %722 = vst [vmem:[%s692] sm:$0xff] %v714
        %723 = vst [vmem:[%s693] sm:$0xff] %v721
        %s724 = smov [#allocation12]
        %s725 = smov [#allocation14]
        %v726 = vld [vmem:[%s724] ss:$0 sm:$0xff]
        %s728 = scalar_lea.vmem %s724, 4294967295
        %v729 = vld [vmem:[%s728] sm:$0xfe]
        %v730 = vlaneseq
        %v731 = vshrl.u32 %v730, 7
        %vm732 = vcmp.eq.s32.totalorder %v731, 0
        %v733 = vsel %vm732, %v726, %v729
        %s734 = scalar_lea.vmem %s724, 7
        %v735 = vld [vmem:[%s734] ss:$0 sm:$0xff]
        %736 = vst [vmem:[%s724] sm:$0xff] %v733
        %v737 = vld [vmem:[%s725] ss:$0 sm:$0xff]
        %s738 = scalar_lea.vmem %s724, 1
        %739 = vst [vmem:[%s738] sm:$0x1] %v737
        %s740 = scalar_lea.vmem %s725, 1
        %v741 = vld [vmem:[%s740] sm:$0x7f]
        %v742 = vlaneseq
        %v743 = vshrl.u32 %v742, 7
        %vm744 = vcmp.eq.s32.totalorder %v743, 7
        %v745 = vsel %vm744, %v735, %v741
        %v746 = vld [vmem:[%s725] ss:$0 sm:$0xff]
        %747 = vst [vmem:[%s725] sm:$0xff] %v745
        %s748 = smov [#allocation13]
        %s749 = smov [#allocation15]
        %v750 = vld [vmem:[%s748] ss:$0 sm:$0xff]
        %s752 = scalar_lea.vmem %s748, 4294967295
        %v753 = vld [vmem:[%s752] sm:$0xfe]
        %v754 = vlaneseq
        %v755 = vshrl.u32 %v754, 7
        %vm756 = vcmp.eq.s32.totalorder %v755, 0
        %v757 = vsel %vm756, %v750, %v753
        %s758 = scalar_lea.vmem %s748, 7
        %v759 = vld [vmem:[%s758] ss:$0 sm:$0xff]
        %760 = vst [vmem:[%s748] sm:$0xff] %v757
        %v761 = vld [vmem:[%s749] ss:$0 sm:$0xff]
        %s762 = scalar_lea.vmem %s748, 1
        %763 = vst [vmem:[%s762] sm:$0x1] %v761
        %s764 = scalar_lea.vmem %s749, 1
        %v765 = vld [vmem:[%s764] sm:$0x7f]
        %v766 = vlaneseq
        %v767 = vshrl.u32 %v766, 7
        %vm768 = vcmp.eq.s32.totalorder %v767, 7
        %v769 = vsel %vm768, %v759, %v765
        %v770 = vld [vmem:[%s749] ss:$0 sm:$0xff]
        %771 = vst [vmem:[%s749] sm:$0xff] %v769
        %s772 = smov [#allocation23]
        %v773 = vld [vmem:[%s772] sm:$0xff]
        %s774 = smov [#allocation24]
        %v775 = vld [vmem:[%s774] sm:$0xff]
        %s776 = smov [#allocation8]
        %s777 = smov [#allocation9]
        %s778 = smov [#allocation10]
        %s779 = smov [#allocation11]
        %v780 = vld [vmem:[%s776] sm:$0xff]
        %v781 = vld [vmem:[%s777] sm:$0xff]
        %v782 = vld [vmem:[%s778] sm:$0xff]
        %v783 = vld [vmem:[%s779] sm:$0xff]
        %v784 = vmul.f32 %v773, %v780
        %v785 = vmul.f32 %v775, %v782
        %v786 = vsub.f32 %v784, %v785
        %v787 = vmul.f32 %v773, %v781
        %v788 = vmul.f32 %v775, %v783
        %v789 = vsub.f32 %v787, %v788
        %v790 = vmul.f32 %v775, %v780
        %v791 = vmul.f32 %v773, %v782
        %v792 = vadd.f32 %v790, %v791
        %v793 = vmul.f32 %v775, %v781
        %v794 = vmul.f32 %v773, %v783
        %v795 = vadd.f32 %v793, %v794
        %796 = vst [vmem:[%s776] sm:$0xff] %v786
        %797 = vst [vmem:[%s777] sm:$0xff] %v789
        %798 = vst [vmem:[%s778] sm:$0xff] %v792
        %799 = vst [vmem:[%s779] sm:$0xff] %v795
        %s800 = smov [#allocation8]
        %s801 = smov [#allocation10]
        %v802 = vld [vmem:[%s800] ss:$0 sm:$0xff]
        %s804 = scalar_lea.vmem %s800, 4294967295
        %v805 = vld [vmem:[%s804] sm:$0xfe]
        %v806 = vlaneseq
        %v807 = vshrl.u32 %v806, 7
        %vm808 = vcmp.eq.s32.totalorder %v807, 0
        %v809 = vsel %vm808, %v802, %v805
        %s810 = scalar_lea.vmem %s800, 7
        %v811 = vld [vmem:[%s810] ss:$0 sm:$0xff]
        %812 = vst [vmem:[%s800] sm:$0xff] %v809
        %v813 = vld [vmem:[%s801] ss:$0 sm:$0xff]
        %s814 = scalar_lea.vmem %s800, 1
        %815 = vst [vmem:[%s814] sm:$0x1] %v813
        %s816 = scalar_lea.vmem %s801, 1
        %v817 = vld [vmem:[%s816] sm:$0x7f]
        %v818 = vlaneseq
        %v819 = vshrl.u32 %v818, 7
        %vm820 = vcmp.eq.s32.totalorder %v819, 7
        %v821 = vsel %vm820, %v811, %v817
        %v822 = vld [vmem:[%s801] ss:$0 sm:$0xff]
        %823 = vst [vmem:[%s801] sm:$0xff] %v821
        %s824 = smov [#allocation9]
        %s825 = smov [#allocation11]
        %v826 = vld [vmem:[%s824] ss:$0 sm:$0xff]
        %s828 = scalar_lea.vmem %s824, 4294967295
        %v829 = vld [vmem:[%s828] sm:$0xfe]
        %v830 = vlaneseq
        %v831 = vshrl.u32 %v830, 7
        %vm832 = vcmp.eq.s32.totalorder %v831, 0
        %v833 = vsel %vm832, %v826, %v829
        %s834 = scalar_lea.vmem %s824, 7
        %v835 = vld [vmem:[%s834] ss:$0 sm:$0xff]
        %836 = vst [vmem:[%s824] sm:$0xff] %v833
        %v837 = vld [vmem:[%s825] ss:$0 sm:$0xff]
        %s838 = scalar_lea.vmem %s824, 1
        %839 = vst [vmem:[%s838] sm:$0x1] %v837
        %s840 = scalar_lea.vmem %s825, 1
        %v841 = vld [vmem:[%s840] sm:$0x7f]
        %v842 = vlaneseq
        %v843 = vshrl.u32 %v842, 7
        %vm844 = vcmp.eq.s32.totalorder %v843, 7
        %v845 = vsel %vm844, %v835, %v841
        %v846 = vld [vmem:[%s825] ss:$0 sm:$0xff]
        %847 = vst [vmem:[%s825] sm:$0xff] %v845
      $region101: #{custom-call.9} parent=93 // loop_footer
        %s408 = sadd.s32 1, %s404
      $region102: #{custom-call.9} parent=93 // loop_footer_branch
        %403 = sbr.rel target = $region98
      $region103: #{custom-call.9} parent=93 // loop_exit
        _
      %s848 = sadd.s32 %s306, 1
    $region94: #{custom-call.9} parent=1 // loop_footer
      _
    $region95: #{custom-call.9} parent=1 // loop_footer_branch
      %305 = sbr.rel target = $region91
    $region96: #{custom-call.9} parent=1 // loop_exit
      _
    %s851 = smov [#allocation12]
    %s852 = smov [#allocation4]
    %v853 = vlaneseq
    %v854 = vand.u32 %v853, 127
    %v855 = vmov %v854
    %v856 = vlaneseq
    %v857 = vshrl.u32 %v856, 7
    %v858 = vmov %v857
    %v859 = vld [vmem:[%s851] sm:$0xff]
    %vm862 = vcmp.eq.s32.totalorder %v858, %v855
    %v863 = vsel %vm862, %v859, 0.0
    %v864 = vrot.slane %v863, 4
    %v865 = vadd.f32 %v863, %v864
    %v866 = vrot.slane %v865, 2
    %v867 = vadd.f32 %v865, %v866
    %v868 = vrot.slane %v867, 1
    %v869 = vadd.f32 %v867, %v868
    %870 = vst [vmem:[%s852] sm:$0x1] %v869
    %s871 = smov [#allocation15]
    %s872 = smov [#allocation6]
    %v873 = vlaneseq
    %v874 = vand.u32 %v873, 127
    %v875 = vmov %v874
    %v876 = vlaneseq
    %v877 = vshrl.u32 %v876, 7
    %v878 = vmov %v877
    %v879 = vld [vmem:[%s871] sm:$0xff]
    %vm882 = vcmp.eq.s32.totalorder %v878, %v875
    %v883 = vsel %vm882, %v879, 0.0
    %v884 = vrot.slane %v883, 4
    %v885 = vadd.f32 %v883, %v884
    %v886 = vrot.slane %v885, 2
    %v887 = vadd.f32 %v885, %v886
    %v888 = vrot.slane %v887, 1
    %v889 = vadd.f32 %v887, %v888
    %890 = vst [vmem:[%s872] sm:$0x1] %v889
    %s892 = sshll.u32 1, 1
    %s893 = ssub.s32 %s892, 1
    %v895 = vld [vmem:[#allocation4] sm:%s893]
    %s896 = sshll.u32 1, 1
    %s897 = ssub.s32 %s896, 1
    %898 = vst [vmem:[#allocation5] sm:%s897] %v895
    %s900 = sshll.u32 1, 1
    %s901 = ssub.s32 %s900, 1
    %v903 = vld [vmem:[#allocation6] sm:%s901]
    %s904 = sshll.u32 1, 1
    %s905 = ssub.s32 %s904, 1
    %906 = vst [vmem:[#allocation7] sm:%s905] %v903
    // Predicated region
    $region104: #{custom-call.9} parent=1 // pred_check
      _
    $region105: #{custom-call.9} parent=1 // pred_check_branch
      %908 = sbr.rel (0) target = $region107
    $region106: #{custom-call.9} parent=1 // pred_region
      %p910 = scmp.gt.s32.totalorder 1, 0
      // Predicated region
      $region108: #{custom-call.9} parent=106 // pred_check
        %p911 = pneg %p910
      $region109: #{custom-call.9} parent=106 // pred_check_branch
        %913 = sbr.rel (%p911) target = $region111
      $region110: #{custom-call.9} parent=106 // pred_region
        %s914 = sshra.s32 1, 3
        %p915 = scmp.gt.s32.totalorder %s914, 0
        // Predicated region
        $region112: #{custom-call.9} parent=110 // pred_check
          %p916 = pneg %p915
        $region113: #{custom-call.9} parent=110 // pred_check_branch
          %918 = sbr.rel (%p916) target = $region115
        $region114: #{custom-call.9} parent=110 // pred_region
          %s919 = ssub.s32 %s914, 1
          %s920 = smul.u32 %s919, 128
          %s921 = sshra.s32 %s920, 4
          %s922 = scalar_lea.vmem [#allocation5], %s921
          %v923 = vld [vmem:[#allocation5] sm:$0xff]
          // While loop
          $region116: #{custom-call.9} parent=114 // loop_pre_header
            _
          $region117: #{custom-call.9} parent=114 // loop_header
            %s924 = sphi [#allocation5], %s946
            %s925 = sphi %s4, %s947
            %v926 = vphi %v923, %v948
            %s927 = ssub.s32 %s922, 64
            %p928 = scmp.gt.s32.totalorder %s924, %s927
          $region118: #{custom-call.9} parent=114 // loop_header_branch
            %930 = sbr.rel (%p928) target = $region122
          $region119: #{custom-call.9} parent=114 // loop_body
            %931 = vst [vmem:[%s925] sm:$0xff] %v926
            %v932 = vld [vmem:[%s924 + $0x8] sm:$0xff]
            %933 = vst [vmem:[%s925 + $0x8] sm:$0xff] %v932
            %v934 = vld [vmem:[%s924 + $0x10] sm:$0xff]
            %935 = vst [vmem:[%s925 + $0x10] sm:$0xff] %v934
            %v936 = vld [vmem:[%s924 + $0x18] sm:$0xff]
            %937 = vst [vmem:[%s925 + $0x18] sm:$0xff] %v936
            %v938 = vld [vmem:[%s924 + $0x20] sm:$0xff]
            %939 = vst [vmem:[%s925 + $0x20] sm:$0xff] %v938
            %v940 = vld [vmem:[%s924 + $0x28] sm:$0xff]
            %941 = vst [vmem:[%s925 + $0x28] sm:$0xff] %v940
            %v942 = vld [vmem:[%s924 + $0x30] sm:$0xff]
            %943 = vst [vmem:[%s925 + $0x30] sm:$0xff] %v942
            %v944 = vld [vmem:[%s924 + $0x38] sm:$0xff]
            %945 = vst [vmem:[%s925 + $0x38] sm:$0xff] %v944
          $region120: #{custom-call.9} parent=114 // loop_footer
            %s946 = scalar_lea.vmem %s924, 64
            %s947 = scalar_lea.vmem %s925, 64
            %v948 = vld [vmem:[%s924 + $0x40] sm:$0xff]
          $region121: #{custom-call.9} parent=114 // loop_footer_branch
            %949 = sbr.rel target = $region117
          $region122: #{custom-call.9} parent=114 // loop_exit
            _
          // While loop
          $region123: #{custom-call.9} parent=114 // loop_pre_header
            _
          $region124: #{custom-call.9} parent=114 // loop_header
            %s950 = sphi %s924, %s958
            %s951 = sphi %s925, %s959
            %v952 = vphi %v926, %v952
            %p953 = scmp.gt.s32.totalorder %s950, %s922
          $region125: #{custom-call.9} parent=114 // loop_header_branch
            %955 = sbr.rel (%p953) target = $region129
          $region126: #{custom-call.9} parent=114 // loop_body
            %v956 = vld [vmem:[%s950] sm:$0xff]
            %957 = vst [vmem:[%s951] sm:$0xff] %v956
          $region127: #{custom-call.9} parent=114 // loop_footer
            %s958 = scalar_lea.vmem %s950, 8
            %s959 = scalar_lea.vmem %s951, 8
          $region128: #{custom-call.9} parent=114 // loop_footer_branch
            %960 = sbr.rel target = $region124
          $region129: #{custom-call.9} parent=114 // loop_exit
            _
        $region115: #{custom-call.9} parent=110 // pred_fallthru
          _
        %s961 = sand.u32 1, 7
        %s962 = sshll.u32 1, %s961
        %s963 = ssub.s32 %s962, 1
        %s964 = smul.u32 %s914, 128
        %s965 = sshra.s32 %s964, 4
        %s966 = scalar_lea.vmem %s4, %s965
        %s967 = smul.u32 %s914, 128
        %s968 = sshra.s32 %s967, 4
        %s969 = scalar_lea.vmem [#allocation5], %s968
        %v970 = vld [vmem:[%s969] sm:%s963]
        %971 = vst [vmem:[%s966] sm:%s963] %v970
      $region111: #{custom-call.9} parent=106 // pred_fallthru
        _
    $region107: #{custom-call.9} parent=1 // pred_fallthru
      _
    // Predicated region
    $region130: #{custom-call.9} parent=1 // pred_check
      _
    $region131: #{custom-call.9} parent=1 // pred_check_branch
      %973 = sbr.rel (0) target = $region133
    $region132: #{custom-call.9} parent=1 // pred_region
      %p975 = scmp.gt.s32.totalorder 1, 0
      // Predicated region
      $region134: #{custom-call.9} parent=132 // pred_check
        %p976 = pneg %p975
      $region135: #{custom-call.9} parent=132 // pred_check_branch
        %978 = sbr.rel (%p976) target = $region137
      $region136: #{custom-call.9} parent=132 // pred_region
        %s979 = sshra.s32 1, 3
        %p980 = scmp.gt.s32.totalorder %s979, 0
        // Predicated region
        $region138: #{custom-call.9} parent=136 // pred_check
          %p981 = pneg %p980
        $region139: #{custom-call.9} parent=136 // pred_check_branch
          %983 = sbr.rel (%p981) target = $region141
        $region140: #{custom-call.9} parent=136 // pred_region
          %s984 = ssub.s32 %s979, 1
          %s985 = smul.u32 %s984, 128
          %s986 = sshra.s32 %s985, 4
          %s987 = scalar_lea.vmem [#allocation7], %s986
          %v988 = vld [vmem:[#allocation7] sm:$0xff]
          // While loop
          $region142: #{custom-call.9} parent=140 // loop_pre_header
            _
          $region143: #{custom-call.9} parent=140 // loop_header
            %s989 = sphi [#allocation7], %s1011
            %s990 = sphi %s5, %s1012
            %v991 = vphi %v988, %v1013
            %s992 = ssub.s32 %s987, 64
            %p993 = scmp.gt.s32.totalorder %s989, %s992
          $region144: #{custom-call.9} parent=140 // loop_header_branch
            %995 = sbr.rel (%p993) target = $region148
          $region145: #{custom-call.9} parent=140 // loop_body
            %996 = vst [vmem:[%s990] sm:$0xff] %v991
            %v997 = vld [vmem:[%s989 + $0x8] sm:$0xff]
            %998 = vst [vmem:[%s990 + $0x8] sm:$0xff] %v997
            %v999 = vld [vmem:[%s989 + $0x10] sm:$0xff]
            %1000 = vst [vmem:[%s990 + $0x10] sm:$0xff] %v999
            %v1001 = vld [vmem:[%s989 + $0x18] sm:$0xff]
            %1002 = vst [vmem:[%s990 + $0x18] sm:$0xff] %v1001
            %v1003 = vld [vmem:[%s989 + $0x20] sm:$0xff]
            %1004 = vst [vmem:[%s990 + $0x20] sm:$0xff] %v1003
            %v1005 = vld [vmem:[%s989 + $0x28] sm:$0xff]
            %1006 = vst [vmem:[%s990 + $0x28] sm:$0xff] %v1005
            %v1007 = vld [vmem:[%s989 + $0x30] sm:$0xff]
            %1008 = vst [vmem:[%s990 + $0x30] sm:$0xff] %v1007
            %v1009 = vld [vmem:[%s989 + $0x38] sm:$0xff]
            %1010 = vst [vmem:[%s990 + $0x38] sm:$0xff] %v1009
          $region146: #{custom-call.9} parent=140 // loop_footer
            %s1011 = scalar_lea.vmem %s989, 64
            %s1012 = scalar_lea.vmem %s990, 64
            %v1013 = vld [vmem:[%s989 + $0x40] sm:$0xff]
          $region147: #{custom-call.9} parent=140 // loop_footer_branch
            %1014 = sbr.rel target = $region143
          $region148: #{custom-call.9} parent=140 // loop_exit
            _
          // While loop
          $region149: #{custom-call.9} parent=140 // loop_pre_header
            _
          $region150: #{custom-call.9} parent=140 // loop_header
            %s1015 = sphi %s989, %s1023
            %s1016 = sphi %s990, %s1024
            %v1017 = vphi %v991, %v1017
            %p1018 = scmp.gt.s32.totalorder %s1015, %s987
          $region151: #{custom-call.9} parent=140 // loop_header_branch
            %1020 = sbr.rel (%p1018) target = $region155
          $region152: #{custom-call.9} parent=140 // loop_body
            %v1021 = vld [vmem:[%s1015] sm:$0xff]
            %1022 = vst [vmem:[%s1016] sm:$0xff] %v1021
          $region153: #{custom-call.9} parent=140 // loop_footer
            %s1023 = scalar_lea.vmem %s1015, 8
            %s1024 = scalar_lea.vmem %s1016, 8
          $region154: #{custom-call.9} parent=140 // loop_footer_branch
            %1025 = sbr.rel target = $region150
          $region155: #{custom-call.9} parent=140 // loop_exit
            _
        $region141: #{custom-call.9} parent=136 // pred_fallthru
          _
        %s1026 = sand.u32 1, 7
        %s1027 = sshll.u32 1, %s1026
        %s1028 = ssub.s32 %s1027, 1
        %s1029 = smul.u32 %s979, 128
        %s1030 = sshra.s32 %s1029, 4
        %s1031 = scalar_lea.vmem %s5, %s1030
        %s1032 = smul.u32 %s979, 128
        %s1033 = sshra.s32 %s1032, 4
        %s1034 = scalar_lea.vmem [#allocation7], %s1033
        %v1035 = vld [vmem:[%s1034] sm:%s1028]
        %1036 = vst [vmem:[%s1031] sm:%s1028] %v1035
      $region137: #{custom-call.9} parent=132 // pred_fallthru
        _
    $region133: #{custom-call.9} parent=1 // pred_fallthru
      _
    %p1038 = scmp.gt.s32.totalorder 8, 0
    // Predicated region
    $region156: #{custom-call.9} parent=1 // pred_check
      %p1039 = pneg %p1038
    $region157: #{custom-call.9} parent=1 // pred_check_branch
      %1041 = sbr.rel (%p1039) target = $region159
    $region158: #{custom-call.9} parent=1 // pred_region
      %s1042 = sshra.s32 8, 3
      %p1043 = scmp.gt.s32.totalorder %s1042, 0
      // Predicated region
      $region160: #{custom-call.9} parent=158 // pred_check
        %p1044 = pneg %p1043
      $region161: #{custom-call.9} parent=158 // pred_check_branch
        %1046 = sbr.rel (%p1044) target = $region163
      $region162: #{custom-call.9} parent=158 // pred_region
        %s1047 = ssub.s32 %s1042, 1
        %s1048 = smul.u32 %s1047, 128
        %s1049 = sshra.s32 %s1048, 4
        %s1050 = scalar_lea.vmem [#allocation8], %s1049
        %v1051 = vld [vmem:[#allocation8] sm:$0xff]
        // While loop
        $region164: #{custom-call.9} parent=162 // loop_pre_header
          _
        $region165: #{custom-call.9} parent=162 // loop_header
          %s1052 = sphi [#allocation8], %s1074
          %s1053 = sphi %s6, %s1075
          %v1054 = vphi %v1051, %v1076
          %s1055 = ssub.s32 %s1050, 64
          %p1056 = scmp.gt.s32.totalorder %s1052, %s1055
        $region166: #{custom-call.9} parent=162 // loop_header_branch
          %1058 = sbr.rel (%p1056) target = $region170
        $region167: #{custom-call.9} parent=162 // loop_body
          %1059 = vst [vmem:[%s1053] sm:$0xff] %v1054
          %v1060 = vld [vmem:[%s1052 + $0x8] sm:$0xff]
          %1061 = vst [vmem:[%s1053 + $0x8] sm:$0xff] %v1060
          %v1062 = vld [vmem:[%s1052 + $0x10] sm:$0xff]
          %1063 = vst [vmem:[%s1053 + $0x10] sm:$0xff] %v1062
          %v1064 = vld [vmem:[%s1052 + $0x18] sm:$0xff]
          %1065 = vst [vmem:[%s1053 + $0x18] sm:$0xff] %v1064
          %v1066 = vld [vmem:[%s1052 + $0x20] sm:$0xff]
          %1067 = vst [vmem:[%s1053 + $0x20] sm:$0xff] %v1066
          %v1068 = vld [vmem:[%s1052 + $0x28] sm:$0xff]
          %1069 = vst [vmem:[%s1053 + $0x28] sm:$0xff] %v1068
          %v1070 = vld [vmem:[%s1052 + $0x30] sm:$0xff]
          %1071 = vst [vmem:[%s1053 + $0x30] sm:$0xff] %v1070
          %v1072 = vld [vmem:[%s1052 + $0x38] sm:$0xff]
          %1073 = vst [vmem:[%s1053 + $0x38] sm:$0xff] %v1072
        $region168: #{custom-call.9} parent=162 // loop_footer
          %s1074 = scalar_lea.vmem %s1052, 64
          %s1075 = scalar_lea.vmem %s1053, 64
          %v1076 = vld [vmem:[%s1052 + $0x40] sm:$0xff]
        $region169: #{custom-call.9} parent=162 // loop_footer_branch
          %1077 = sbr.rel target = $region165
        $region170: #{custom-call.9} parent=162 // loop_exit
          _
        // While loop
        $region171: #{custom-call.9} parent=162 // loop_pre_header
          _
        $region172: #{custom-call.9} parent=162 // loop_header
          %s1078 = sphi %s1052, %s1086
          %s1079 = sphi %s1053, %s1087
          %v1080 = vphi %v1054, %v1080
          %p1081 = scmp.gt.s32.totalorder %s1078, %s1050
        $region173: #{custom-call.9} parent=162 // loop_header_branch
          %1083 = sbr.rel (%p1081) target = $region177
        $region174: #{custom-call.9} parent=162 // loop_body
          %v1084 = vld [vmem:[%s1078] sm:$0xff]
          %1085 = vst [vmem:[%s1079] sm:$0xff] %v1084
        $region175: #{custom-call.9} parent=162 // loop_footer
          %s1086 = scalar_lea.vmem %s1078, 8
          %s1087 = scalar_lea.vmem %s1079, 8
        $region176: #{custom-call.9} parent=162 // loop_footer_branch
          %1088 = sbr.rel target = $region172
        $region177: #{custom-call.9} parent=162 // loop_exit
          _
      $region163: #{custom-call.9} parent=158 // pred_fallthru
        _
      %s1089 = sand.u32 8, 7
      %s1090 = sshll.u32 1, %s1089
      %s1091 = ssub.s32 %s1090, 1
      %s1092 = smul.u32 %s1042, 128
      %s1093 = sshra.s32 %s1092, 4
      %s1094 = scalar_lea.vmem %s6, %s1093
      %s1095 = smul.u32 %s1042, 128
      %s1096 = sshra.s32 %s1095, 4
      %s1097 = scalar_lea.vmem [#allocation8], %s1096
      %v1098 = vld [vmem:[%s1097] sm:%s1091]
      %1099 = vst [vmem:[%s1094] sm:%s1091] %v1098
    $region159: #{custom-call.9} parent=1 // pred_fallthru
      _
    %p1101 = scmp.gt.s32.totalorder 8, 0
    // Predicated region
    $region178: #{custom-call.9} parent=1 // pred_check
      %p1102 = pneg %p1101
    $region179: #{custom-call.9} parent=1 // pred_check_branch
      %1104 = sbr.rel (%p1102) target = $region181
    $region180: #{custom-call.9} parent=1 // pred_region
      %s1105 = sshra.s32 8, 3
      %p1106 = scmp.gt.s32.totalorder %s1105, 0
      // Predicated region
      $region182: #{custom-call.9} parent=180 // pred_check
        %p1107 = pneg %p1106
      $region183: #{custom-call.9} parent=180 // pred_check_branch
        %1109 = sbr.rel (%p1107) target = $region185
      $region184: #{custom-call.9} parent=180 // pred_region
        %s1110 = ssub.s32 %s1105, 1
        %s1111 = smul.u32 %s1110, 128
        %s1112 = sshra.s32 %s1111, 4
        %s1113 = scalar_lea.vmem [#allocation9], %s1112
        %v1114 = vld [vmem:[#allocation9] sm:$0xff]
        // While loop
        $region186: #{custom-call.9} parent=184 // loop_pre_header
          _
        $region187: #{custom-call.9} parent=184 // loop_header
          %s1115 = sphi [#allocation9], %s1137
          %s1116 = sphi %s7, %s1138
          %v1117 = vphi %v1114, %v1139
          %s1118 = ssub.s32 %s1113, 64
          %p1119 = scmp.gt.s32.totalorder %s1115, %s1118
        $region188: #{custom-call.9} parent=184 // loop_header_branch
          %1121 = sbr.rel (%p1119) target = $region192
        $region189: #{custom-call.9} parent=184 // loop_body
          %1122 = vst [vmem:[%s1116] sm:$0xff] %v1117
          %v1123 = vld [vmem:[%s1115 + $0x8] sm:$0xff]
          %1124 = vst [vmem:[%s1116 + $0x8] sm:$0xff] %v1123
          %v1125 = vld [vmem:[%s1115 + $0x10] sm:$0xff]
          %1126 = vst [vmem:[%s1116 + $0x10] sm:$0xff] %v1125
          %v1127 = vld [vmem:[%s1115 + $0x18] sm:$0xff]
          %1128 = vst [vmem:[%s1116 + $0x18] sm:$0xff] %v1127
          %v1129 = vld [vmem:[%s1115 + $0x20] sm:$0xff]
          %1130 = vst [vmem:[%s1116 + $0x20] sm:$0xff] %v1129
          %v1131 = vld [vmem:[%s1115 + $0x28] sm:$0xff]
          %1132 = vst [vmem:[%s1116 + $0x28] sm:$0xff] %v1131
          %v1133 = vld [vmem:[%s1115 + $0x30] sm:$0xff]
          %1134 = vst [vmem:[%s1116 + $0x30] sm:$0xff] %v1133
          %v1135 = vld [vmem:[%s1115 + $0x38] sm:$0xff]
          %1136 = vst [vmem:[%s1116 + $0x38] sm:$0xff] %v1135
        $region190: #{custom-call.9} parent=184 // loop_footer
          %s1137 = scalar_lea.vmem %s1115, 64
          %s1138 = scalar_lea.vmem %s1116, 64
          %v1139 = vld [vmem:[%s1115 + $0x40] sm:$0xff]
        $region191: #{custom-call.9} parent=184 // loop_footer_branch
          %1140 = sbr.rel target = $region187
        $region192: #{custom-call.9} parent=184 // loop_exit
          _
        // While loop
        $region193: #{custom-call.9} parent=184 // loop_pre_header
          _
        $region194: #{custom-call.9} parent=184 // loop_header
          %s1141 = sphi %s1115, %s1149
          %s1142 = sphi %s1116, %s1150
          %v1143 = vphi %v1117, %v1143
          %p1144 = scmp.gt.s32.totalorder %s1141, %s1113
        $region195: #{custom-call.9} parent=184 // loop_header_branch
          %1146 = sbr.rel (%p1144) target = $region199
        $region196: #{custom-call.9} parent=184 // loop_body
          %v1147 = vld [vmem:[%s1141] sm:$0xff]
          %1148 = vst [vmem:[%s1142] sm:$0xff] %v1147
        $region197: #{custom-call.9} parent=184 // loop_footer
          %s1149 = scalar_lea.vmem %s1141, 8
          %s1150 = scalar_lea.vmem %s1142, 8
        $region198: #{custom-call.9} parent=184 // loop_footer_branch
          %1151 = sbr.rel target = $region194
        $region199: #{custom-call.9} parent=184 // loop_exit
          _
      $region185: #{custom-call.9} parent=180 // pred_fallthru
        _
      %s1152 = sand.u32 8, 7
      %s1153 = sshll.u32 1, %s1152
      %s1154 = ssub.s32 %s1153, 1
      %s1155 = smul.u32 %s1105, 128
      %s1156 = sshra.s32 %s1155, 4
      %s1157 = scalar_lea.vmem %s7, %s1156
      %s1158 = smul.u32 %s1105, 128
      %s1159 = sshra.s32 %s1158, 4
      %s1160 = scalar_lea.vmem [#allocation9], %s1159
      %v1161 = vld [vmem:[%s1160] sm:%s1154]
      %1162 = vst [vmem:[%s1157] sm:%s1154] %v1161
    $region181: #{custom-call.9} parent=1 // pred_fallthru
      _
    %p1164 = scmp.gt.s32.totalorder 8, 0
    // Predicated region
    $region200: #{custom-call.9} parent=1 // pred_check
      %p1165 = pneg %p1164
    $region201: #{custom-call.9} parent=1 // pred_check_branch
      %1167 = sbr.rel (%p1165) target = $region203
    $region202: #{custom-call.9} parent=1 // pred_region
      %s1168 = sshra.s32 8, 3
      %p1169 = scmp.gt.s32.totalorder %s1168, 0
      // Predicated region
      $region204: #{custom-call.9} parent=202 // pred_check
        %p1170 = pneg %p1169
      $region205: #{custom-call.9} parent=202 // pred_check_branch
        %1172 = sbr.rel (%p1170) target = $region207
      $region206: #{custom-call.9} parent=202 // pred_region
        %s1173 = ssub.s32 %s1168, 1
        %s1174 = smul.u32 %s1173, 128
        %s1175 = sshra.s32 %s1174, 4
        %s1176 = scalar_lea.vmem [#allocation10], %s1175
        %v1177 = vld [vmem:[#allocation10] sm:$0xff]
        // While loop
        $region208: #{custom-call.9} parent=206 // loop_pre_header
          _
        $region209: #{custom-call.9} parent=206 // loop_header
          %s1178 = sphi [#allocation10], %s1200
          %s1179 = sphi %s8, %s1201
          %v1180 = vphi %v1177, %v1202
          %s1181 = ssub.s32 %s1176, 64
          %p1182 = scmp.gt.s32.totalorder %s1178, %s1181
        $region210: #{custom-call.9} parent=206 // loop_header_branch
          %1184 = sbr.rel (%p1182) target = $region214
        $region211: #{custom-call.9} parent=206 // loop_body
          %1185 = vst [vmem:[%s1179] sm:$0xff] %v1180
          %v1186 = vld [vmem:[%s1178 + $0x8] sm:$0xff]
          %1187 = vst [vmem:[%s1179 + $0x8] sm:$0xff] %v1186
          %v1188 = vld [vmem:[%s1178 + $0x10] sm:$0xff]
          %1189 = vst [vmem:[%s1179 + $0x10] sm:$0xff] %v1188
          %v1190 = vld [vmem:[%s1178 + $0x18] sm:$0xff]
          %1191 = vst [vmem:[%s1179 + $0x18] sm:$0xff] %v1190
          %v1192 = vld [vmem:[%s1178 + $0x20] sm:$0xff]
          %1193 = vst [vmem:[%s1179 + $0x20] sm:$0xff] %v1192
          %v1194 = vld [vmem:[%s1178 + $0x28] sm:$0xff]
          %1195 = vst [vmem:[%s1179 + $0x28] sm:$0xff] %v1194
          %v1196 = vld [vmem:[%s1178 + $0x30] sm:$0xff]
          %1197 = vst [vmem:[%s1179 + $0x30] sm:$0xff] %v1196
          %v1198 = vld [vmem:[%s1178 + $0x38] sm:$0xff]
          %1199 = vst [vmem:[%s1179 + $0x38] sm:$0xff] %v1198
        $region212: #{custom-call.9} parent=206 // loop_footer
          %s1200 = scalar_lea.vmem %s1178, 64
          %s1201 = scalar_lea.vmem %s1179, 64
          %v1202 = vld [vmem:[%s1178 + $0x40] sm:$0xff]
        $region213: #{custom-call.9} parent=206 // loop_footer_branch
          %1203 = sbr.rel target = $region209
        $region214: #{custom-call.9} parent=206 // loop_exit
          _
        // While loop
        $region215: #{custom-call.9} parent=206 // loop_pre_header
          _
        $region216: #{custom-call.9} parent=206 // loop_header
          %s1204 = sphi %s1178, %s1212
          %s1205 = sphi %s1179, %s1213
          %v1206 = vphi %v1180, %v1206
          %p1207 = scmp.gt.s32.totalorder %s1204, %s1176
        $region217: #{custom-call.9} parent=206 // loop_header_branch
          %1209 = sbr.rel (%p1207) target = $region221
        $region218: #{custom-call.9} parent=206 // loop_body
          %v1210 = vld [vmem:[%s1204] sm:$0xff]
          %1211 = vst [vmem:[%s1205] sm:$0xff] %v1210
        $region219: #{custom-call.9} parent=206 // loop_footer
          %s1212 = scalar_lea.vmem %s1204, 8
          %s1213 = scalar_lea.vmem %s1205, 8
        $region220: #{custom-call.9} parent=206 // loop_footer_branch
          %1214 = sbr.rel target = $region216
        $region221: #{custom-call.9} parent=206 // loop_exit
          _
      $region207: #{custom-call.9} parent=202 // pred_fallthru
        _
      %s1215 = sand.u32 8, 7
      %s1216 = sshll.u32 1, %s1215
      %s1217 = ssub.s32 %s1216, 1
      %s1218 = smul.u32 %s1168, 128
      %s1219 = sshra.s32 %s1218, 4
      %s1220 = scalar_lea.vmem %s8, %s1219
      %s1221 = smul.u32 %s1168, 128
      %s1222 = sshra.s32 %s1221, 4
      %s1223 = scalar_lea.vmem [#allocation10], %s1222
      %v1224 = vld [vmem:[%s1223] sm:%s1217]
      %1225 = vst [vmem:[%s1220] sm:%s1217] %v1224
    $region203: #{custom-call.9} parent=1 // pred_fallthru
      _
    %p1227 = scmp.gt.s32.totalorder 8, 0
    // Predicated region
    $region222: #{custom-call.9} parent=1 // pred_check
      %p1228 = pneg %p1227
    $region223: #{custom-call.9} parent=1 // pred_check_branch
      %1230 = sbr.rel (%p1228) target = $region225
    $region224: #{custom-call.9} parent=1 // pred_region
      %s1231 = sshra.s32 8, 3
      %p1232 = scmp.gt.s32.totalorder %s1231, 0
      // Predicated region
      $region226: #{custom-call.9} parent=224 // pred_check
        %p1233 = pneg %p1232
      $region227: #{custom-call.9} parent=224 // pred_check_branch
        %1235 = sbr.rel (%p1233) target = $region229
      $region228: #{custom-call.9} parent=224 // pred_region
        %s1236 = ssub.s32 %s1231, 1
        %s1237 = smul.u32 %s1236, 128
        %s1238 = sshra.s32 %s1237, 4
        %s1239 = scalar_lea.vmem [#allocation11], %s1238
        %v1240 = vld [vmem:[#allocation11] sm:$0xff]
        // While loop
        $region230: #{custom-call.9} parent=228 // loop_pre_header
          _
        $region231: #{custom-call.9} parent=228 // loop_header
          %s1241 = sphi [#allocation11], %s1263
          %s1242 = sphi %s9, %s1264
          %v1243 = vphi %v1240, %v1265
          %s1244 = ssub.s32 %s1239, 64
          %p1245 = scmp.gt.s32.totalorder %s1241, %s1244
        $region232: #{custom-call.9} parent=228 // loop_header_branch
          %1247 = sbr.rel (%p1245) target = $region236
        $region233: #{custom-call.9} parent=228 // loop_body
          %1248 = vst [vmem:[%s1242] sm:$0xff] %v1243
          %v1249 = vld [vmem:[%s1241 + $0x8] sm:$0xff]
          %1250 = vst [vmem:[%s1242 + $0x8] sm:$0xff] %v1249
          %v1251 = vld [vmem:[%s1241 + $0x10] sm:$0xff]
          %1252 = vst [vmem:[%s1242 + $0x10] sm:$0xff] %v1251
          %v1253 = vld [vmem:[%s1241 + $0x18] sm:$0xff]
          %1254 = vst [vmem:[%s1242 + $0x18] sm:$0xff] %v1253
          %v1255 = vld [vmem:[%s1241 + $0x20] sm:$0xff]
          %1256 = vst [vmem:[%s1242 + $0x20] sm:$0xff] %v1255
          %v1257 = vld [vmem:[%s1241 + $0x28] sm:$0xff]
          %1258 = vst [vmem:[%s1242 + $0x28] sm:$0xff] %v1257
          %v1259 = vld [vmem:[%s1241 + $0x30] sm:$0xff]
          %1260 = vst [vmem:[%s1242 + $0x30] sm:$0xff] %v1259
          %v1261 = vld [vmem:[%s1241 + $0x38] sm:$0xff]
          %1262 = vst [vmem:[%s1242 + $0x38] sm:$0xff] %v1261
        $region234: #{custom-call.9} parent=228 // loop_footer
          %s1263 = scalar_lea.vmem %s1241, 64
          %s1264 = scalar_lea.vmem %s1242, 64
          %v1265 = vld [vmem:[%s1241 + $0x40] sm:$0xff]
        $region235: #{custom-call.9} parent=228 // loop_footer_branch
          %1266 = sbr.rel target = $region231
        $region236: #{custom-call.9} parent=228 // loop_exit
          _
        // While loop
        $region237: #{custom-call.9} parent=228 // loop_pre_header
          _
        $region238: #{custom-call.9} parent=228 // loop_header
          %s1267 = sphi %s1241, %s1275
          %s1268 = sphi %s1242, %s1276
          %v1269 = vphi %v1243, %v1269
          %p1270 = scmp.gt.s32.totalorder %s1267, %s1239
        $region239: #{custom-call.9} parent=228 // loop_header_branch
          %1272 = sbr.rel (%p1270) target = $region243
        $region240: #{custom-call.9} parent=228 // loop_body
          %v1273 = vld [vmem:[%s1267] sm:$0xff]
          %1274 = vst [vmem:[%s1268] sm:$0xff] %v1273
        $region241: #{custom-call.9} parent=228 // loop_footer
          %s1275 = scalar_lea.vmem %s1267, 8
          %s1276 = scalar_lea.vmem %s1268, 8
        $region242: #{custom-call.9} parent=228 // loop_footer_branch
          %1277 = sbr.rel target = $region238
        $region243: #{custom-call.9} parent=228 // loop_exit
          _
      $region229: #{custom-call.9} parent=224 // pred_fallthru
        _
      %s1278 = sand.u32 8, 7
      %s1279 = sshll.u32 1, %s1278
      %s1280 = ssub.s32 %s1279, 1
      %s1281 = smul.u32 %s1231, 128
      %s1282 = sshra.s32 %s1281, 4
      %s1283 = scalar_lea.vmem %s9, %s1282
      %s1284 = smul.u32 %s1231, 128
      %s1285 = sshra.s32 %s1284, 4
      %s1286 = scalar_lea.vmem [#allocation11], %s1285
      %v1287 = vld [vmem:[%s1286] sm:%s1280]
      %1288 = vst [vmem:[%s1283] sm:%s1280] %v1287
    $region225: #{custom-call.9} parent=1 // pred_fallthru
      _
    // Predicated region
    $region244: #{custom-call.9} parent=1 // pred_check
      _
    $region245: #{custom-call.9} parent=1 // pred_check_branch
      %1290 = sbr.rel (0) target = $region247
    $region246: #{custom-call.9} parent=1 // pred_region
      _
    $region247: #{custom-call.9} parent=1 // pred_fallthru
      _
    // Predicated region
    $region248: #{custom-call.9} parent=1 // pred_check
      _
    $region249: #{custom-call.9} parent=1 // pred_check_branch
      %1292 = sbr.rel (0) target = $region251
    $region250: #{custom-call.9} parent=1 // pred_region
      _
    $region251: #{custom-call.9} parent=1 // pred_fallthru
      _

// kernel: custom-call.4
$region0: #{custom-call.4}
  %s0 = inlined_call_operand.vmem [shape: f32[8,8,8], index: 0, kind: input, shape index: {}]
  %s1 = inlined_call_operand.vmem [shape: f32[8,8,8], index: 1, kind: input, shape index: {}]
  %s2 = inlined_call_operand.vmem [shape: f32[8,8,8], index: 2, kind: input, shape index: {}]
  %s3 = inlined_call_operand.vmem [shape: f32[8,8,8], index: 3, kind: input, shape index: {}]
  %s4 = inlined_call_operand.vmem [shape: f32[8,8], index: 4, kind: output, shape index: {0}]
  %s5 = inlined_call_operand.vmem [shape: f32[8,8], index: 5, kind: output, shape index: {1}]
  %s6 = inlined_call_operand.vmem [shape: f32[8,8,8], index: 6, kind: output, shape index: {2}]
  %s7 = inlined_call_operand.vmem [shape: f32[8,8,8], index: 7, kind: output, shape index: {3}]
  %s8 = inlined_call_operand.vmem [shape: f32[8,8,8], index: 8, kind: output, shape index: {4}]
  %s9 = inlined_call_operand.vmem [shape: f32[8,8,8], index: 9, kind: output, shape index: {5}]
  %10 = xla_tuple %s4, %s5, %s6, %s7, %s8, %s9
  $region1: #{custom-call.4} parent=0
    #allocation0 [shape = 'u8[8192]{0}', space=vmem, size = 0x2000, scoped, tag = 'operand span for operand 0']
    #allocation1 [shape = 'u8[8192]{0}', space=vmem, size = 0x2000, scoped, tag = 'operand span for operand 1']
    #allocation2 [shape = 'u8[8192]{0}', space=vmem, size = 0x2000, scoped, tag = 'operand span for operand 2']
    #allocation3 [shape = 'u8[8192]{0}', space=vmem, size = 0x2000, scoped, tag = 'operand span for operand 3']
    #allocation4 [shape = 'u8[8192]{0}', space=vmem, size = 0x2000, scoped, tag = 'operand span for operand 4']
    #allocation5 [shape = 'u8[8192]{0}', space=vmem, size = 0x2000, scoped, tag = 'operand span for operand 5']
    #allocation6 [shape = 'u8[8192]{0}', space=vmem, size = 0x2000, scoped, tag = 'operand span for operand 6']
    #allocation7 [shape = 'u8[8192]{0}', space=vmem, size = 0x2000, scoped, tag = 'operand span for operand 7']
    #allocation8 [shape = 'u8[8192]{0}', space=vmem, size = 0x2000, scoped, tag = 'operand span for operand 8']
    #allocation9 [shape = 'u8[8192]{0}', space=vmem, size = 0x2000, scoped, tag = 'operand span for operand 9']
    loop: start=0, step=1, limit=10
    $region2: #{custom-call.4} parent=1 // loop_pre_header
      _
    $region3: #{custom-call.4} parent=1 // loop_header
      %s12 = sphi 0, %s16
      %p13 = scmp.ge.s32.totalorder %s12, 10
      %s24 = sphi 0, %s26
      %s27 = sphi 0, %s24
      %s28 = sphi 0, %s27
      %s44 = sphi 0, %s28
      %s52 = sphi 0, %s54
      %s55 = sphi 0, %s52
      %s56 = sphi 0, %s55
      %s72 = sphi 0, %s56
    $region4: #{custom-call.4} parent=1 // loop_header_branch
      %15 = sbr.rel (%p13) target = $region8
    $region5: #{custom-call.4} parent=1 // loop_body
      %s17 = ssub.s32 %s12, 1
      %s18 = ssub.s32 %s12, 2
      %s19 = sadd.s32 %s12, 1
      %s20 = sshrl.u32 %s12, 3
      %s21 = sshrl.u32 %s19, 3
      %s22 = ssub.s32 %s20, %s21
      %p23 = scmp.eq.s32.totalorder %s22, 0
      %s25 = sadd.s32 %s24, 1
      %s26 = scalar_select %p23, %s24, %s25
      %p29 = pneg %p23
      %p30 = scmp.eq.s32.totalorder %s12, 7
      %p31 = por %p29, %p30
      %p32 = scmp.ne.s32.totalorder %s24, %s27
      %p33 = scmp.eq.s32.totalorder %s12, 0
      %p34 = por %p32, %p33
      %p35 = scmp.ne.s32.totalorder %s24, %s27
      %p36 = scmp.eq.s32.totalorder %s17, 7
      %p37 = por %p35, %p36
      %p38 = scmp.ne.s32.totalorder %s27, %s28
      %p39 = scmp.eq.s32.totalorder %s17, 0
      %p40 = por %p38, %p39
      %p41 = scmp.ne.s32.totalorder %s27, %s28
      %p42 = scmp.eq.s32.totalorder %s18, 7
      %p43 = por %p41, %p42
      %p45 = scmp.ne.s32.totalorder %s28, %s44
      %p46 = scmp.eq.s32.totalorder %s18, 0
      %p47 = por %p45, %p46
      %s48 = sshrl.u32 %s12, 3
      %s49 = sshrl.u32 %s19, 3
      %s50 = ssub.s32 %s48, %s49
      %p51 = scmp.eq.s32.totalorder %s50, 0
      %s53 = sadd.s32 %s52, 1
      %s54 = scalar_select %p51, %s52, %s53
      %p57 = pneg %p51
      %p58 = scmp.eq.s32.totalorder %s12, 7
      %p59 = por %p57, %p58
      %p60 = scmp.ne.s32.totalorder %s52, %s55
      %p61 = scmp.eq.s32.totalorder %s12, 0
      %p62 = por %p60, %p61
      %p63 = scmp.ne.s32.totalorder %s52, %s55
      %p64 = scmp.eq.s32.totalorder %s17, 7
      %p65 = por %p63, %p64
      %p66 = scmp.ne.s32.totalorder %s55, %s56
      %p67 = scmp.eq.s32.totalorder %s17, 0
      %p68 = por %p66, %p67
      %p69 = scmp.ne.s32.totalorder %s55, %s56
      %p70 = scmp.eq.s32.totalorder %s18, 7
      %p71 = por %p69, %p70
      %p73 = scmp.ne.s32.totalorder %s56, %s72
      %p74 = scmp.eq.s32.totalorder %s18, 0
      %p75 = por %p73, %p74
      %p76 = scmp.le.s32.totalorder 1, %s12
      %p77 = scmp.lt.s32.totalorder %s12, 9
      %p78 = pnand %p76, %p77
      %p79 = pneg %p78
      // Predicated region
      $region9: #{custom-call.4} parent=5 // pred_check
        _
      $region10: #{custom-call.4} parent=5 // pred_check_branch
        %81 = sbr.rel (%p78) target = $region12
      $region11: #{custom-call.4} parent=5 // pred_region
        %s82 = ssub.s32 %s12, 1
      $region12: #{custom-call.4} parent=5 // pred_fallthru
        _
      %p83 = scmp.lt.s32.totalorder %s12, 8
      // Predicated region
      $region13: #{custom-call.4} parent=5 // pred_check
        %p84 = pneg %p83
      $region14: #{custom-call.4} parent=5 // pred_check_branch
        %86 = sbr.rel (%p84) target = $region16
      $region15: #{custom-call.4} parent=5 // pred_region
        %s87 = sand.u32 %s12, 1
        %s88 = sand.u32 %s12, 1
        %s89 = smul.addr %s88, 8
        %s90 = scalar_lea.vmem [#allocation0], %s89
        %s91 = smul.addr %s12, 8
        %s92 = scalar_lea.vmem %s0, %s91
        // Predicated region
        $region17: #{custom-call.4} parent=15 // pred_check
          _
        $region18: #{custom-call.4} parent=15 // pred_check_branch
          %94 = sbr.rel (0) target = $region20
        $region19: #{custom-call.4} parent=15 // pred_region
          // Predicated region
          $region21: #{custom-call.4} parent=19 // pred_check
            _
          $region22: #{custom-call.4} parent=19 // pred_check_branch
            %96 = sbr.rel (0) target = $region24
          $region23: #{custom-call.4} parent=19 // pred_region
            // Predicated region
            $region36: #{custom-call.4} parent=23 // pred_check
              _
            $region37: #{custom-call.4} parent=23 // pred_check_branch
              %112 = sbr.rel (0) target = $region39
            $region38: #{custom-call.4} parent=23 // pred_region
              loop: start=0, step=1, limit=1
              $region40: #{custom-call.4} parent=38 // loop_pre_header
                _
              $region41: #{custom-call.4} parent=38 // loop_header
                %s114 = sphi 0, %s118
                %p115 = scmp.ge.s32.totalorder %s114, 1
                %s119 = sphi %s92, %s92
                %s120 = sphi %s90, %s90
              $region42: #{custom-call.4} parent=38 // loop_header_branch
                %117 = sbr.rel (%p115) target = $region46
              $region43: #{custom-call.4} parent=38 // loop_body
                %v121 = vld [vmem:[%s119] sm:$0xff]
                %122 = vst [vmem:[%s120] sm:$0xff] %v121
              $region44: #{custom-call.4} parent=38 // loop_footer
                %s118 = sadd.s32 1, %s114
              $region45: #{custom-call.4} parent=38 // loop_footer_branch
                %113 = sbr.rel target = $region41
              $region46: #{custom-call.4} parent=38 // loop_exit
                _
            $region39: #{custom-call.4} parent=23 // pred_fallthru
              _
            // Predicated region
            $region47: #{custom-call.4} parent=23 // pred_check
              _
            $region48: #{custom-call.4} parent=23 // pred_check_branch
              %124 = sbr.rel target = $region50
            $region49: #{custom-call.4} parent=23 // pred_region
              _
            $region50: #{custom-call.4} parent=23 // pred_fallthru
              _
          $region24: #{custom-call.4} parent=19 // pred_fallthru
            _
          // Predicated region
          $region25: #{custom-call.4} parent=19 // pred_check
            _
          $region26: #{custom-call.4} parent=19 // pred_check_branch
            %98 = sbr.rel target = $region28
          $region27: #{custom-call.4} parent=19 // pred_region
            %s100 = ssub.s32 256, 1
            loop: start=0, step=1, limit=1
            $region29: #{custom-call.4} parent=27 // loop_pre_header
              _
            $region30: #{custom-call.4} parent=27 // loop_header
              %s102 = sphi 0, %s106
              %p103 = scmp.ge.s32.totalorder %s102, 1
              %s107 = sphi %s92, %s92
              %s108 = sphi %s90, %s90
            $region31: #{custom-call.4} parent=27 // loop_header_branch
              %105 = sbr.rel (%p103) target = $region35
            $region32: #{custom-call.4} parent=27 // loop_body
              %v109 = vld [vmem:[%s107] sm:%s100]
              %110 = vst [vmem:[%s108] sm:%s100] %v109
            $region33: #{custom-call.4} parent=27 // loop_footer
              %s106 = sadd.s32 1, %s102
            $region34: #{custom-call.4} parent=27 // loop_footer_branch
              %101 = sbr.rel target = $region30
            $region35: #{custom-call.4} parent=27 // loop_exit
              _
          $region28: #{custom-call.4} parent=19 // pred_fallthru
            _
        $region20: #{custom-call.4} parent=15 // pred_fallthru
          _
        %125 = vnop
        %s126 = sand.u32 %s12, 1
        %s127 = sand.u32 %s12, 1
        %s128 = smul.addr %s127, 8
        %s129 = scalar_lea.vmem [#allocation1], %s128
        %s130 = smul.addr %s12, 8
        %s131 = scalar_lea.vmem %s1, %s130
        // Predicated region
        $region51: #{custom-call.4} parent=15 // pred_check
          _
        $region52: #{custom-call.4} parent=15 // pred_check_branch
          %133 = sbr.rel (0) target = $region54
        $region53: #{custom-call.4} parent=15 // pred_region
          // Predicated region
          $region55: #{custom-call.4} parent=53 // pred_check
            _
          $region56: #{custom-call.4} parent=53 // pred_check_branch
            %135 = sbr.rel (0) target = $region58
          $region57: #{custom-call.4} parent=53 // pred_region
            // Predicated region
            $region70: #{custom-call.4} parent=57 // pred_check
              _
            $region71: #{custom-call.4} parent=57 // pred_check_branch
              %151 = sbr.rel (0) target = $region73
            $region72: #{custom-call.4} parent=57 // pred_region
              loop: start=0, step=1, limit=1
              $region74: #{custom-call.4} parent=72 // loop_pre_header
                _
              $region75: #{custom-call.4} parent=72 // loop_header
                %s153 = sphi 0, %s157
                %p154 = scmp.ge.s32.totalorder %s153, 1
                %s158 = sphi %s131, %s131
                %s159 = sphi %s129, %s129
              $region76: #{custom-call.4} parent=72 // loop_header_branch
                %156 = sbr.rel (%p154) target = $region80
              $region77: #{custom-call.4} parent=72 // loop_body
                %v160 = vld [vmem:[%s158] sm:$0xff]
                %161 = vst [vmem:[%s159] sm:$0xff] %v160
              $region78: #{custom-call.4} parent=72 // loop_footer
                %s157 = sadd.s32 1, %s153
              $region79: #{custom-call.4} parent=72 // loop_footer_branch
                %152 = sbr.rel target = $region75
              $region80: #{custom-call.4} parent=72 // loop_exit
                _
            $region73: #{custom-call.4} parent=57 // pred_fallthru
              _
            // Predicated region
            $region81: #{custom-call.4} parent=57 // pred_check
              _
            $region82: #{custom-call.4} parent=57 // pred_check_branch
              %163 = sbr.rel target = $region84
            $region83: #{custom-call.4} parent=57 // pred_region
              _
            $region84: #{custom-call.4} parent=57 // pred_fallthru
              _
          $region58: #{custom-call.4} parent=53 // pred_fallthru
            _
          // Predicated region
          $region59: #{custom-call.4} parent=53 // pred_check
            _
          $region60: #{custom-call.4} parent=53 // pred_check_branch
            %137 = sbr.rel target = $region62
          $region61: #{custom-call.4} parent=53 // pred_region
            %s139 = ssub.s32 256, 1
            loop: start=0, step=1, limit=1
            $region63: #{custom-call.4} parent=61 // loop_pre_header
              _
            $region64: #{custom-call.4} parent=61 // loop_header
              %s141 = sphi 0, %s145
              %p142 = scmp.ge.s32.totalorder %s141, 1
              %s146 = sphi %s131, %s131
              %s147 = sphi %s129, %s129
            $region65: #{custom-call.4} parent=61 // loop_header_branch
              %144 = sbr.rel (%p142) target = $region69
            $region66: #{custom-call.4} parent=61 // loop_body
              %v148 = vld [vmem:[%s146] sm:%s139]
              %149 = vst [vmem:[%s147] sm:%s139] %v148
            $region67: #{custom-call.4} parent=61 // loop_footer
              %s145 = sadd.s32 1, %s141
            $region68: #{custom-call.4} parent=61 // loop_footer_branch
              %140 = sbr.rel target = $region64
            $region69: #{custom-call.4} parent=61 // loop_exit
              _
          $region62: #{custom-call.4} parent=53 // pred_fallthru
            _
        $region54: #{custom-call.4} parent=15 // pred_fallthru
          _
        %164 = vnop
        %s165 = sand.u32 %s12, 1
        %s166 = sand.u32 %s12, 1
        %s167 = smul.addr %s166, 8
        %s168 = scalar_lea.vmem [#allocation2], %s167
        %s169 = smul.addr %s12, 8
        %s170 = scalar_lea.vmem %s2, %s169
        // Predicated region
        $region85: #{custom-call.4} parent=15 // pred_check
          _
        $region86: #{custom-call.4} parent=15 // pred_check_branch
          %172 = sbr.rel (0) target = $region88
        $region87: #{custom-call.4} parent=15 // pred_region
          // Predicated region
          $region89: #{custom-call.4} parent=87 // pred_check
            _
          $region90: #{custom-call.4} parent=87 // pred_check_branch
            %174 = sbr.rel (0) target = $region92
          $region91: #{custom-call.4} parent=87 // pred_region
            // Predicated region
            $region104: #{custom-call.4} parent=91 // pred_check
              _
            $region105: #{custom-call.4} parent=91 // pred_check_branch
              %190 = sbr.rel (0) target = $region107
            $region106: #{custom-call.4} parent=91 // pred_region
              loop: start=0, step=1, limit=1
              $region108: #{custom-call.4} parent=106 // loop_pre_header
                _
              $region109: #{custom-call.4} parent=106 // loop_header
                %s192 = sphi 0, %s196
                %p193 = scmp.ge.s32.totalorder %s192, 1
                %s197 = sphi %s170, %s170
                %s198 = sphi %s168, %s168
              $region110: #{custom-call.4} parent=106 // loop_header_branch
                %195 = sbr.rel (%p193) target = $region114
              $region111: #{custom-call.4} parent=106 // loop_body
                %v199 = vld [vmem:[%s197] sm:$0xff]
                %200 = vst [vmem:[%s198] sm:$0xff] %v199
              $region112: #{custom-call.4} parent=106 // loop_footer
                %s196 = sadd.s32 1, %s192
              $region113: #{custom-call.4} parent=106 // loop_footer_branch
                %191 = sbr.rel target = $region109
              $region114: #{custom-call.4} parent=106 // loop_exit
                _
            $region107: #{custom-call.4} parent=91 // pred_fallthru
              _
            // Predicated region
            $region115: #{custom-call.4} parent=91 // pred_check
              _
            $region116: #{custom-call.4} parent=91 // pred_check_branch
              %202 = sbr.rel target = $region118
            $region117: #{custom-call.4} parent=91 // pred_region
              _
            $region118: #{custom-call.4} parent=91 // pred_fallthru
              _
          $region92: #{custom-call.4} parent=87 // pred_fallthru
            _
          // Predicated region
          $region93: #{custom-call.4} parent=87 // pred_check
            _
          $region94: #{custom-call.4} parent=87 // pred_check_branch
            %176 = sbr.rel target = $region96
          $region95: #{custom-call.4} parent=87 // pred_region
            %s178 = ssub.s32 256, 1
            loop: start=0, step=1, limit=1
            $region97: #{custom-call.4} parent=95 // loop_pre_header
              _
            $region98: #{custom-call.4} parent=95 // loop_header
              %s180 = sphi 0, %s184
              %p181 = scmp.ge.s32.totalorder %s180, 1
              %s185 = sphi %s170, %s170
              %s186 = sphi %s168, %s168
            $region99: #{custom-call.4} parent=95 // loop_header_branch
              %183 = sbr.rel (%p181) target = $region103
            $region100: #{custom-call.4} parent=95 // loop_body
              %v187 = vld [vmem:[%s185] sm:%s178]
              %188 = vst [vmem:[%s186] sm:%s178] %v187
            $region101: #{custom-call.4} parent=95 // loop_footer
              %s184 = sadd.s32 1, %s180
            $region102: #{custom-call.4} parent=95 // loop_footer_branch
              %179 = sbr.rel target = $region98
            $region103: #{custom-call.4} parent=95 // loop_exit
              _
          $region96: #{custom-call.4} parent=87 // pred_fallthru
            _
        $region88: #{custom-call.4} parent=15 // pred_fallthru
          _
        %203 = vnop
        %s204 = sand.u32 %s12, 1
        %s205 = sand.u32 %s12, 1
        %s206 = smul.addr %s205, 8
        %s207 = scalar_lea.vmem [#allocation3], %s206
        %s208 = smul.addr %s12, 8
        %s209 = scalar_lea.vmem %s3, %s208
        // Predicated region
        $region119: #{custom-call.4} parent=15 // pred_check
          _
        $region120: #{custom-call.4} parent=15 // pred_check_branch
          %211 = sbr.rel (0) target = $region122
        $region121: #{custom-call.4} parent=15 // pred_region
          // Predicated region
          $region123: #{custom-call.4} parent=121 // pred_check
            _
          $region124: #{custom-call.4} parent=121 // pred_check_branch
            %213 = sbr.rel (0) target = $region126
          $region125: #{custom-call.4} parent=121 // pred_region
            // Predicated region
            $region138: #{custom-call.4} parent=125 // pred_check
              _
            $region139: #{custom-call.4} parent=125 // pred_check_branch
              %229 = sbr.rel (0) target = $region141
            $region140: #{custom-call.4} parent=125 // pred_region
              loop: start=0, step=1, limit=1
              $region142: #{custom-call.4} parent=140 // loop_pre_header
                _
              $region143: #{custom-call.4} parent=140 // loop_header
                %s231 = sphi 0, %s235
                %p232 = scmp.ge.s32.totalorder %s231, 1
                %s236 = sphi %s209, %s209
                %s237 = sphi %s207, %s207
              $region144: #{custom-call.4} parent=140 // loop_header_branch
                %234 = sbr.rel (%p232) target = $region148
              $region145: #{custom-call.4} parent=140 // loop_body
                %v238 = vld [vmem:[%s236] sm:$0xff]
                %239 = vst [vmem:[%s237] sm:$0xff] %v238
              $region146: #{custom-call.4} parent=140 // loop_footer
                %s235 = sadd.s32 1, %s231
              $region147: #{custom-call.4} parent=140 // loop_footer_branch
                %230 = sbr.rel target = $region143
              $region148: #{custom-call.4} parent=140 // loop_exit
                _
            $region141: #{custom-call.4} parent=125 // pred_fallthru
              _
            // Predicated region
            $region149: #{custom-call.4} parent=125 // pred_check
              _
            $region150: #{custom-call.4} parent=125 // pred_check_branch
              %241 = sbr.rel target = $region152
            $region151: #{custom-call.4} parent=125 // pred_region
              _
            $region152: #{custom-call.4} parent=125 // pred_fallthru
              _
          $region126: #{custom-call.4} parent=121 // pred_fallthru
            _
          // Predicated region
          $region127: #{custom-call.4} parent=121 // pred_check
            _
          $region128: #{custom-call.4} parent=121 // pred_check_branch
            %215 = sbr.rel target = $region130
          $region129: #{custom-call.4} parent=121 // pred_region
            %s217 = ssub.s32 256, 1
            loop: start=0, step=1, limit=1
            $region131: #{custom-call.4} parent=129 // loop_pre_header
              _
            $region132: #{custom-call.4} parent=129 // loop_header
              %s219 = sphi 0, %s223
              %p220 = scmp.ge.s32.totalorder %s219, 1
              %s224 = sphi %s209, %s209
              %s225 = sphi %s207, %s207
            $region133: #{custom-call.4} parent=129 // loop_header_branch
              %222 = sbr.rel (%p220) target = $region137
            $region134: #{custom-call.4} parent=129 // loop_body
              %v226 = vld [vmem:[%s224] sm:%s217]
              %227 = vst [vmem:[%s225] sm:%s217] %v226
            $region135: #{custom-call.4} parent=129 // loop_footer
              %s223 = sadd.s32 1, %s219
            $region136: #{custom-call.4} parent=129 // loop_footer_branch
              %218 = sbr.rel target = $region132
            $region137: #{custom-call.4} parent=129 // loop_exit
              _
          $region130: #{custom-call.4} parent=121 // pred_fallthru
            _
        $region122: #{custom-call.4} parent=15 // pred_fallthru
          _
        %242 = vnop
      $region16: #{custom-call.4} parent=5 // pred_fallthru
        _
      %p243 = scmp.le.s32.totalorder 1, %s12
      %p244 = scmp.lt.s32.totalorder %s12, 9
      %p245 = pnand %p243, %p244
      %p246 = pneg %p245
      // Predicated region
      $region153: #{custom-call.4} parent=5 // pred_check
        _
      $region154: #{custom-call.4} parent=5 // pred_check_branch
        %248 = sbr.rel (%p245) target = $region156
      $region155: #{custom-call.4} parent=5 // pred_region
        #allocation10 [shape = 'f32[8,8]{1,0}', space=vmem, size = 0x1000, scoped, tag = 'a top-left matrix']
        #allocation11 [shape = 'f32[8,8]{1,0}', space=vmem, size = 0x1000, scoped, tag = 'a top-right matrix']
        #allocation12 [shape = 'f32[8,8]{1,0}', space=vmem, size = 0x1000, scoped, tag = 'a bottom-left matrix']
        #allocation13 [shape = 'f32[8,8]{1,0}', space=vmem, size = 0x1000, scoped, tag = 'a bottom-right matrix']
        %s249 = ssub.s32 %s12, 1
        %s250 = sand.u32 %s17, 1
        %s251 = sand.u32 %s17, 1
        %s252 = smul.addr %s251, 8
        %s253 = scalar_lea.vmem [#allocation0], %s252
        %s254 = sand.u32 %s17, 1
        %s255 = sand.u32 %s17, 1
        %s256 = smul.addr %s255, 8
        %s257 = scalar_lea.vmem [#allocation1], %s256
        %s258 = sand.u32 %s17, 1
        %s259 = sand.u32 %s17, 1
        %s260 = smul.addr %s259, 8
        %s261 = scalar_lea.vmem [#allocation2], %s260
        %s262 = sand.u32 %s17, 1
        %s263 = sand.u32 %s17, 1
        %s264 = smul.addr %s263, 8
        %s265 = scalar_lea.vmem [#allocation3], %s264
        %s266 = sand.u32 %s17, 1
        %s267 = sand.u32 %s17, 1
        %s268 = smul.addr %s267, 8
        %s269 = scalar_lea.vmem [#allocation0], %s268
        %s270 = sand.u32 %s17, 1
        %s271 = sand.u32 %s17, 1
        %s272 = smul.addr %s271, 8
        %s273 = scalar_lea.vmem [#allocation1], %s272
        %s274 = sand.u32 %s17, 1
        %s275 = sand.u32 %s17, 1
        %s276 = smul.addr %s275, 8
        %s277 = scalar_lea.vmem [#allocation2], %s276
        %s278 = sand.u32 %s17, 1
        %s279 = sand.u32 %s17, 1
        %s280 = smul.addr %s279, 8
        %s281 = scalar_lea.vmem [#allocation3], %s280
        %p282 = pneg %p40
        %p283 = pneg %p37
        %s284 = sand.u32 %s27, 1
        %s285 = sand.u32 %s27, 1
        %s286 = smul.addr %s285, 8
        %s287 = scalar_lea.vmem [#allocation4], %s286
        %p288 = pneg %p68
        %p289 = pneg %p65
        %s290 = sand.u32 %s55, 1
        %s291 = sand.u32 %s55, 1
        %s292 = smul.addr %s291, 8
        %s293 = scalar_lea.vmem [#allocation5], %s292
        %s294 = sand.u32 %s17, 1
        %s295 = sand.u32 %s17, 1
        %s296 = smul.addr %s295, 8
        %s297 = scalar_lea.vmem [#allocation6], %s296
        %s298 = sand.u32 %s17, 1
        %s299 = sand.u32 %s17, 1
        %s300 = smul.addr %s299, 8
        %s301 = scalar_lea.vmem [#allocation7], %s300
        %s302 = sand.u32 %s17, 1
        %s303 = sand.u32 %s17, 1
        %s304 = smul.addr %s303, 8
        %s305 = scalar_lea.vmem [#allocation8], %s304
        %s306 = sand.u32 %s17, 1
        %s307 = sand.u32 %s17, 1
        %s308 = smul.addr %s307, 8
        %s309 = scalar_lea.vmem [#allocation9], %s308
        %s310 = sshrl.u32 %s17, 3
        %s311 = sshrl.u32 %s17, 3
        %s312 = smov [#allocation10]
        %v313 = vld [vmem:[%s253] sm:$0xff]
        %314 = vst [vmem:[%s312] sm:$0xff] %v313
        %s315 = smov [#allocation11]
        %v316 = vld [vmem:[%s257] sm:$0xff]
        %317 = vst [vmem:[%s315] sm:$0xff] %v316
        %s318 = smov [#allocation12]
        %v319 = vld [vmem:[%s261] sm:$0xff]
        %320 = vst [vmem:[%s318] sm:$0xff] %v319
        %s321 = smov [#allocation13]
        %v322 = vld [vmem:[%s265] sm:$0xff]
        %323 = vst [vmem:[%s321] sm:$0xff] %v322
        %324 = vst [vmem:[%s297] sm:$0xff] 0.0
        %325 = vst [vmem:[%s301] sm:$0xff] 0.0
        %326 = vst [vmem:[%s305] sm:$0xff] 0.0
        %327 = vst [vmem:[%s309] sm:$0xff] 0.0
        %s328 = smov %s297
        %v329 = vlaneseq
        %v330 = vand.u32 %v329, 127
        %v331 = vmov %v330
        %v332 = vlaneseq
        %v333 = vshrl.u32 %v332, 7
        %v334 = vmov %v333
        %v335 = vld [vmem:[%s328] sm:$0xff]
        %vm338 = vcmp.eq.s32.totalorder %v334, %v331
        %v339 = vsel %vm338, 1.0, %v335
        %340 = vst [vmem:[%s328] sm:$0xff] %v339
        %s341 = smov %s309
        %v342 = vlaneseq
        %v343 = vand.u32 %v342, 127
        %v344 = vmov %v343
        %v345 = vlaneseq
        %v346 = vshrl.u32 %v345, 7
        %v347 = vmov %v346
        %v348 = vld [vmem:[%s341] sm:$0xff]
        %vm351 = vcmp.eq.s32.totalorder %v347, %v344
        %v352 = vsel %vm351, 1.0, %v348
        %353 = vst [vmem:[%s341] sm:$0xff] %v352
        // While loop
        $region157: #{custom-call.4} parent=155 // loop_pre_header
          _
        $region158: #{custom-call.4} parent=155 // loop_header
          %s355 = sphi 0, %s897
          %v356 = vlaneseq
          %v357 = vand.u32 %v356, 127
          %v358 = vmov %v357
          %v359 = vlaneseq
          %v360 = vshrl.u32 %v359, 7
          %v361 = vmov %v360
          %s362 = smov [#allocation10]
          %v363 = vlaneseq
          %v364 = vand.u32 %v363, 127
          %vm365 = vcmp.ge.s32.totalorder %v364, 0
          %vm366 = vcmp.lt.s32.totalorder %v364, 8
          %vm367 = vmand %vm365, %vm366
          %v368 = vld [vmem:[%s362] sm:$0xff]
          %v369 = vsel %vm367, %v368, 0.0
          %v370 = vmul.f32 %v369, %v369
          %vm373 = vcmp.eq.s32.totalorder %v361, %v358
          %v374 = vsel %vm373, 0.0, %v370
          %v375 = vlaneseq
          %v376 = vand.u32 %v375, 127
          %v377 = vmov %v376
          %v378 = vlaneseq
          %v379 = vshrl.u32 %v378, 7
          %v380 = vmov %v379
          %s381 = smov [#allocation11]
          %v382 = vlaneseq
          %v383 = vand.u32 %v382, 127
          %vm384 = vcmp.ge.s32.totalorder %v383, 0
          %vm385 = vcmp.lt.s32.totalorder %v383, 8
          %vm386 = vmand %vm384, %vm385
          %v387 = vld [vmem:[%s381] sm:$0xff]
          %v388 = vsel %vm386, %v387, 0.0
          %v389 = vmul.f32 %v388, %v388
          %v390 = vadd.f32 %v374, %v389
          %v391 = vadd.f32 %v370, %v389
          %v392 = vlaneseq
          %v393 = vand.u32 %v392, 127
          %v394 = vmov %v393
          %v395 = vlaneseq
          %v396 = vshrl.u32 %v395, 7
          %v397 = vmov %v396
          %s398 = smov [#allocation12]
          %v399 = vlaneseq
          %v400 = vand.u32 %v399, 127
          %vm401 = vcmp.ge.s32.totalorder %v400, 0
          %vm402 = vcmp.lt.s32.totalorder %v400, 8
          %vm403 = vmand %vm401, %vm402
          %v404 = vld [vmem:[%s398] sm:$0xff]
          %v405 = vsel %vm403, %v404, 0.0
          %v406 = vmul.f32 %v405, %v405
          %v407 = vadd.f32 %v390, %v406
          %v408 = vadd.f32 %v391, %v406
          %v409 = vlaneseq
          %v410 = vand.u32 %v409, 127
          %v411 = vmov %v410
          %v412 = vlaneseq
          %v413 = vshrl.u32 %v412, 7
          %v414 = vmov %v413
          %s415 = smov [#allocation13]
          %v416 = vlaneseq
          %v417 = vand.u32 %v416, 127
          %vm418 = vcmp.ge.s32.totalorder %v417, 0
          %vm419 = vcmp.lt.s32.totalorder %v417, 8
          %vm420 = vmand %vm418, %vm419
          %v421 = vld [vmem:[%s415] sm:$0xff]
          %v422 = vsel %vm420, %v421, 0.0
          %v423 = vmul.f32 %v422, %v422
          %vm426 = vcmp.eq.s32.totalorder %v414, %v411
          %v427 = vsel %vm426, 0.0, %v423
          %v428 = vadd.f32 %v407, %v427
          %v429 = vadd.f32 %v408, %v423
          %430 = vadd.xlane.f32.xlu0 %v429
          %v431 = vpop.xlane.xlu0 %430
          %v432 = vrot.slane %v431, 4
          %v433 = vadd.f32 %v431, %v432
          %v434 = vrot.slane %v433, 2
          %v435 = vadd.f32 %v433, %v434
          %v436 = vrot.slane %v435, 1
          %v437 = vadd.f32 %v435, %v436
          %438 = vadd.xlane.f32.xlu0 %v428
          %v439 = vpop.xlane.xlu0 %438
          %v440 = vrot.slane %v439, 4
          %v441 = vadd.f32 %v439, %v440
          %v442 = vrot.slane %v441, 2
          %v443 = vadd.f32 %v441, %v442
          %v444 = vrot.slane %v443, 1
          %v445 = vadd.f32 %v443, %v444
          %s446 = vtos %v445
          %s447 = vtos %v437
          %s448 = smul.f32 1e-10, %s447
          %p449 = scmp.le.f32.partialorder %s446, %s448
          %p450 = scmp.ge.s32.totalorder %s355, 15
          %p451 = por %p449, %p450
        $region159: #{custom-call.4} parent=155 // loop_header_branch
          %899 = sbr.rel (%p451) target = $region163
        $region160: #{custom-call.4} parent=155 // loop_body
          loop: start=0, step=1, limit=15
          $region164: #{custom-call.4} parent=160 // loop_pre_header
            _
          $region165: #{custom-call.4} parent=160 // loop_header
            %s453 = sphi 0, %s457
            %p454 = scmp.ge.s32.totalorder %s453, 15
          $region166: #{custom-call.4} parent=160 // loop_header_branch
            %456 = sbr.rel (%p454) target = $region170
          $region167: #{custom-call.4} parent=160 // loop_body
            #allocation14 [shape = 'f32[1024]{0}', space=vmem, size = 0x1000, scoped, tag = 'a_tl_diag vmem']
            #allocation15 [shape = 'f32[1024]{0}', space=vmem, size = 0x1000, scoped, tag = 'a_tr_diag vmem']
            #allocation16 [shape = 'f32[1024]{0}', space=vmem, size = 0x1000, scoped, tag = 'a_br_diag vmem']
            #allocation17 [shape = 'f32[1024]{0}', space=vmem, size = 0x1000, scoped, tag = 'rt1 vmem']
            #allocation18 [shape = 'f32[1024]{0}', space=vmem, size = 0x1000, scoped, tag = 'rt2 vmem']
            #allocation19 [shape = 'f32[1024]{0}', space=vmem, size = 0x1000, scoped, tag = 'c vmem']
            #allocation20 [shape = 'f32[1024]{0}', space=vmem, size = 0x1000, scoped, tag = 's vmem']
            #allocation21 [shape = 'f32[4096]{0}', space=vmem, size = 0x4000, scoped, tag = 'c broadcast']
            #allocation22 [shape = 'f32[4096]{0}', space=vmem, size = 0x4000, scoped, tag = 's broadcast']
            %s458 = smov [#allocation10]
            %s459 = smov [#allocation14]
            %v460 = vlaneseq
            %v461 = vand.u32 %v460, 127
            %v462 = vmov %v461
            %v463 = vlaneseq
            %v464 = vshrl.u32 %v463, 7
            %v465 = vmov %v464
            %v466 = vld [vmem:[%s458] sm:$0xff]
            %vm469 = vcmp.eq.s32.totalorder %v465, %v462
            %v470 = vsel %vm469, %v466, 0.0
            %v471 = vrot.slane %v470, 4
            %v472 = vadd.f32 %v470, %v471
            %v473 = vrot.slane %v472, 2
            %v474 = vadd.f32 %v472, %v473
            %v475 = vrot.slane %v474, 1
            %v476 = vadd.f32 %v474, %v475
            %477 = vst [vmem:[%s459] sm:$0x1] %v476
            %s478 = smov [#allocation11]
            %s479 = smov [#allocation15]
            %v480 = vlaneseq
            %v481 = vand.u32 %v480, 127
            %v482 = vmov %v481
            %v483 = vlaneseq
            %v484 = vshrl.u32 %v483, 7
            %v485 = vmov %v484
            %v486 = vld [vmem:[%s478] sm:$0xff]
            %vm489 = vcmp.eq.s32.totalorder %v485, %v482
            %v490 = vsel %vm489, %v486, 0.0
            %v491 = vrot.slane %v490, 4
            %v492 = vadd.f32 %v490, %v491
            %v493 = vrot.slane %v492, 2
            %v494 = vadd.f32 %v492, %v493
            %v495 = vrot.slane %v494, 1
            %v496 = vadd.f32 %v494, %v495
            %497 = vst [vmem:[%s479] sm:$0x1] %v496
            %s498 = smov [#allocation13]
            %s499 = smov [#allocation16]
            %v500 = vlaneseq
            %v501 = vand.u32 %v500, 127
            %v502 = vmov %v501
            %v503 = vlaneseq
            %v504 = vshrl.u32 %v503, 7
            %v505 = vmov %v504
            %v506 = vld [vmem:[%s498] sm:$0xff]
            %vm509 = vcmp.eq.s32.totalorder %v505, %v502
            %v510 = vsel %vm509, %v506, 0.0
            %v511 = vrot.slane %v510, 4
            %v512 = vadd.f32 %v510, %v511
            %v513 = vrot.slane %v512, 2
            %v514 = vadd.f32 %v512, %v513
            %v515 = vrot.slane %v514, 1
            %v516 = vadd.f32 %v514, %v515
            %517 = vst [vmem:[%s499] sm:$0x1] %v516
            %s518 = smov [#allocation19]
            %s519 = smov [#allocation20]
            %s520 = smov [#allocation14]
            %v521 = vld [vmem:[%s520] sm:$0xff]
            %s522 = smov [#allocation15]
            %v523 = vld [vmem:[%s522] sm:$0xff]
            %s524 = smov [#allocation16]
            %v525 = vld [vmem:[%s524] sm:$0xff]
            %v526 = vsub.f32 %v525, %v521
            %v527 = vmul.f32 2.0, %v523
            %v528 = vrcp.pop %v527
            %v529 = vmul.f32 %v526, %v528
            %vm530 = vcmp.ge.f32.partialorder %v529, 0.0
            %v531 = vmul.f32 %v529, %v529
            %v532 = vadd.f32 1.0, %v531
            %v533 = vrsqrt.pop %v532
            %v534 = vmul.f32 %v532, %v533
            %vm535 = vcmp.eq.f32.partialorder %v532, inf
            %v536 = vsel %vm535, %v532, %v534
            %vm537 = vcmp.eq.f32.partialorder %v532, 0.0
            %v538 = vand.u32 %v532, 2147483648
            %v539 = vsel %vm537, %v538, %v536
            %v540 = vxor.u32 %v539, 2147483648
            %v541 = vsel %vm530, %v539, %v540
            %v542 = vadd.f32 %v529, %v541
            %v543 = vrcp.pop %v542
            %v544 = vand.u32 2147483647, %v521
            %v545 = vand.u32 2147483647, %v523
            %v546 = vand.u32 2147483647, %v525
            %v547 = vmin.f32 %v544, %v546
            %v548 = vmul.f32 1.1920929e-08, %v547
            %vm549 = vcmp.le.f32.partialorder %v545, %v548
            %v550 = vsel %vm549, 0.0, %v543
            %v551 = vmul.f32 %v550, %v550
            %v552 = vadd.f32 1.0, %v551
            %v553 = vrsqrt.pop %v552
            %v554 = vmul.f32 %v550, %v553
            %v555 = vmul.f32 %v550, %v523
            %v556 = vsub.f32 %v521, %v555
            %v557 = vmul.f32 %v550, %v523
            %v558 = vadd.f32 %v525, %v557
            %s559 = smov [#allocation17]
            %560 = vst [vmem:[%s559] sm:$0xff] %v556
            %s561 = smov [#allocation18]
            %562 = vst [vmem:[%s561] sm:$0xff] %v558
            %s563 = smov %s518
            %564 = vst [vmem:[%s563] sm:$0xff] %v553
            %s565 = smov %s519
            %566 = vst [vmem:[%s565] sm:$0xff] %v554
            %s567 = smov [#allocation19]
            %v568 = vld [vmem:[%s567] ss:$0 sm:$0xff]
            %v569 = vlaneseq
            %v570 = vand.u32 %v569, 127
            %v571 = vmov %v570
            %v572 = vlaneseq
            %v573 = vshrl.u32 %v572, 7
            %v574 = vmov %v573
            %vm576 = vcmp.eq.s32.totalorder %v574, %v571
            %v577 = vsel %vm576, %v568, 0.0
            %578 = vadd.xlane.f32.xlu0 %v577
            %v579 = vpop.xlane.xlu0 %578
            %s580 = smov [#allocation21]
            %581 = vst [vmem:[%s580] sm:$0xff] %v579
            %s582 = smov [#allocation20]
            %v583 = vld [vmem:[%s582] ss:$0 sm:$0xff]
            %v584 = vlaneseq
            %v585 = vand.u32 %v584, 127
            %v586 = vmov %v585
            %v587 = vlaneseq
            %v588 = vshrl.u32 %v587, 7
            %v589 = vmov %v588
            %vm591 = vcmp.eq.s32.totalorder %v589, %v586
            %v592 = vsel %vm591, %v583, 0.0
            %593 = vadd.xlane.f32.xlu0 %v592
            %v594 = vpop.xlane.xlu0 %593
            %s595 = smov [#allocation22]
            %596 = vst [vmem:[%s595] sm:$0xff] %v594
            %s597 = smov [#allocation21]
            %v598 = vld [vmem:[%s597] sm:$0xff]
            %s599 = smov [#allocation22]
            %v600 = vld [vmem:[%s599] sm:$0xff]
            %s601 = smov [#allocation10]
            %s602 = smov [#allocation11]
            %s603 = smov [#allocation12]
            %s604 = smov [#allocation13]
            %v605 = vld [vmem:[%s601] sm:$0xff]
            %v606 = vld [vmem:[%s602] sm:$0xff]
            %v607 = vld [vmem:[%s603] sm:$0xff]
            %v608 = vld [vmem:[%s604] sm:$0xff]
            %v609 = vmul.f32 %v598, %v605
            %v610 = vmul.f32 %v600, %v607
            %v611 = vsub.f32 %v609, %v610
            %v612 = vmul.f32 %v598, %v606
            %v613 = vmul.f32 %v600, %v608
            %v614 = vsub.f32 %v612, %v613
            %v615 = vmul.f32 %v600, %v605
            %v616 = vmul.f32 %v598, %v607
            %v617 = vadd.f32 %v615, %v616
            %v618 = vmul.f32 %v600, %v606
            %v619 = vmul.f32 %v598, %v608
            %v620 = vadd.f32 %v618, %v619
            %621 = vst [vmem:[%s601] sm:$0xff] %v611
            %622 = vst [vmem:[%s602] sm:$0xff] %v614
            %623 = vst [vmem:[%s603] sm:$0xff] %v617
            %624 = vst [vmem:[%s604] sm:$0xff] %v620
            %s625 = smov [#allocation19]
            %v626 = vld [vmem:[%s625] ss:$0 sm:$0xff]
            %s627 = smov [#allocation20]
            %v628 = vld [vmem:[%s627] ss:$0 sm:$0xff]
            %s629 = smov [#allocation10]
            %s630 = smov [#allocation11]
            %s631 = smov [#allocation12]
            %s632 = smov [#allocation13]
            %v633 = vld [vmem:[%s629] sm:$0xff]
            %v634 = vld [vmem:[%s630] sm:$0xff]
            %v635 = vld [vmem:[%s631] sm:$0xff]
            %v636 = vld [vmem:[%s632] sm:$0xff]
            %v637 = vmul.f32 %v626, %v633
            %v638 = vmul.f32 %v628, %v634
            %v639 = vsub.f32 %v637, %v638
            %v640 = vmul.f32 %v628, %v633
            %v641 = vmul.f32 %v626, %v634
            %v642 = vadd.f32 %v640, %v641
            %v643 = vmul.f32 %v626, %v635
            %v644 = vmul.f32 %v628, %v636
            %v645 = vsub.f32 %v643, %v644
            %v646 = vmul.f32 %v628, %v635
            %v647 = vmul.f32 %v626, %v636
            %v648 = vadd.f32 %v646, %v647
            %649 = vst [vmem:[%s629] sm:$0xff] %v639
            %650 = vst [vmem:[%s630] sm:$0xff] %v642
            %651 = vst [vmem:[%s631] sm:$0xff] %v645
            %652 = vst [vmem:[%s632] sm:$0xff] %v648
            %s653 = smov [#allocation10]
            %s654 = smov [#allocation17]
            %v655 = vlaneseq
            %v656 = vand.u32 %v655, 127
            %v657 = vmov %v656
            %v658 = vlaneseq
            %v659 = vshrl.u32 %v658, 7
            %v660 = vmov %v659
            %v661 = vld [vmem:[%s654] ss:$0 sm:$0xff]
            %v662 = vld [vmem:[%s653] sm:$0xff]
            %vm665 = vcmp.eq.s32.totalorder %v660, %v657
            %v666 = vsel %vm665, %v661, %v662
            %667 = vst [vmem:[%s653] sm:$0xff] %v666
            %s668 = smov [#allocation11]
            %v669 = vlaneseq
            %v670 = vand.u32 %v669, 127
            %v671 = vmov %v670
            %v672 = vlaneseq
            %v673 = vshrl.u32 %v672, 7
            %v674 = vmov %v673
            %v675 = vld [vmem:[%s668] sm:$0xff]
            %vm678 = vcmp.eq.s32.totalorder %v674, %v671
            %v679 = vsel %vm678, 0.0, %v675
            %680 = vst [vmem:[%s668] sm:$0xff] %v679
            %s681 = smov [#allocation12]
            %v682 = vlaneseq
            %v683 = vand.u32 %v682, 127
            %v684 = vmov %v683
            %v685 = vlaneseq
            %v686 = vshrl.u32 %v685, 7
            %v687 = vmov %v686
            %v688 = vld [vmem:[%s681] sm:$0xff]
            %vm691 = vcmp.eq.s32.totalorder %v687, %v684
            %v692 = vsel %vm691, 0.0, %v688
            %693 = vst [vmem:[%s681] sm:$0xff] %v692
            %s694 = smov [#allocation13]
            %s695 = smov [#allocation18]
            %v696 = vlaneseq
            %v697 = vand.u32 %v696, 127
            %v698 = vmov %v697
            %v699 = vlaneseq
            %v700 = vshrl.u32 %v699, 7
            %v701 = vmov %v700
            %v702 = vld [vmem:[%s695] ss:$0 sm:$0xff]
            %v703 = vld [vmem:[%s694] sm:$0xff]
            %vm706 = vcmp.eq.s32.totalorder %v701, %v698
            %v707 = vsel %vm706, %v702, %v703
            %708 = vst [vmem:[%s694] sm:$0xff] %v707
            %s709 = smov [#allocation10]
            %s710 = smov [#allocation11]
            %v711 = vld [vmem:[%s710] sm:$0xff]
            %712 = vrot.lane.b32.xlu0 %v711, 1
            %v713 = vpop.permute.xlu0 %712
            %v714 = vld [vmem:[%s709] sm:$0xff]
            %v715 = vld [vmem:[%s709] sm:$0xff]
            %716 = vrot.lane.b32.xlu0 %v715, 1
            %v717 = vpop.permute.xlu0 %716
            %v718 = vlaneseq
            %v719 = vand.u32 %v718, 127
            %vm720 = vcmp.eq.s32.totalorder %v719, 0
            %v721 = vsel %vm720, %v715, %v717
            %v722 = vlaneseq
            %v723 = vand.u32 %v722, 127
            %vm724 = vcmp.eq.s32.totalorder %v723, 1
            %v725 = vsel %vm724, %v713, %v721
            %v726 = vlaneseq
            %v727 = vand.u32 %v726, 127
            %vm728 = vcmp.ge.s32.totalorder %v727, 0
            %vm729 = vcmp.lt.s32.totalorder %v727, 8
            %vm730 = vmand %vm728, %vm729
            %v731 = vsel %vm730, %v725, 0.0
            %v732 = vld [vmem:[%s710] sm:$0xff]
            %733 = vrot.lane.b32.xlu0 %v732, 127
            %v734 = vpop.permute.xlu0 %733
            %v735 = vlaneseq
            %v736 = vand.u32 %v735, 127
            %vm737 = vcmp.eq.s32.totalorder %v736, 7
            %v738 = vsel %vm737, %v714, %v734
            %739 = vst [vmem:[%s709] sm:$0xff] %v731
            %740 = vst [vmem:[%s710] sm:$0xff] %v738
            %s741 = smov [#allocation12]
            %s742 = smov [#allocation13]
            %v743 = vld [vmem:[%s742] sm:$0xff]
            %744 = vrot.lane.b32.xlu0 %v743, 1
            %v745 = vpop.permute.xlu0 %744
            %v746 = vld [vmem:[%s741] sm:$0xff]
            %v747 = vld [vmem:[%s741] sm:$0xff]
            %748 = vrot.lane.b32.xlu0 %v747, 1
            %v749 = vpop.permute.xlu0 %748
            %v750 = vlaneseq
            %v751 = vand.u32 %v750, 127
            %vm752 = vcmp.eq.s32.totalorder %v751, 0
            %v753 = vsel %vm752, %v747, %v749
            %v754 = vlaneseq
            %v755 = vand.u32 %v754, 127
            %vm756 = vcmp.eq.s32.totalorder %v755, 1
            %v757 = vsel %vm756, %v745, %v753
            %v758 = vlaneseq
            %v759 = vand.u32 %v758, 127
            %vm760 = vcmp.ge.s32.totalorder %v759, 0
            %vm761 = vcmp.lt.s32.totalorder %v759, 8
            %vm762 = vmand %vm760, %vm761
            %v763 = vsel %vm762, %v757, 0.0
            %v764 = vld [vmem:[%s742] sm:$0xff]
            %765 = vrot.lane.b32.xlu0 %v764, 127
            %v766 = vpop.permute.xlu0 %765
            %v767 = vlaneseq
            %v768 = vand.u32 %v767, 127
            %vm769 = vcmp.eq.s32.totalorder %v768, 7
            %v770 = vsel %vm769, %v746, %v766
            %771 = vst [vmem:[%s741] sm:$0xff] %v763
            %772 = vst [vmem:[%s742] sm:$0xff] %v770
            %s773 = smov [#allocation10]
            %s774 = smov [#allocation12]
            %v775 = vld [vmem:[%s773] ss:$0 sm:$0xff]
            %s777 = scalar_lea.vmem %s773, 4294967295
            %v778 = vld [vmem:[%s777] sm:$0xfe]
            %v779 = vlaneseq
            %v780 = vshrl.u32 %v779, 7
            %vm781 = vcmp.eq.s32.totalorder %v780, 0
            %v782 = vsel %vm781, %v775, %v778
            %s783 = scalar_lea.vmem %s773, 7
            %v784 = vld [vmem:[%s783] ss:$0 sm:$0xff]
            %785 = vst [vmem:[%s773] sm:$0xff] %v782
            %v786 = vld [vmem:[%s774] ss:$0 sm:$0xff]
            %s787 = scalar_lea.vmem %s773, 1
            %788 = vst [vmem:[%s787] sm:$0x1] %v786
            %s789 = scalar_lea.vmem %s774, 1
            %v790 = vld [vmem:[%s789] sm:$0x7f]
            %v791 = vlaneseq
            %v792 = vshrl.u32 %v791, 7
            %vm793 = vcmp.eq.s32.totalorder %v792, 7
            %v794 = vsel %vm793, %v784, %v790
            %v795 = vld [vmem:[%s774] ss:$0 sm:$0xff]
            %796 = vst [vmem:[%s774] sm:$0xff] %v794
            %s797 = smov [#allocation11]
            %s798 = smov [#allocation13]
            %v799 = vld [vmem:[%s797] ss:$0 sm:$0xff]
            %s801 = scalar_lea.vmem %s797, 4294967295
            %v802 = vld [vmem:[%s801] sm:$0xfe]
            %v803 = vlaneseq
            %v804 = vshrl.u32 %v803, 7
            %vm805 = vcmp.eq.s32.totalorder %v804, 0
            %v806 = vsel %vm805, %v799, %v802
            %s807 = scalar_lea.vmem %s797, 7
            %v808 = vld [vmem:[%s807] ss:$0 sm:$0xff]
            %809 = vst [vmem:[%s797] sm:$0xff] %v806
            %v810 = vld [vmem:[%s798] ss:$0 sm:$0xff]
            %s811 = scalar_lea.vmem %s797, 1
            %812 = vst [vmem:[%s811] sm:$0x1] %v810
            %s813 = scalar_lea.vmem %s798, 1
            %v814 = vld [vmem:[%s813] sm:$0x7f]
            %v815 = vlaneseq
            %v816 = vshrl.u32 %v815, 7
            %vm817 = vcmp.eq.s32.totalorder %v816, 7
            %v818 = vsel %vm817, %v808, %v814
            %v819 = vld [vmem:[%s798] ss:$0 sm:$0xff]
            %820 = vst [vmem:[%s798] sm:$0xff] %v818
            %s821 = smov [#allocation21]
            %v822 = vld [vmem:[%s821] sm:$0xff]
            %s823 = smov [#allocation22]
            %v824 = vld [vmem:[%s823] sm:$0xff]
            %s825 = smov %s297
            %s826 = smov %s301
            %s827 = smov %s305
            %s828 = smov %s309
            %v829 = vld [vmem:[%s825] sm:$0xff]
            %v830 = vld [vmem:[%s826] sm:$0xff]
            %v831 = vld [vmem:[%s827] sm:$0xff]
            %v832 = vld [vmem:[%s828] sm:$0xff]
            %v833 = vmul.f32 %v822, %v829
            %v834 = vmul.f32 %v824, %v831
            %v835 = vsub.f32 %v833, %v834
            %v836 = vmul.f32 %v822, %v830
            %v837 = vmul.f32 %v824, %v832
            %v838 = vsub.f32 %v836, %v837
            %v839 = vmul.f32 %v824, %v829
            %v840 = vmul.f32 %v822, %v831
            %v841 = vadd.f32 %v839, %v840
            %v842 = vmul.f32 %v824, %v830
            %v843 = vmul.f32 %v822, %v832
            %v844 = vadd.f32 %v842, %v843
            %845 = vst [vmem:[%s825] sm:$0xff] %v835
            %846 = vst [vmem:[%s826] sm:$0xff] %v838
            %847 = vst [vmem:[%s827] sm:$0xff] %v841
            %848 = vst [vmem:[%s828] sm:$0xff] %v844
            %s849 = smov %s297
            %s850 = smov %s305
            %v851 = vld [vmem:[%s849] ss:$0 sm:$0xff]
            %s853 = scalar_lea.vmem %s849, 4294967295
            %v854 = vld [vmem:[%s853] sm:$0xfe]
            %v855 = vlaneseq
            %v856 = vshrl.u32 %v855, 7
            %vm857 = vcmp.eq.s32.totalorder %v856, 0
            %v858 = vsel %vm857, %v851, %v854
            %s859 = scalar_lea.vmem %s849, 7
            %v860 = vld [vmem:[%s859] ss:$0 sm:$0xff]
            %861 = vst [vmem:[%s849] sm:$0xff] %v858
            %v862 = vld [vmem:[%s850] ss:$0 sm:$0xff]
            %s863 = scalar_lea.vmem %s849, 1
            %864 = vst [vmem:[%s863] sm:$0x1] %v862
            %s865 = scalar_lea.vmem %s850, 1
            %v866 = vld [vmem:[%s865] sm:$0x7f]
            %v867 = vlaneseq
            %v868 = vshrl.u32 %v867, 7
            %vm869 = vcmp.eq.s32.totalorder %v868, 7
            %v870 = vsel %vm869, %v860, %v866
            %v871 = vld [vmem:[%s850] ss:$0 sm:$0xff]
            %872 = vst [vmem:[%s850] sm:$0xff] %v870
            %s873 = smov %s301
            %s874 = smov %s309
            %v875 = vld [vmem:[%s873] ss:$0 sm:$0xff]
            %s877 = scalar_lea.vmem %s873, 4294967295
            %v878 = vld [vmem:[%s877] sm:$0xfe]
            %v879 = vlaneseq
            %v880 = vshrl.u32 %v879, 7
            %vm881 = vcmp.eq.s32.totalorder %v880, 0
            %v882 = vsel %vm881, %v875, %v878
            %s883 = scalar_lea.vmem %s873, 7
            %v884 = vld [vmem:[%s883] ss:$0 sm:$0xff]
            %885 = vst [vmem:[%s873] sm:$0xff] %v882
            %v886 = vld [vmem:[%s874] ss:$0 sm:$0xff]
            %s887 = scalar_lea.vmem %s873, 1
            %888 = vst [vmem:[%s887] sm:$0x1] %v886
            %s889 = scalar_lea.vmem %s874, 1
            %v890 = vld [vmem:[%s889] sm:$0x7f]
            %v891 = vlaneseq
            %v892 = vshrl.u32 %v891, 7
            %vm893 = vcmp.eq.s32.totalorder %v892, 7
            %v894 = vsel %vm893, %v884, %v890
            %v895 = vld [vmem:[%s874] ss:$0 sm:$0xff]
            %896 = vst [vmem:[%s874] sm:$0xff] %v894
          $region168: #{custom-call.4} parent=160 // loop_footer
            %s457 = sadd.s32 1, %s453
          $region169: #{custom-call.4} parent=160 // loop_footer_branch
            %452 = sbr.rel target = $region165
          $region170: #{custom-call.4} parent=160 // loop_exit
            _
          %s897 = sadd.s32 %s355, 1
        $region161: #{custom-call.4} parent=155 // loop_footer
          _
        $region162: #{custom-call.4} parent=155 // loop_footer_branch
          %354 = sbr.rel target = $region158
        $region163: #{custom-call.4} parent=155 // loop_exit
          _
        %s900 = sand.u32 %s17, 7
        %s901 = scalar_lea.vmem %s287, %s900 [#allocation4]
        %s902 = sand.u32 %s17, 7
        %s903 = scalar_lea.vmem %s293, %s902 [#allocation5]
        %s904 = smov [#allocation10]
        %s905 = smov %s901
        %v906 = vlaneseq
        %v907 = vand.u32 %v906, 127
        %v908 = vmov %v907
        %v909 = vlaneseq
        %v910 = vshrl.u32 %v909, 7
        %v911 = vmov %v910
        %v912 = vld [vmem:[%s904] sm:$0xff]
        %vm915 = vcmp.eq.s32.totalorder %v911, %v908
        %v916 = vsel %vm915, %v912, 0.0
        %v917 = vrot.slane %v916, 4
        %v918 = vadd.f32 %v916, %v917
        %v919 = vrot.slane %v918, 2
        %v920 = vadd.f32 %v918, %v919
        %v921 = vrot.slane %v920, 1
        %v922 = vadd.f32 %v920, %v921
        %923 = vst [vmem:[%s905] sm:$0x1] %v922
        %s924 = smov [#allocation13]
        %s925 = smov %s903
        %v926 = vlaneseq
        %v927 = vand.u32 %v926, 127
        %v928 = vmov %v927
        %v929 = vlaneseq
        %v930 = vshrl.u32 %v929, 7
        %v931 = vmov %v930
        %v932 = vld [vmem:[%s924] sm:$0xff]
        %vm935 = vcmp.eq.s32.totalorder %v931, %v928
        %v936 = vsel %vm935, %v932, 0.0
        %v937 = vrot.slane %v936, 4
        %v938 = vadd.f32 %v936, %v937
        %v939 = vrot.slane %v938, 2
        %v940 = vadd.f32 %v938, %v939
        %v941 = vrot.slane %v940, 1
        %v942 = vadd.f32 %v940, %v941
        %943 = vst [vmem:[%s925] sm:$0x1] %v942
        %s944 = sand.u32 %s27, 1
        %s945 = sand.u32 %s27, 1
        %s946 = smul.addr %s945, 8
        %s947 = scalar_lea.vmem [#allocation4], %s946
        %s948 = sand.u32 %s55, 1
        %s949 = sand.u32 %s55, 1
        %s950 = smul.addr %s949, 8
        %s951 = scalar_lea.vmem [#allocation5], %s950
        %s952 = sand.u32 %s17, 1
        %s953 = sand.u32 %s17, 1
        %s954 = smul.addr %s953, 8
        %s955 = scalar_lea.vmem [#allocation6], %s954
        %s956 = sand.u32 %s17, 1
        %s957 = sand.u32 %s17, 1
        %s958 = smul.addr %s957, 8
        %s959 = scalar_lea.vmem [#allocation7], %s958
        %s960 = sand.u32 %s17, 1
        %s961 = sand.u32 %s17, 1
        %s962 = smul.addr %s961, 8
        %s963 = scalar_lea.vmem [#allocation8], %s962
        %s964 = sand.u32 %s17, 1
        %s965 = sand.u32 %s17, 1
        %s966 = smul.addr %s965, 8
        %s967 = scalar_lea.vmem [#allocation9], %s966
        // Predicated region
        $region171: #{custom-call.4} parent=155 // pred_check
          %p968 = pneg %p37
        $region172: #{custom-call.4} parent=155 // pred_check_branch
          %970 = sbr.rel (%p968) target = $region174
        $region173: #{custom-call.4} parent=155 // pred_region
          %s971 = sshrl.u32 %s17, 3
          %s972 = smul.addr %s971, 8
          %s973 = scalar_lea.vmem %s4, %s972
          // Predicated region
          $region175: #{custom-call.4} parent=173 // pred_check
            _
          $region176: #{custom-call.4} parent=173 // pred_check_branch
            %975 = sbr.rel (0) target = $region178
          $region177: #{custom-call.4} parent=173 // pred_region
            // Predicated region
            $region179: #{custom-call.4} parent=177 // pred_check
              _
            $region180: #{custom-call.4} parent=177 // pred_check_branch
              %977 = sbr.rel (0) target = $region182
            $region181: #{custom-call.4} parent=177 // pred_region
              // Predicated region
              $region194: #{custom-call.4} parent=181 // pred_check
                _
              $region195: #{custom-call.4} parent=181 // pred_check_branch
                %993 = sbr.rel (0) target = $region197
              $region196: #{custom-call.4} parent=181 // pred_region
                loop: start=0, step=1, limit=1
                $region198: #{custom-call.4} parent=196 // loop_pre_header
                  _
                $region199: #{custom-call.4} parent=196 // loop_header
                  %s995 = sphi 0, %s999
                  %p996 = scmp.ge.s32.totalorder %s995, 1
                  %s1000 = sphi %s947, %s947
                  %s1001 = sphi %s973, %s973
                $region200: #{custom-call.4} parent=196 // loop_header_branch
                  %998 = sbr.rel (%p996) target = $region204
                $region201: #{custom-call.4} parent=196 // loop_body
                  %v1002 = vld [vmem:[%s1000] sm:$0xff]
                  %1003 = vst [vmem:[%s1001] sm:$0xff] %v1002
                $region202: #{custom-call.4} parent=196 // loop_footer
                  %s999 = sadd.s32 1, %s995
                $region203: #{custom-call.4} parent=196 // loop_footer_branch
                  %994 = sbr.rel target = $region199
                $region204: #{custom-call.4} parent=196 // loop_exit
                  _
              $region197: #{custom-call.4} parent=181 // pred_fallthru
                _
              // Predicated region
              $region205: #{custom-call.4} parent=181 // pred_check
                _
              $region206: #{custom-call.4} parent=181 // pred_check_branch
                %1005 = sbr.rel target = $region208
              $region207: #{custom-call.4} parent=181 // pred_region
                _
              $region208: #{custom-call.4} parent=181 // pred_fallthru
                _
            $region182: #{custom-call.4} parent=177 // pred_fallthru
              _
            // Predicated region
            $region183: #{custom-call.4} parent=177 // pred_check
              _
            $region184: #{custom-call.4} parent=177 // pred_check_branch
              %979 = sbr.rel target = $region186
            $region185: #{custom-call.4} parent=177 // pred_region
              %s981 = ssub.s32 256, 1
              loop: start=0, step=1, limit=1
              $region187: #{custom-call.4} parent=185 // loop_pre_header
                _
              $region188: #{custom-call.4} parent=185 // loop_header
                %s983 = sphi 0, %s987
                %p984 = scmp.ge.s32.totalorder %s983, 1
                %s988 = sphi %s947, %s947
                %s989 = sphi %s973, %s973
              $region189: #{custom-call.4} parent=185 // loop_header_branch
                %986 = sbr.rel (%p984) target = $region193
              $region190: #{custom-call.4} parent=185 // loop_body
                %v990 = vld [vmem:[%s988] sm:%s981]
                %991 = vst [vmem:[%s989] sm:%s981] %v990
              $region191: #{custom-call.4} parent=185 // loop_footer
                %s987 = sadd.s32 1, %s983
              $region192: #{custom-call.4} parent=185 // loop_footer_branch
                %982 = sbr.rel target = $region188
              $region193: #{custom-call.4} parent=185 // loop_exit
                _
            $region186: #{custom-call.4} parent=177 // pred_fallthru
              _
          $region178: #{custom-call.4} parent=173 // pred_fallthru
            _
          %1006 = vnop
        $region174: #{custom-call.4} parent=155 // pred_fallthru
          _
        // Predicated region
        $region209: #{custom-call.4} parent=155 // pred_check
          %p1007 = pneg %p65
        $region210: #{custom-call.4} parent=155 // pred_check_branch
          %1009 = sbr.rel (%p1007) target = $region212
        $region211: #{custom-call.4} parent=155 // pred_region
          %s1010 = sshrl.u32 %s17, 3
          %s1011 = smul.addr %s1010, 8
          %s1012 = scalar_lea.vmem %s5, %s1011
          // Predicated region
          $region213: #{custom-call.4} parent=211 // pred_check
            _
          $region214: #{custom-call.4} parent=211 // pred_check_branch
            %1014 = sbr.rel (0) target = $region216
          $region215: #{custom-call.4} parent=211 // pred_region
            // Predicated region
            $region217: #{custom-call.4} parent=215 // pred_check
              _
            $region218: #{custom-call.4} parent=215 // pred_check_branch
              %1016 = sbr.rel (0) target = $region220
            $region219: #{custom-call.4} parent=215 // pred_region
              // Predicated region
              $region232: #{custom-call.4} parent=219 // pred_check
                _
              $region233: #{custom-call.4} parent=219 // pred_check_branch
                %1032 = sbr.rel (0) target = $region235
              $region234: #{custom-call.4} parent=219 // pred_region
                loop: start=0, step=1, limit=1
                $region236: #{custom-call.4} parent=234 // loop_pre_header
                  _
                $region237: #{custom-call.4} parent=234 // loop_header
                  %s1034 = sphi 0, %s1038
                  %p1035 = scmp.ge.s32.totalorder %s1034, 1
                  %s1039 = sphi %s951, %s951
                  %s1040 = sphi %s1012, %s1012
                $region238: #{custom-call.4} parent=234 // loop_header_branch
                  %1037 = sbr.rel (%p1035) target = $region242
                $region239: #{custom-call.4} parent=234 // loop_body
                  %v1041 = vld [vmem:[%s1039] sm:$0xff]
                  %1042 = vst [vmem:[%s1040] sm:$0xff] %v1041
                $region240: #{custom-call.4} parent=234 // loop_footer
                  %s1038 = sadd.s32 1, %s1034
                $region241: #{custom-call.4} parent=234 // loop_footer_branch
                  %1033 = sbr.rel target = $region237
                $region242: #{custom-call.4} parent=234 // loop_exit
                  _
              $region235: #{custom-call.4} parent=219 // pred_fallthru
                _
              // Predicated region
              $region243: #{custom-call.4} parent=219 // pred_check
                _
              $region244: #{custom-call.4} parent=219 // pred_check_branch
                %1044 = sbr.rel target = $region246
              $region245: #{custom-call.4} parent=219 // pred_region
                _
              $region246: #{custom-call.4} parent=219 // pred_fallthru
                _
            $region220: #{custom-call.4} parent=215 // pred_fallthru
              _
            // Predicated region
            $region221: #{custom-call.4} parent=215 // pred_check
              _
            $region222: #{custom-call.4} parent=215 // pred_check_branch
              %1018 = sbr.rel target = $region224
            $region223: #{custom-call.4} parent=215 // pred_region
              %s1020 = ssub.s32 256, 1
              loop: start=0, step=1, limit=1
              $region225: #{custom-call.4} parent=223 // loop_pre_header
                _
              $region226: #{custom-call.4} parent=223 // loop_header
                %s1022 = sphi 0, %s1026
                %p1023 = scmp.ge.s32.totalorder %s1022, 1
                %s1027 = sphi %s951, %s951
                %s1028 = sphi %s1012, %s1012
              $region227: #{custom-call.4} parent=223 // loop_header_branch
                %1025 = sbr.rel (%p1023) target = $region231
              $region228: #{custom-call.4} parent=223 // loop_body
                %v1029 = vld [vmem:[%s1027] sm:%s1020]
                %1030 = vst [vmem:[%s1028] sm:%s1020] %v1029
              $region229: #{custom-call.4} parent=223 // loop_footer
                %s1026 = sadd.s32 1, %s1022
              $region230: #{custom-call.4} parent=223 // loop_footer_branch
                %1021 = sbr.rel target = $region226
              $region231: #{custom-call.4} parent=223 // loop_exit
                _
            $region224: #{custom-call.4} parent=215 // pred_fallthru
              _
          $region216: #{custom-call.4} parent=211 // pred_fallthru
            _
          %1045 = vnop
        $region212: #{custom-call.4} parent=155 // pred_fallthru
          _
        %s1046 = smul.addr %s17, 8
        %s1047 = scalar_lea.vmem %s6, %s1046
        // Predicated region
        $region247: #{custom-call.4} parent=155 // pred_check
          _
        $region248: #{custom-call.4} parent=155 // pred_check_branch
          %1049 = sbr.rel (0) target = $region250
        $region249: #{custom-call.4} parent=155 // pred_region
          // Predicated region
          $region251: #{custom-call.4} parent=249 // pred_check
            _
          $region252: #{custom-call.4} parent=249 // pred_check_branch
            %1051 = sbr.rel (0) target = $region254
          $region253: #{custom-call.4} parent=249 // pred_region
            // Predicated region
            $region266: #{custom-call.4} parent=253 // pred_check
              _
            $region267: #{custom-call.4} parent=253 // pred_check_branch
              %1067 = sbr.rel (0) target = $region269
            $region268: #{custom-call.4} parent=253 // pred_region
              loop: start=0, step=1, limit=1
              $region270: #{custom-call.4} parent=268 // loop_pre_header
                _
              $region271: #{custom-call.4} parent=268 // loop_header
                %s1069 = sphi 0, %s1073
                %p1070 = scmp.ge.s32.totalorder %s1069, 1
                %s1074 = sphi %s955, %s955
                %s1075 = sphi %s1047, %s1047
              $region272: #{custom-call.4} parent=268 // loop_header_branch
                %1072 = sbr.rel (%p1070) target = $region276
              $region273: #{custom-call.4} parent=268 // loop_body
                %v1076 = vld [vmem:[%s1074] sm:$0xff]
                %1077 = vst [vmem:[%s1075] sm:$0xff] %v1076
              $region274: #{custom-call.4} parent=268 // loop_footer
                %s1073 = sadd.s32 1, %s1069
              $region275: #{custom-call.4} parent=268 // loop_footer_branch
                %1068 = sbr.rel target = $region271
              $region276: #{custom-call.4} parent=268 // loop_exit
                _
            $region269: #{custom-call.4} parent=253 // pred_fallthru
              _
            // Predicated region
            $region277: #{custom-call.4} parent=253 // pred_check
              _
            $region278: #{custom-call.4} parent=253 // pred_check_branch
              %1079 = sbr.rel target = $region280
            $region279: #{custom-call.4} parent=253 // pred_region
              _
            $region280: #{custom-call.4} parent=253 // pred_fallthru
              _
          $region254: #{custom-call.4} parent=249 // pred_fallthru
            _
          // Predicated region
          $region255: #{custom-call.4} parent=249 // pred_check
            _
          $region256: #{custom-call.4} parent=249 // pred_check_branch
            %1053 = sbr.rel target = $region258
          $region257: #{custom-call.4} parent=249 // pred_region
            %s1055 = ssub.s32 256, 1
            loop: start=0, step=1, limit=1
            $region259: #{custom-call.4} parent=257 // loop_pre_header
              _
            $region260: #{custom-call.4} parent=257 // loop_header
              %s1057 = sphi 0, %s1061
              %p1058 = scmp.ge.s32.totalorder %s1057, 1
              %s1062 = sphi %s955, %s955
              %s1063 = sphi %s1047, %s1047
            $region261: #{custom-call.4} parent=257 // loop_header_branch
              %1060 = sbr.rel (%p1058) target = $region265
            $region262: #{custom-call.4} parent=257 // loop_body
              %v1064 = vld [vmem:[%s1062] sm:%s1055]
              %1065 = vst [vmem:[%s1063] sm:%s1055] %v1064
            $region263: #{custom-call.4} parent=257 // loop_footer
              %s1061 = sadd.s32 1, %s1057
            $region264: #{custom-call.4} parent=257 // loop_footer_branch
              %1056 = sbr.rel target = $region260
            $region265: #{custom-call.4} parent=257 // loop_exit
              _
          $region258: #{custom-call.4} parent=249 // pred_fallthru
            _
        $region250: #{custom-call.4} parent=155 // pred_fallthru
          _
        %1080 = vnop
        %s1081 = smul.addr %s17, 8
        %s1082 = scalar_lea.vmem %s7, %s1081
        // Predicated region
        $region281: #{custom-call.4} parent=155 // pred_check
          _
        $region282: #{custom-call.4} parent=155 // pred_check_branch
          %1084 = sbr.rel (0) target = $region284
        $region283: #{custom-call.4} parent=155 // pred_region
          // Predicated region
          $region285: #{custom-call.4} parent=283 // pred_check
            _
          $region286: #{custom-call.4} parent=283 // pred_check_branch
            %1086 = sbr.rel (0) target = $region288
          $region287: #{custom-call.4} parent=283 // pred_region
            // Predicated region
            $region300: #{custom-call.4} parent=287 // pred_check
              _
            $region301: #{custom-call.4} parent=287 // pred_check_branch
              %1102 = sbr.rel (0) target = $region303
            $region302: #{custom-call.4} parent=287 // pred_region
              loop: start=0, step=1, limit=1
              $region304: #{custom-call.4} parent=302 // loop_pre_header
                _
              $region305: #{custom-call.4} parent=302 // loop_header
                %s1104 = sphi 0, %s1108
                %p1105 = scmp.ge.s32.totalorder %s1104, 1
                %s1109 = sphi %s959, %s959
                %s1110 = sphi %s1082, %s1082
              $region306: #{custom-call.4} parent=302 // loop_header_branch
                %1107 = sbr.rel (%p1105) target = $region310
              $region307: #{custom-call.4} parent=302 // loop_body
                %v1111 = vld [vmem:[%s1109] sm:$0xff]
                %1112 = vst [vmem:[%s1110] sm:$0xff] %v1111
              $region308: #{custom-call.4} parent=302 // loop_footer
                %s1108 = sadd.s32 1, %s1104
              $region309: #{custom-call.4} parent=302 // loop_footer_branch
                %1103 = sbr.rel target = $region305
              $region310: #{custom-call.4} parent=302 // loop_exit
                _
            $region303: #{custom-call.4} parent=287 // pred_fallthru
              _
            // Predicated region
            $region311: #{custom-call.4} parent=287 // pred_check
              _
            $region312: #{custom-call.4} parent=287 // pred_check_branch
              %1114 = sbr.rel target = $region314
            $region313: #{custom-call.4} parent=287 // pred_region
              _
            $region314: #{custom-call.4} parent=287 // pred_fallthru
              _
          $region288: #{custom-call.4} parent=283 // pred_fallthru
            _
          // Predicated region
          $region289: #{custom-call.4} parent=283 // pred_check
            _
          $region290: #{custom-call.4} parent=283 // pred_check_branch
            %1088 = sbr.rel target = $region292
          $region291: #{custom-call.4} parent=283 // pred_region
            %s1090 = ssub.s32 256, 1
            loop: start=0, step=1, limit=1
            $region293: #{custom-call.4} parent=291 // loop_pre_header
              _
            $region294: #{custom-call.4} parent=291 // loop_header
              %s1092 = sphi 0, %s1096
              %p1093 = scmp.ge.s32.totalorder %s1092, 1
              %s1097 = sphi %s959, %s959
              %s1098 = sphi %s1082, %s1082
            $region295: #{custom-call.4} parent=291 // loop_header_branch
              %1095 = sbr.rel (%p1093) target = $region299
            $region296: #{custom-call.4} parent=291 // loop_body
              %v1099 = vld [vmem:[%s1097] sm:%s1090]
              %1100 = vst [vmem:[%s1098] sm:%s1090] %v1099
            $region297: #{custom-call.4} parent=291 // loop_footer
              %s1096 = sadd.s32 1, %s1092
            $region298: #{custom-call.4} parent=291 // loop_footer_branch
              %1091 = sbr.rel target = $region294
            $region299: #{custom-call.4} parent=291 // loop_exit
              _
          $region292: #{custom-call.4} parent=283 // pred_fallthru
            _
        $region284: #{custom-call.4} parent=155 // pred_fallthru
          _
        %1115 = vnop
        %s1116 = smul.addr %s17, 8
        %s1117 = scalar_lea.vmem %s8, %s1116
        // Predicated region
        $region315: #{custom-call.4} parent=155 // pred_check
          _
        $region316: #{custom-call.4} parent=155 // pred_check_branch
          %1119 = sbr.rel (0) target = $region318
        $region317: #{custom-call.4} parent=155 // pred_region
          // Predicated region
          $region319: #{custom-call.4} parent=317 // pred_check
            _
          $region320: #{custom-call.4} parent=317 // pred_check_branch
            %1121 = sbr.rel (0) target = $region322
          $region321: #{custom-call.4} parent=317 // pred_region
            // Predicated region
            $region334: #{custom-call.4} parent=321 // pred_check
              _
            $region335: #{custom-call.4} parent=321 // pred_check_branch
              %1137 = sbr.rel (0) target = $region337
            $region336: #{custom-call.4} parent=321 // pred_region
              loop: start=0, step=1, limit=1
              $region338: #{custom-call.4} parent=336 // loop_pre_header
                _
              $region339: #{custom-call.4} parent=336 // loop_header
                %s1139 = sphi 0, %s1143
                %p1140 = scmp.ge.s32.totalorder %s1139, 1
                %s1144 = sphi %s963, %s963
                %s1145 = sphi %s1117, %s1117
              $region340: #{custom-call.4} parent=336 // loop_header_branch
                %1142 = sbr.rel (%p1140) target = $region344
              $region341: #{custom-call.4} parent=336 // loop_body
                %v1146 = vld [vmem:[%s1144] sm:$0xff]
                %1147 = vst [vmem:[%s1145] sm:$0xff] %v1146
              $region342: #{custom-call.4} parent=336 // loop_footer
                %s1143 = sadd.s32 1, %s1139
              $region343: #{custom-call.4} parent=336 // loop_footer_branch
                %1138 = sbr.rel target = $region339
              $region344: #{custom-call.4} parent=336 // loop_exit
                _
            $region337: #{custom-call.4} parent=321 // pred_fallthru
              _
            // Predicated region
            $region345: #{custom-call.4} parent=321 // pred_check
              _
            $region346: #{custom-call.4} parent=321 // pred_check_branch
              %1149 = sbr.rel target = $region348
            $region347: #{custom-call.4} parent=321 // pred_region
              _
            $region348: #{custom-call.4} parent=321 // pred_fallthru
              _
          $region322: #{custom-call.4} parent=317 // pred_fallthru
            _
          // Predicated region
          $region323: #{custom-call.4} parent=317 // pred_check
            _
          $region324: #{custom-call.4} parent=317 // pred_check_branch
            %1123 = sbr.rel target = $region326
          $region325: #{custom-call.4} parent=317 // pred_region
            %s1125 = ssub.s32 256, 1
            loop: start=0, step=1, limit=1
            $region327: #{custom-call.4} parent=325 // loop_pre_header
              _
            $region328: #{custom-call.4} parent=325 // loop_header
              %s1127 = sphi 0, %s1131
              %p1128 = scmp.ge.s32.totalorder %s1127, 1
              %s1132 = sphi %s963, %s963
              %s1133 = sphi %s1117, %s1117
            $region329: #{custom-call.4} parent=325 // loop_header_branch
              %1130 = sbr.rel (%p1128) target = $region333
            $region330: #{custom-call.4} parent=325 // loop_body
              %v1134 = vld [vmem:[%s1132] sm:%s1125]
              %1135 = vst [vmem:[%s1133] sm:%s1125] %v1134
            $region331: #{custom-call.4} parent=325 // loop_footer
              %s1131 = sadd.s32 1, %s1127
            $region332: #{custom-call.4} parent=325 // loop_footer_branch
              %1126 = sbr.rel target = $region328
            $region333: #{custom-call.4} parent=325 // loop_exit
              _
          $region326: #{custom-call.4} parent=317 // pred_fallthru
            _
        $region318: #{custom-call.4} parent=155 // pred_fallthru
          _
        %1150 = vnop
        %s1151 = smul.addr %s17, 8
        %s1152 = scalar_lea.vmem %s9, %s1151
        // Predicated region
        $region349: #{custom-call.4} parent=155 // pred_check
          _
        $region350: #{custom-call.4} parent=155 // pred_check_branch
          %1154 = sbr.rel (0) target = $region352
        $region351: #{custom-call.4} parent=155 // pred_region
          // Predicated region
          $region353: #{custom-call.4} parent=351 // pred_check
            _
          $region354: #{custom-call.4} parent=351 // pred_check_branch
            %1156 = sbr.rel (0) target = $region356
          $region355: #{custom-call.4} parent=351 // pred_region
            // Predicated region
            $region368: #{custom-call.4} parent=355 // pred_check
              _
            $region369: #{custom-call.4} parent=355 // pred_check_branch
              %1172 = sbr.rel (0) target = $region371
            $region370: #{custom-call.4} parent=355 // pred_region
              loop: start=0, step=1, limit=1
              $region372: #{custom-call.4} parent=370 // loop_pre_header
                _
              $region373: #{custom-call.4} parent=370 // loop_header
                %s1174 = sphi 0, %s1178
                %p1175 = scmp.ge.s32.totalorder %s1174, 1
                %s1179 = sphi %s967, %s967
                %s1180 = sphi %s1152, %s1152
              $region374: #{custom-call.4} parent=370 // loop_header_branch
                %1177 = sbr.rel (%p1175) target = $region378
              $region375: #{custom-call.4} parent=370 // loop_body
                %v1181 = vld [vmem:[%s1179] sm:$0xff]
                %1182 = vst [vmem:[%s1180] sm:$0xff] %v1181
              $region376: #{custom-call.4} parent=370 // loop_footer
                %s1178 = sadd.s32 1, %s1174
              $region377: #{custom-call.4} parent=370 // loop_footer_branch
                %1173 = sbr.rel target = $region373
              $region378: #{custom-call.4} parent=370 // loop_exit
                _
            $region371: #{custom-call.4} parent=355 // pred_fallthru
              _
            // Predicated region
            $region379: #{custom-call.4} parent=355 // pred_check
              _
            $region380: #{custom-call.4} parent=355 // pred_check_branch
              %1184 = sbr.rel target = $region382
            $region381: #{custom-call.4} parent=355 // pred_region
              _
            $region382: #{custom-call.4} parent=355 // pred_fallthru
              _
          $region356: #{custom-call.4} parent=351 // pred_fallthru
            _
          // Predicated region
          $region357: #{custom-call.4} parent=351 // pred_check
            _
          $region358: #{custom-call.4} parent=351 // pred_check_branch
            %1158 = sbr.rel target = $region360
          $region359: #{custom-call.4} parent=351 // pred_region
            %s1160 = ssub.s32 256, 1
            loop: start=0, step=1, limit=1
            $region361: #{custom-call.4} parent=359 // loop_pre_header
              _
            $region362: #{custom-call.4} parent=359 // loop_header
              %s1162 = sphi 0, %s1166
              %p1163 = scmp.ge.s32.totalorder %s1162, 1
              %s1167 = sphi %s967, %s967
              %s1168 = sphi %s1152, %s1152
            $region363: #{custom-call.4} parent=359 // loop_header_branch
              %1165 = sbr.rel (%p1163) target = $region367
            $region364: #{custom-call.4} parent=359 // loop_body
              %v1169 = vld [vmem:[%s1167] sm:%s1160]
              %1170 = vst [vmem:[%s1168] sm:%s1160] %v1169
            $region365: #{custom-call.4} parent=359 // loop_footer
              %s1166 = sadd.s32 1, %s1162
            $region366: #{custom-call.4} parent=359 // loop_footer_branch
              %1161 = sbr.rel target = $region362
            $region367: #{custom-call.4} parent=359 // loop_exit
              _
          $region360: #{custom-call.4} parent=351 // pred_fallthru
            _
        $region352: #{custom-call.4} parent=155 // pred_fallthru
          _
        %1185 = vnop
      $region156: #{custom-call.4} parent=5 // pred_fallthru
        _
      %p1186 = scmp.le.s32.totalorder 2, %s12
      // Predicated region
      $region383: #{custom-call.4} parent=5 // pred_check
        %p1187 = pneg %p1186
      $region384: #{custom-call.4} parent=5 // pred_check_branch
        %1189 = sbr.rel (%p1187) target = $region386
      $region385: #{custom-call.4} parent=5 // pred_region
        %s1190 = ssub.s32 %s12, 2
        // Predicated region
        $region387: #{custom-call.4} parent=385 // pred_check
          %p1191 = pneg %p43
        $region388: #{custom-call.4} parent=385 // pred_check_branch
          %1193 = sbr.rel (%p1191) target = $region390
        $region389: #{custom-call.4} parent=385 // pred_region
          %s1194 = sand.u32 %s28, 1
          %s1195 = sand.u32 %s28, 1
          %s1196 = smul.addr %s1195, 8
          %s1197 = scalar_lea.vmem [#allocation4], %s1196
        $region390: #{custom-call.4} parent=385 // pred_fallthru
          _
        // Predicated region
        $region391: #{custom-call.4} parent=385 // pred_check
          %p1198 = pneg %p71
        $region392: #{custom-call.4} parent=385 // pred_check_branch
          %1200 = sbr.rel (%p1198) target = $region394
        $region393: #{custom-call.4} parent=385 // pred_region
          %s1201 = sand.u32 %s56, 1
          %s1202 = sand.u32 %s56, 1
          %s1203 = smul.addr %s1202, 8
          %s1204 = scalar_lea.vmem [#allocation5], %s1203
        $region394: #{custom-call.4} parent=385 // pred_fallthru
          _
        %s1205 = sand.u32 %s18, 1
        %s1206 = sand.u32 %s18, 1
        %s1207 = smul.addr %s1206, 8
        %s1208 = scalar_lea.vmem [#allocation6], %s1207
        %s1209 = sand.u32 %s18, 1
        %s1210 = sand.u32 %s18, 1
        %s1211 = smul.addr %s1210, 8
        %s1212 = scalar_lea.vmem [#allocation7], %s1211
        %s1213 = sand.u32 %s18, 1
        %s1214 = sand.u32 %s18, 1
        %s1215 = smul.addr %s1214, 8
        %s1216 = scalar_lea.vmem [#allocation8], %s1215
        %s1217 = sand.u32 %s18, 1
        %s1218 = sand.u32 %s18, 1
        %s1219 = smul.addr %s1218, 8
        %s1220 = scalar_lea.vmem [#allocation9], %s1219
      $region386: #{custom-call.4} parent=5 // pred_fallthru
        _
    $region6: #{custom-call.4} parent=1 // loop_footer
      %s16 = sadd.s32 1, %s12
    $region7: #{custom-call.4} parent=1 // loop_footer_branch
      %11 = sbr.rel target = $region3
    $region8: #{custom-call.4} parent=1 // loop_exit
      _

// kernel: bimap_0_normal_forward.4
$region0: #{bimap_0_normal_forward.4}
  #allocation0 [shape = 'u32[]', space=smem, size = 0x4, offset = 0x4, fixed_abs, tag = 'smem constant byte address 0x4 - core index']
  #allocation1 [shape = 'u32[144,128]{1,0:T(1,128)}', space=vmem, size = 0x12000, scoped, tag = 'internal scratch']
  %s0 = inlined_call_operand.vmem [shape: f32[2,64,64], index: 0, kind: input, shape index: {}]
  %s1 = inlined_call_operand.vmem [shape: f32[64,64], index: 1, kind: input, shape index: {}]
  %s2 = inlined_call_operand.vmem [shape: f32[4,64,16], index: 2, kind: input, shape index: {}]
  %s3 = inlined_call_operand.vmem [shape: f32[16,128], index: 3, kind: output, shape index: {0}]
  %s4 = inlined_call_operand.vmem [shape: f32[16,16], index: 4, kind: output, shape index: {1}]
  %5 = xla_tuple %s3, %s4
  %s6 = sld [smem:[#allocation0]]
  $region30: #{bimap_0_normal_forward.4} parent=0
    _
  %s8 = ssub.s32 1, %s6
  %s9 = scalar_select 0, %s8, %s6
  // Predicated region
  $region2: #{bimap_0_normal_forward.4} parent=0 // pred_check
    _
  $region3: #{bimap_0_normal_forward.4} parent=0 // pred_check_branch
    %11 = sbr.rel (0) target = $region5
  $region4: #{bimap_0_normal_forward.4} parent=0 // pred_region
    _
  $region5: #{bimap_0_normal_forward.4} parent=0 // pred_fallthru
    _
  // Predicated region
  $region6: #{bimap_0_normal_forward.4} parent=0 // pred_check
    _
  $region7: #{bimap_0_normal_forward.4} parent=0 // pred_check_branch
    %13 = sbr.rel (0) target = $region9
  $region8: #{bimap_0_normal_forward.4} parent=0 // pred_region
    _
  $region9: #{bimap_0_normal_forward.4} parent=0 // pred_fallthru
    _
  // Predicated region
  $region10: #{bimap_0_normal_forward.4} parent=0 // pred_check
    _
  $region11: #{bimap_0_normal_forward.4} parent=0 // pred_check_branch
    %15 = sbr.rel (0) target = $region13
  $region12: #{bimap_0_normal_forward.4} parent=0 // pred_region
    _
  $region13: #{bimap_0_normal_forward.4} parent=0 // pred_fallthru
    _
  %v16 = vld [vmem:[%s1] sm:$0xff]
  %v17 = vld [vmem:[%s1 + $0x8] sm:$0xff]
  %v18 = vld [vmem:[%s1 + $0x10] sm:$0xff]
  %v19 = vld [vmem:[%s1 + $0x18] sm:$0xff]
  %v20 = vld [vmem:[%s1 + $0x20] sm:$0xff]
  %v21 = vld [vmem:[%s1 + $0x28] sm:$0xff]
  %v22 = vld [vmem:[%s1 + $0x30] sm:$0xff]
  %v23 = vld [vmem:[%s1 + $0x38] sm:$0xff]
  %v24 = vld [vmem:[%s0] sm:$0xff]
  %v25 = vld [vmem:[%s0 + $0x8] sm:$0xff]
  %v26 = vld [vmem:[%s0 + $0x10] sm:$0xff]
  %v27 = vld [vmem:[%s0 + $0x18] sm:$0xff]
  %v28 = vld [vmem:[%s0 + $0x20] sm:$0xff]
  %v29 = vld [vmem:[%s0 + $0x28] sm:$0xff]
  %v30 = vld [vmem:[%s0 + $0x30] sm:$0xff]
  %v31 = vld [vmem:[%s0 + $0x38] sm:$0xff]
  %vm32 = vcmask 523264
  %v34 = vsel %vm32, %v16, 0
  %v37 = vsel %vm32, %v17, 0
  %v40 = vsel %vm32, %v18, 0
  %v43 = vsel %vm32, %v19, 0
  %v46 = vsel %vm32, %v20, 0
  %v49 = vsel %vm32, %v21, 0
  %v52 = vsel %vm32, %v22, 0
  %v55 = vsel %vm32, %v23, 0
  %57 = vmatprep.subr.mxu0 0.0
  %58 = vmatpush1.msra.mxu0 0.0
  %59 = vmatprep.subr.mxu0 0.0
  %60 = vmatpush1.msra.mxu0 0.0
  %61 = vmatprep.subr.mxu0 0.0
  %62 = vmatpush1.msra.mxu0 0.0
  %63 = vmatprep.subr.mxu0 0.0
  %64 = vmatpush1.msra.mxu0 0.0
  %65 = vmatprep.subr.mxu0 0.0
  %66 = vmatpush1.msra.mxu0 0.0
  %67 = vmatprep.subr.mxu0 0.0
  %68 = vmatpush1.msra.mxu0 0.0
  %69 = vmatprep.subr.mxu0 0.0
  %70 = vmatpush1.msra.mxu0 0.0
  %71 = vmatprep.subr.mxu0 0.0
  %72 = vmatpush1.msra.mxu0 0.0
  %73 = vmatprep.subr.mxu0 0.0
  %74 = vmatpush1.msra.mxu0 %v31
  %75 = vmatprep.subr.mxu0 0.0
  %76 = vmatpush1.msra.mxu0 %v30
  %77 = vmatprep.subr.mxu0 0.0
  %78 = vmatpush1.msra.mxu0 %v29
  %79 = vmatprep.subr.mxu0 0.0
  %80 = vmatpush1.msra.mxu0 %v28
  %81 = vmatprep.subr.mxu0 0.0
  %82 = vmatpush1.msra.mxu0 %v27
  %83 = vmatprep.subr.mxu0 0.0
  %84 = vmatpush1.msra.mxu0 %v26
  %85 = vmatprep.subr.mxu0 0.0
  %86 = vmatpush1.msra.mxu0 %v25
  %87 = vmatprep.subr.mxu0 0.0
  %88 = vmatpush1.msra.mxu0 %v24
  %89 = vmatprep.subr.mxu0 0.0
  %90 = vmatpush2.msra.mxu0 0.0
  %91 = vmatprep.subr.mxu0 0.0
  %92 = vmatpush2.msra.mxu0 0.0
  %93 = vmatprep.subr.mxu0 0.0
  %94 = vmatpush2.msra.mxu0 0.0
  %95 = vmatprep.subr.mxu0 0.0
  %96 = vmatpush2.msra.mxu0 0.0
  %97 = vmatprep.subr.mxu0 0.0
  %98 = vmatpush2.msra.mxu0 0.0
  %99 = vmatprep.subr.mxu0 0.0
  %100 = vmatpush2.msra.mxu0 0.0
  %101 = vmatprep.subr.mxu0 0.0
  %102 = vmatpush2.msra.mxu0 0.0
  %103 = vmatprep.subr.mxu0 0.0
  %104 = vmatpush2.msra.mxu0 0.0
  %105 = vmatprep.subr.mxu0 0.0
  %106 = vmatpush2.msra.mxu0 0.0
  %107 = vmatprep.subr.mxu0 0.0
  %108 = vmatpush2.msra.mxu0 0.0
  %109 = vmatprep.subr.mxu0 0.0
  %110 = vmatpush2.msra.mxu0 0.0
  %111 = vmatprep.subr.mxu0 0.0
  %112 = vmatpush2.msra.mxu0 0.0
  %113 = vmatprep.subr.mxu0 0.0
  %114 = vmatpush2.msra.mxu0 0.0
  %115 = vmatprep.subr.mxu0 0.0
  %116 = vmatpush2.msra.mxu0 0.0
  %117 = vmatprep.subr.mxu0 0.0
  %118 = vmatpush2.msra.mxu0 0.0
  %119 = vmatprep.subr.mxu0 0.0
  %120 = vmatpush2.msra.mxu0 0.0
  %121 = vmatprep.mubr.f32.mxu0 0.0
  %122 = vmatmul.mubr.f32.gmra.mxu0 %v34
  %v123 = vpop.f32.mrf.mxu0
  %v124 = vadd.f32 0.0, %v123
  %v125 = vpop.f32.mrf.mxu0
  %126 = vmatprep.mubr.f32.mxu0 0.0
  %127 = vmatmul.mubr.f32.gmra.mxu0 %v37
  %v128 = vpop.f32.mrf.mxu0
  %v129 = vadd.f32 0.0, %v128
  %v130 = vpop.f32.mrf.mxu0
  %131 = vmatprep.mubr.f32.mxu0 0.0
  %132 = vmatmul.mubr.f32.gmra.mxu0 %v40
  %v133 = vpop.f32.mrf.mxu0
  %v134 = vadd.f32 0.0, %v133
  %v135 = vpop.f32.mrf.mxu0
  %136 = vmatprep.mubr.f32.mxu0 0.0
  %137 = vmatmul.mubr.f32.gmra.mxu0 %v43
  %v138 = vpop.f32.mrf.mxu0
  %v139 = vadd.f32 0.0, %v138
  %v140 = vpop.f32.mrf.mxu0
  %141 = vmatprep.mubr.f32.mxu0 0.0
  %142 = vmatmul.mubr.f32.gmra.mxu0 %v46
  %v143 = vpop.f32.mrf.mxu0
  %v144 = vadd.f32 0.0, %v143
  %v145 = vpop.f32.mrf.mxu0
  %146 = vmatprep.mubr.f32.mxu0 0.0
  %147 = vmatmul.mubr.f32.gmra.mxu0 %v49
  %v148 = vpop.f32.mrf.mxu0
  %v149 = vadd.f32 0.0, %v148
  %v150 = vpop.f32.mrf.mxu0
  %151 = vmatprep.mubr.f32.mxu0 0.0
  %152 = vmatmul.mubr.f32.gmra.mxu0 %v52
  %v153 = vpop.f32.mrf.mxu0
  %v154 = vadd.f32 0.0, %v153
  %v155 = vpop.f32.mrf.mxu0
  %156 = vmatprep.mubr.f32.mxu0 0.0
  %157 = vmatmul.mubr.f32.gmra.mxu0 %v55
  %v158 = vpop.f32.mrf.mxu0
  %v159 = vadd.f32 0.0, %v158
  %v160 = vpop.f32.mrf.mxu0
  %161 = vdwg.mxu0
  %v162 = vld [vmem:[%s2] sm:$0xff]
  %v163 = vld [vmem:[%s2 + $0x8] sm:$0xff]
  %v164 = vld [vmem:[%s2 + $0x10] sm:$0xff]
  %v165 = vld [vmem:[%s2 + $0x18] sm:$0xff]
  %v166 = vld [vmem:[%s2 + $0x20] sm:$0xff]
  %v167 = vld [vmem:[%s2 + $0x28] sm:$0xff]
  %v168 = vld [vmem:[%s2 + $0x30] sm:$0xff]
  %v169 = vld [vmem:[%s2 + $0x38] sm:$0xff]
  %v171 = vsel %vm32, %v124, 0
  %v174 = vsel %vm32, %v129, 0
  %176 = vmatprep.subr.mxu0 0.0
  %177 = vmatpush1.msra.mxu0 0.0
  %178 = vmatprep.subr.mxu0 0.0
  %179 = vmatpush1.msra.mxu0 0.0
  %180 = vmatprep.subr.mxu0 0.0
  %181 = vmatpush1.msra.mxu0 0.0
  %182 = vmatprep.subr.mxu0 0.0
  %183 = vmatpush1.msra.mxu0 0.0
  %184 = vmatprep.subr.mxu0 0.0
  %185 = vmatpush1.msra.mxu0 0.0
  %186 = vmatprep.subr.mxu0 0.0
  %187 = vmatpush1.msra.mxu0 0.0
  %188 = vmatprep.subr.mxu0 0.0
  %189 = vmatpush1.msra.mxu0 0.0
  %190 = vmatprep.subr.mxu0 0.0
  %191 = vmatpush1.msra.mxu0 0.0
  %192 = vmatprep.subr.mxu0 0.0
  %193 = vmatpush1.msra.mxu0 %v169
  %194 = vmatprep.subr.mxu0 0.0
  %195 = vmatpush1.msra.mxu0 %v168
  %196 = vmatprep.subr.mxu0 0.0
  %197 = vmatpush1.msra.mxu0 %v167
  %198 = vmatprep.subr.mxu0 0.0
  %199 = vmatpush1.msra.mxu0 %v166
  %200 = vmatprep.subr.mxu0 0.0
  %201 = vmatpush1.msra.mxu0 %v165
  %202 = vmatprep.subr.mxu0 0.0
  %203 = vmatpush1.msra.mxu0 %v164
  %204 = vmatprep.subr.mxu0 0.0
  %205 = vmatpush1.msra.mxu0 %v163
  %206 = vmatprep.subr.mxu0 0.0
  %207 = vmatpush1.msra.mxu0 %v162
  %208 = vmatprep.subr.mxu0 0.0
  %209 = vmatpush2.msra.mxu0 0.0
  %210 = vmatprep.subr.mxu0 0.0
  %211 = vmatpush2.msra.mxu0 0.0
  %212 = vmatprep.subr.mxu0 0.0
  %213 = vmatpush2.msra.mxu0 0.0
  %214 = vmatprep.subr.mxu0 0.0
  %215 = vmatpush2.msra.mxu0 0.0
  %216 = vmatprep.subr.mxu0 0.0
  %217 = vmatpush2.msra.mxu0 0.0
  %218 = vmatprep.subr.mxu0 0.0
  %219 = vmatpush2.msra.mxu0 0.0
  %220 = vmatprep.subr.mxu0 0.0
  %221 = vmatpush2.msra.mxu0 0.0
  %222 = vmatprep.subr.mxu0 0.0
  %223 = vmatpush2.msra.mxu0 0.0
  %224 = vmatprep.subr.mxu0 0.0
  %225 = vmatpush2.msra.mxu0 0.0
  %226 = vmatprep.subr.mxu0 0.0
  %227 = vmatpush2.msra.mxu0 0.0
  %228 = vmatprep.subr.mxu0 0.0
  %229 = vmatpush2.msra.mxu0 0.0
  %230 = vmatprep.subr.mxu0 0.0
  %231 = vmatpush2.msra.mxu0 0.0
  %232 = vmatprep.subr.mxu0 0.0
  %233 = vmatpush2.msra.mxu0 0.0
  %234 = vmatprep.subr.mxu0 0.0
  %235 = vmatpush2.msra.mxu0 0.0
  %236 = vmatprep.subr.mxu0 0.0
  %237 = vmatpush2.msra.mxu0 0.0
  %238 = vmatprep.subr.mxu0 0.0
  %239 = vmatpush2.msra.mxu0 0.0
  %240 = vmatprep.mubr.f32.mxu0 0.0
  %241 = vmatmul.mubr.f32.gmra.mxu0 %v171
  %v242 = vpop.f32.mrf.mxu0
  %v243 = vadd.f32 0.0, %v242
  %v244 = vpop.f32.mrf.mxu0
  %245 = vmatprep.mubr.f32.mxu0 0.0
  %246 = vmatmul.mubr.f32.gmra.mxu0 %v174
  %v247 = vpop.f32.mrf.mxu0
  %v248 = vadd.f32 0.0, %v247
  %v249 = vpop.f32.mrf.mxu0
  %250 = vdwg.mxu0
  %s251 = scalar_lea.vmem %s2, 64
  %v252 = vld [vmem:[%s251] sm:$0xff]
  %v253 = vld [vmem:[%s251 + $0x8] sm:$0xff]
  %v254 = vld [vmem:[%s251 + $0x10] sm:$0xff]
  %v255 = vld [vmem:[%s251 + $0x18] sm:$0xff]
  %v256 = vld [vmem:[%s251 + $0x20] sm:$0xff]
  %v257 = vld [vmem:[%s251 + $0x28] sm:$0xff]
  %v258 = vld [vmem:[%s251 + $0x30] sm:$0xff]
  %v259 = vld [vmem:[%s251 + $0x38] sm:$0xff]
  %v261 = vsel %vm32, %v134, 0
  %v264 = vsel %vm32, %v139, 0
  %266 = vmatprep.subr.mxu0 0.0
  %267 = vmatpush1.msra.mxu0 0.0
  %268 = vmatprep.subr.mxu0 0.0
  %269 = vmatpush1.msra.mxu0 0.0
  %270 = vmatprep.subr.mxu0 0.0
  %271 = vmatpush1.msra.mxu0 0.0
  %272 = vmatprep.subr.mxu0 0.0
  %273 = vmatpush1.msra.mxu0 0.0
  %274 = vmatprep.subr.mxu0 0.0
  %275 = vmatpush1.msra.mxu0 0.0
  %276 = vmatprep.subr.mxu0 0.0
  %277 = vmatpush1.msra.mxu0 0.0
  %278 = vmatprep.subr.mxu0 0.0
  %279 = vmatpush1.msra.mxu0 0.0
  %280 = vmatprep.subr.mxu0 0.0
  %281 = vmatpush1.msra.mxu0 0.0
  %282 = vmatprep.subr.mxu0 0.0
  %283 = vmatpush1.msra.mxu0 %v259
  %284 = vmatprep.subr.mxu0 0.0
  %285 = vmatpush1.msra.mxu0 %v258
  %286 = vmatprep.subr.mxu0 0.0
  %287 = vmatpush1.msra.mxu0 %v257
  %288 = vmatprep.subr.mxu0 0.0
  %289 = vmatpush1.msra.mxu0 %v256
  %290 = vmatprep.subr.mxu0 0.0
  %291 = vmatpush1.msra.mxu0 %v255
  %292 = vmatprep.subr.mxu0 0.0
  %293 = vmatpush1.msra.mxu0 %v254
  %294 = vmatprep.subr.mxu0 0.0
  %295 = vmatpush1.msra.mxu0 %v253
  %296 = vmatprep.subr.mxu0 0.0
  %297 = vmatpush1.msra.mxu0 %v252
  %298 = vmatprep.subr.mxu0 0.0
  %299 = vmatpush2.msra.mxu0 0.0
  %300 = vmatprep.subr.mxu0 0.0
  %301 = vmatpush2.msra.mxu0 0.0
  %302 = vmatprep.subr.mxu0 0.0
  %303 = vmatpush2.msra.mxu0 0.0
  %304 = vmatprep.subr.mxu0 0.0
  %305 = vmatpush2.msra.mxu0 0.0
  %306 = vmatprep.subr.mxu0 0.0
  %307 = vmatpush2.msra.mxu0 0.0
  %308 = vmatprep.subr.mxu0 0.0
  %309 = vmatpush2.msra.mxu0 0.0
  %310 = vmatprep.subr.mxu0 0.0
  %311 = vmatpush2.msra.mxu0 0.0
  %312 = vmatprep.subr.mxu0 0.0
  %313 = vmatpush2.msra.mxu0 0.0
  %314 = vmatprep.subr.mxu0 0.0
  %315 = vmatpush2.msra.mxu0 0.0
  %316 = vmatprep.subr.mxu0 0.0
  %317 = vmatpush2.msra.mxu0 0.0
  %318 = vmatprep.subr.mxu0 0.0
  %319 = vmatpush2.msra.mxu0 0.0
  %320 = vmatprep.subr.mxu0 0.0
  %321 = vmatpush2.msra.mxu0 0.0
  %322 = vmatprep.subr.mxu0 0.0
  %323 = vmatpush2.msra.mxu0 0.0
  %324 = vmatprep.subr.mxu0 0.0
  %325 = vmatpush2.msra.mxu0 0.0
  %326 = vmatprep.subr.mxu0 0.0
  %327 = vmatpush2.msra.mxu0 0.0
  %328 = vmatprep.subr.mxu0 0.0
  %329 = vmatpush2.msra.mxu0 0.0
  %330 = vmatprep.mubr.f32.mxu0 0.0
  %331 = vmatmul.mubr.f32.gmra.mxu0 %v261
  %v332 = vpop.f32.mrf.mxu0
  %v333 = vadd.f32 0.0, %v332
  %v334 = vpop.f32.mrf.mxu0
  %335 = vmatprep.mubr.f32.mxu0 0.0
  %336 = vmatmul.mubr.f32.gmra.mxu0 %v264
  %v337 = vpop.f32.mrf.mxu0
  %v338 = vadd.f32 0.0, %v337
  %v339 = vpop.f32.mrf.mxu0
  %340 = vdwg.mxu0
  %s341 = scalar_lea.vmem %s2, 128
  %v342 = vld [vmem:[%s341] sm:$0xff]
  %v343 = vld [vmem:[%s341 + $0x8] sm:$0xff]
  %v344 = vld [vmem:[%s341 + $0x10] sm:$0xff]
  %v345 = vld [vmem:[%s341 + $0x18] sm:$0xff]
  %v346 = vld [vmem:[%s341 + $0x20] sm:$0xff]
  %v347 = vld [vmem:[%s341 + $0x28] sm:$0xff]
  %v348 = vld [vmem:[%s341 + $0x30] sm:$0xff]
  %v349 = vld [vmem:[%s341 + $0x38] sm:$0xff]
  %v351 = vsel %vm32, %v144, 0
  %v354 = vsel %vm32, %v149, 0
  %356 = vmatprep.subr.mxu0 0.0
  %357 = vmatpush1.msra.mxu0 0.0
  %358 = vmatprep.subr.mxu0 0.0
  %359 = vmatpush1.msra.mxu0 0.0
  %360 = vmatprep.subr.mxu0 0.0
  %361 = vmatpush1.msra.mxu0 0.0
  %362 = vmatprep.subr.mxu0 0.0
  %363 = vmatpush1.msra.mxu0 0.0
  %364 = vmatprep.subr.mxu0 0.0
  %365 = vmatpush1.msra.mxu0 0.0
  %366 = vmatprep.subr.mxu0 0.0
  %367 = vmatpush1.msra.mxu0 0.0
  %368 = vmatprep.subr.mxu0 0.0
  %369 = vmatpush1.msra.mxu0 0.0
  %370 = vmatprep.subr.mxu0 0.0
  %371 = vmatpush1.msra.mxu0 0.0
  %372 = vmatprep.subr.mxu0 0.0
  %373 = vmatpush1.msra.mxu0 %v349
  %374 = vmatprep.subr.mxu0 0.0
  %375 = vmatpush1.msra.mxu0 %v348
  %376 = vmatprep.subr.mxu0 0.0
  %377 = vmatpush1.msra.mxu0 %v347
  %378 = vmatprep.subr.mxu0 0.0
  %379 = vmatpush1.msra.mxu0 %v346
  %380 = vmatprep.subr.mxu0 0.0
  %381 = vmatpush1.msra.mxu0 %v345
  %382 = vmatprep.subr.mxu0 0.0
  %383 = vmatpush1.msra.mxu0 %v344
  %384 = vmatprep.subr.mxu0 0.0
  %385 = vmatpush1.msra.mxu0 %v343
  %386 = vmatprep.subr.mxu0 0.0
  %387 = vmatpush1.msra.mxu0 %v342
  %388 = vmatprep.subr.mxu0 0.0
  %389 = vmatpush2.msra.mxu0 0.0
  %390 = vmatprep.subr.mxu0 0.0
  %391 = vmatpush2.msra.mxu0 0.0
  %392 = vmatprep.subr.mxu0 0.0
  %393 = vmatpush2.msra.mxu0 0.0
  %394 = vmatprep.subr.mxu0 0.0
  %395 = vmatpush2.msra.mxu0 0.0
  %396 = vmatprep.subr.mxu0 0.0
  %397 = vmatpush2.msra.mxu0 0.0
  %398 = vmatprep.subr.mxu0 0.0
  %399 = vmatpush2.msra.mxu0 0.0
  %400 = vmatprep.subr.mxu0 0.0
  %401 = vmatpush2.msra.mxu0 0.0
  %402 = vmatprep.subr.mxu0 0.0
  %403 = vmatpush2.msra.mxu0 0.0
  %404 = vmatprep.subr.mxu0 0.0
  %405 = vmatpush2.msra.mxu0 0.0
  %406 = vmatprep.subr.mxu0 0.0
  %407 = vmatpush2.msra.mxu0 0.0
  %408 = vmatprep.subr.mxu0 0.0
  %409 = vmatpush2.msra.mxu0 0.0
  %410 = vmatprep.subr.mxu0 0.0
  %411 = vmatpush2.msra.mxu0 0.0
  %412 = vmatprep.subr.mxu0 0.0
  %413 = vmatpush2.msra.mxu0 0.0
  %414 = vmatprep.subr.mxu0 0.0
  %415 = vmatpush2.msra.mxu0 0.0
  %416 = vmatprep.subr.mxu0 0.0
  %417 = vmatpush2.msra.mxu0 0.0
  %418 = vmatprep.subr.mxu0 0.0
  %419 = vmatpush2.msra.mxu0 0.0
  %420 = vmatprep.mubr.f32.mxu0 0.0
  %421 = vmatmul.mubr.f32.gmra.mxu0 %v351
  %v422 = vpop.f32.mrf.mxu0
  %v423 = vadd.f32 0.0, %v422
  %v424 = vpop.f32.mrf.mxu0
  %425 = vmatprep.mubr.f32.mxu0 0.0
  %426 = vmatmul.mubr.f32.gmra.mxu0 %v354
  %v427 = vpop.f32.mrf.mxu0
  %v428 = vadd.f32 0.0, %v427
  %v429 = vpop.f32.mrf.mxu0
  %430 = vdwg.mxu0
  %s431 = scalar_lea.vmem %s2, 192
  %v432 = vld [vmem:[%s431] sm:$0xff]
  %v433 = vld [vmem:[%s431 + $0x8] sm:$0xff]
  %v434 = vld [vmem:[%s431 + $0x10] sm:$0xff]
  %v435 = vld [vmem:[%s431 + $0x18] sm:$0xff]
  %v436 = vld [vmem:[%s431 + $0x20] sm:$0xff]
  %v437 = vld [vmem:[%s431 + $0x28] sm:$0xff]
  %v438 = vld [vmem:[%s431 + $0x30] sm:$0xff]
  %v439 = vld [vmem:[%s431 + $0x38] sm:$0xff]
  %v441 = vsel %vm32, %v154, 0
  %v444 = vsel %vm32, %v159, 0
  %446 = vmatprep.subr.mxu0 0.0
  %447 = vmatpush1.msra.mxu0 0.0
  %448 = vmatprep.subr.mxu0 0.0
  %449 = vmatpush1.msra.mxu0 0.0
  %450 = vmatprep.subr.mxu0 0.0
  %451 = vmatpush1.msra.mxu0 0.0
  %452 = vmatprep.subr.mxu0 0.0
  %453 = vmatpush1.msra.mxu0 0.0
  %454 = vmatprep.subr.mxu0 0.0
  %455 = vmatpush1.msra.mxu0 0.0
  %456 = vmatprep.subr.mxu0 0.0
  %457 = vmatpush1.msra.mxu0 0.0
  %458 = vmatprep.subr.mxu0 0.0
  %459 = vmatpush1.msra.mxu0 0.0
  %460 = vmatprep.subr.mxu0 0.0
  %461 = vmatpush1.msra.mxu0 0.0
  %462 = vmatprep.subr.mxu0 0.0
  %463 = vmatpush1.msra.mxu0 %v439
  %464 = vmatprep.subr.mxu0 0.0
  %465 = vmatpush1.msra.mxu0 %v438
  %466 = vmatprep.subr.mxu0 0.0
  %467 = vmatpush1.msra.mxu0 %v437
  %468 = vmatprep.subr.mxu0 0.0
  %469 = vmatpush1.msra.mxu0 %v436
  %470 = vmatprep.subr.mxu0 0.0
  %471 = vmatpush1.msra.mxu0 %v435
  %472 = vmatprep.subr.mxu0 0.0
  %473 = vmatpush1.msra.mxu0 %v434
  %474 = vmatprep.subr.mxu0 0.0
  %475 = vmatpush1.msra.mxu0 %v433
  %476 = vmatprep.subr.mxu0 0.0
  %477 = vmatpush1.msra.mxu0 %v432
  %478 = vmatprep.subr.mxu0 0.0
  %479 = vmatpush2.msra.mxu0 0.0
  %480 = vmatprep.subr.mxu0 0.0
  %481 = vmatpush2.msra.mxu0 0.0
  %482 = vmatprep.subr.mxu0 0.0
  %483 = vmatpush2.msra.mxu0 0.0
  %484 = vmatprep.subr.mxu0 0.0
  %485 = vmatpush2.msra.mxu0 0.0
  %486 = vmatprep.subr.mxu0 0.0
  %487 = vmatpush2.msra.mxu0 0.0
  %488 = vmatprep.subr.mxu0 0.0
  %489 = vmatpush2.msra.mxu0 0.0
  %490 = vmatprep.subr.mxu0 0.0
  %491 = vmatpush2.msra.mxu0 0.0
  %492 = vmatprep.subr.mxu0 0.0
  %493 = vmatpush2.msra.mxu0 0.0
  %494 = vmatprep.subr.mxu0 0.0
  %495 = vmatpush2.msra.mxu0 0.0
  %496 = vmatprep.subr.mxu0 0.0
  %497 = vmatpush2.msra.mxu0 0.0
  %498 = vmatprep.subr.mxu0 0.0
  %499 = vmatpush2.msra.mxu0 0.0
  %500 = vmatprep.subr.mxu0 0.0
  %501 = vmatpush2.msra.mxu0 0.0
  %502 = vmatprep.subr.mxu0 0.0
  %503 = vmatpush2.msra.mxu0 0.0
  %504 = vmatprep.subr.mxu0 0.0
  %505 = vmatpush2.msra.mxu0 0.0
  %506 = vmatprep.subr.mxu0 0.0
  %507 = vmatpush2.msra.mxu0 0.0
  %508 = vmatprep.subr.mxu0 0.0
  %509 = vmatpush2.msra.mxu0 0.0
  %510 = vmatprep.mubr.f32.mxu0 0.0
  %511 = vmatmul.mubr.f32.gmra.mxu0 %v441
  %v512 = vpop.f32.mrf.mxu0
  %v513 = vadd.f32 0.0, %v512
  %v514 = vpop.f32.mrf.mxu0
  %515 = vmatprep.mubr.f32.mxu0 0.0
  %516 = vmatmul.mubr.f32.gmra.mxu0 %v444
  %v517 = vpop.f32.mrf.mxu0
  %v518 = vadd.f32 0.0, %v517
  %v519 = vpop.f32.mrf.mxu0
  %520 = vdwg.mxu0
  %s521 = scalar_lea.vmem %s0, 64
  %v522 = vld [vmem:[%s521] sm:$0xff]
  %v523 = vld [vmem:[%s521 + $0x8] sm:$0xff]
  %v524 = vld [vmem:[%s521 + $0x10] sm:$0xff]
  %v525 = vld [vmem:[%s521 + $0x18] sm:$0xff]
  %v526 = vld [vmem:[%s521 + $0x20] sm:$0xff]
  %v527 = vld [vmem:[%s521 + $0x28] sm:$0xff]
  %v528 = vld [vmem:[%s521 + $0x30] sm:$0xff]
  %v529 = vld [vmem:[%s521 + $0x38] sm:$0xff]
  %530 = vmatprep.subr.mxu0 0.0
  %531 = vmatpush1.msra.mxu0 0.0
  %532 = vmatprep.subr.mxu0 0.0
  %533 = vmatpush1.msra.mxu0 0.0
  %534 = vmatprep.subr.mxu0 0.0
  %535 = vmatpush1.msra.mxu0 0.0
  %536 = vmatprep.subr.mxu0 0.0
  %537 = vmatpush1.msra.mxu0 0.0
  %538 = vmatprep.subr.mxu0 0.0
  %539 = vmatpush1.msra.mxu0 0.0
  %540 = vmatprep.subr.mxu0 0.0
  %541 = vmatpush1.msra.mxu0 0.0
  %542 = vmatprep.subr.mxu0 0.0
  %543 = vmatpush1.msra.mxu0 0.0
  %544 = vmatprep.subr.mxu0 0.0
  %545 = vmatpush1.msra.mxu0 0.0
  %546 = vmatprep.subr.mxu0 0.0
  %547 = vmatpush1.msra.mxu0 %v529
  %548 = vmatprep.subr.mxu0 0.0
  %549 = vmatpush1.msra.mxu0 %v528
  %550 = vmatprep.subr.mxu0 0.0
  %551 = vmatpush1.msra.mxu0 %v527
  %552 = vmatprep.subr.mxu0 0.0
  %553 = vmatpush1.msra.mxu0 %v526
  %554 = vmatprep.subr.mxu0 0.0
  %555 = vmatpush1.msra.mxu0 %v525
  %556 = vmatprep.subr.mxu0 0.0
  %557 = vmatpush1.msra.mxu0 %v524
  %558 = vmatprep.subr.mxu0 0.0
  %559 = vmatpush1.msra.mxu0 %v523
  %560 = vmatprep.subr.mxu0 0.0
  %561 = vmatpush1.msra.mxu0 %v522
  %562 = vmatprep.subr.mxu0 0.0
  %563 = vmatpush2.msra.mxu0 0.0
  %564 = vmatprep.subr.mxu0 0.0
  %565 = vmatpush2.msra.mxu0 0.0
  %566 = vmatprep.subr.mxu0 0.0
  %567 = vmatpush2.msra.mxu0 0.0
  %568 = vmatprep.subr.mxu0 0.0
  %569 = vmatpush2.msra.mxu0 0.0
  %570 = vmatprep.subr.mxu0 0.0
  %571 = vmatpush2.msra.mxu0 0.0
  %572 = vmatprep.subr.mxu0 0.0
  %573 = vmatpush2.msra.mxu0 0.0
  %574 = vmatprep.subr.mxu0 0.0
  %575 = vmatpush2.msra.mxu0 0.0
  %576 = vmatprep.subr.mxu0 0.0
  %577 = vmatpush2.msra.mxu0 0.0
  %578 = vmatprep.subr.mxu0 0.0
  %579 = vmatpush2.msra.mxu0 0.0
  %580 = vmatprep.subr.mxu0 0.0
  %581 = vmatpush2.msra.mxu0 0.0
  %582 = vmatprep.subr.mxu0 0.0
  %583 = vmatpush2.msra.mxu0 0.0
  %584 = vmatprep.subr.mxu0 0.0
  %585 = vmatpush2.msra.mxu0 0.0
  %586 = vmatprep.subr.mxu0 0.0
  %587 = vmatpush2.msra.mxu0 0.0
  %588 = vmatprep.subr.mxu0 0.0
  %589 = vmatpush2.msra.mxu0 0.0
  %590 = vmatprep.subr.mxu0 0.0
  %591 = vmatpush2.msra.mxu0 0.0
  %592 = vmatprep.subr.mxu0 0.0
  %593 = vmatpush2.msra.mxu0 0.0
  %594 = vmatprep.mubr.f32.mxu0 0.0
  %595 = vmatmul.mubr.f32.gmra.mxu0 %v34
  %v596 = vpop.f32.mrf.mxu0
  %v597 = vadd.f32 0.0, %v596
  %v598 = vpop.f32.mrf.mxu0
  %599 = vmatprep.mubr.f32.mxu0 0.0
  %600 = vmatmul.mubr.f32.gmra.mxu0 %v37
  %v601 = vpop.f32.mrf.mxu0
  %v602 = vadd.f32 0.0, %v601
  %v603 = vpop.f32.mrf.mxu0
  %604 = vmatprep.mubr.f32.mxu0 0.0
  %605 = vmatmul.mubr.f32.gmra.mxu0 %v40
  %v606 = vpop.f32.mrf.mxu0
  %v607 = vadd.f32 0.0, %v606
  %v608 = vpop.f32.mrf.mxu0
  %609 = vmatprep.mubr.f32.mxu0 0.0
  %610 = vmatmul.mubr.f32.gmra.mxu0 %v43
  %v611 = vpop.f32.mrf.mxu0
  %v612 = vadd.f32 0.0, %v611
  %v613 = vpop.f32.mrf.mxu0
  %614 = vmatprep.mubr.f32.mxu0 0.0
  %615 = vmatmul.mubr.f32.gmra.mxu0 %v46
  %v616 = vpop.f32.mrf.mxu0
  %v617 = vadd.f32 0.0, %v616
  %v618 = vpop.f32.mrf.mxu0
  %619 = vmatprep.mubr.f32.mxu0 0.0
  %620 = vmatmul.mubr.f32.gmra.mxu0 %v49
  %v621 = vpop.f32.mrf.mxu0
  %v622 = vadd.f32 0.0, %v621
  %v623 = vpop.f32.mrf.mxu0
  %624 = vmatprep.mubr.f32.mxu0 0.0
  %625 = vmatmul.mubr.f32.gmra.mxu0 %v52
  %v626 = vpop.f32.mrf.mxu0
  %v627 = vadd.f32 0.0, %v626
  %v628 = vpop.f32.mrf.mxu0
  %629 = vmatprep.mubr.f32.mxu0 0.0
  %630 = vmatmul.mubr.f32.gmra.mxu0 %v55
  %v631 = vpop.f32.mrf.mxu0
  %v632 = vadd.f32 0.0, %v631
  %v633 = vpop.f32.mrf.mxu0
  %634 = vdwg.mxu0
  %v636 = vsel %vm32, %v597, 0
  %v639 = vsel %vm32, %v602, 0
  %641 = vmatprep.subr.mxu0 0.0
  %642 = vmatpush1.msra.mxu0 0.0
  %643 = vmatprep.subr.mxu0 0.0
  %644 = vmatpush1.msra.mxu0 0.0
  %645 = vmatprep.subr.mxu0 0.0
  %646 = vmatpush1.msra.mxu0 0.0
  %647 = vmatprep.subr.mxu0 0.0
  %648 = vmatpush1.msra.mxu0 0.0
  %649 = vmatprep.subr.mxu0 0.0
  %650 = vmatpush1.msra.mxu0 0.0
  %651 = vmatprep.subr.mxu0 0.0
  %652 = vmatpush1.msra.mxu0 0.0
  %653 = vmatprep.subr.mxu0 0.0
  %654 = vmatpush1.msra.mxu0 0.0
  %655 = vmatprep.subr.mxu0 0.0
  %656 = vmatpush1.msra.mxu0 0.0
  %657 = vmatprep.subr.mxu0 0.0
  %658 = vmatpush1.msra.mxu0 %v169
  %659 = vmatprep.subr.mxu0 0.0
  %660 = vmatpush1.msra.mxu0 %v168
  %661 = vmatprep.subr.mxu0 0.0
  %662 = vmatpush1.msra.mxu0 %v167
  %663 = vmatprep.subr.mxu0 0.0
  %664 = vmatpush1.msra.mxu0 %v166
  %665 = vmatprep.subr.mxu0 0.0
  %666 = vmatpush1.msra.mxu0 %v165
  %667 = vmatprep.subr.mxu0 0.0
  %668 = vmatpush1.msra.mxu0 %v164
  %669 = vmatprep.subr.mxu0 0.0
  %670 = vmatpush1.msra.mxu0 %v163
  %671 = vmatprep.subr.mxu0 0.0
  %672 = vmatpush1.msra.mxu0 %v162
  %673 = vmatprep.subr.mxu0 0.0
  %674 = vmatpush2.msra.mxu0 0.0
  %675 = vmatprep.subr.mxu0 0.0
  %676 = vmatpush2.msra.mxu0 0.0
  %677 = vmatprep.subr.mxu0 0.0
  %678 = vmatpush2.msra.mxu0 0.0
  %679 = vmatprep.subr.mxu0 0.0
  %680 = vmatpush2.msra.mxu0 0.0
  %681 = vmatprep.subr.mxu0 0.0
  %682 = vmatpush2.msra.mxu0 0.0
  %683 = vmatprep.subr.mxu0 0.0
  %684 = vmatpush2.msra.mxu0 0.0
  %685 = vmatprep.subr.mxu0 0.0
  %686 = vmatpush2.msra.mxu0 0.0
  %687 = vmatprep.subr.mxu0 0.0
  %688 = vmatpush2.msra.mxu0 0.0
  %689 = vmatprep.subr.mxu0 0.0
  %690 = vmatpush2.msra.mxu0 0.0
  %691 = vmatprep.subr.mxu0 0.0
  %692 = vmatpush2.msra.mxu0 0.0
  %693 = vmatprep.subr.mxu0 0.0
  %694 = vmatpush2.msra.mxu0 0.0
  %695 = vmatprep.subr.mxu0 0.0
  %696 = vmatpush2.msra.mxu0 0.0
  %697 = vmatprep.subr.mxu0 0.0
  %698 = vmatpush2.msra.mxu0 0.0
  %699 = vmatprep.subr.mxu0 0.0
  %700 = vmatpush2.msra.mxu0 0.0
  %701 = vmatprep.subr.mxu0 0.0
  %702 = vmatpush2.msra.mxu0 0.0
  %703 = vmatprep.subr.mxu0 0.0
  %704 = vmatpush2.msra.mxu0 0.0
  %705 = vmatprep.mubr.f32.mxu0 0.0
  %706 = vmatmul.mubr.f32.gmra.mxu0 %v636
  %v707 = vpop.f32.mrf.mxu0
  %v708 = vadd.f32 0.0, %v707
  %v709 = vpop.f32.mrf.mxu0
  %710 = vmatprep.mubr.f32.mxu0 0.0
  %711 = vmatmul.mubr.f32.gmra.mxu0 %v639
  %v712 = vpop.f32.mrf.mxu0
  %v713 = vadd.f32 0.0, %v712
  %v714 = vpop.f32.mrf.mxu0
  %715 = vdwg.mxu0
  %v717 = vsel %vm32, %v607, 0
  %v720 = vsel %vm32, %v612, 0
  %722 = vmatprep.subr.mxu0 0.0
  %723 = vmatpush1.msra.mxu0 0.0
  %724 = vmatprep.subr.mxu0 0.0
  %725 = vmatpush1.msra.mxu0 0.0
  %726 = vmatprep.subr.mxu0 0.0
  %727 = vmatpush1.msra.mxu0 0.0
  %728 = vmatprep.subr.mxu0 0.0
  %729 = vmatpush1.msra.mxu0 0.0
  %730 = vmatprep.subr.mxu0 0.0
  %731 = vmatpush1.msra.mxu0 0.0
  %732 = vmatprep.subr.mxu0 0.0
  %733 = vmatpush1.msra.mxu0 0.0
  %734 = vmatprep.subr.mxu0 0.0
  %735 = vmatpush1.msra.mxu0 0.0
  %736 = vmatprep.subr.mxu0 0.0
  %737 = vmatpush1.msra.mxu0 0.0
  %738 = vmatprep.subr.mxu0 0.0
  %739 = vmatpush1.msra.mxu0 %v259
  %740 = vmatprep.subr.mxu0 0.0
  %741 = vmatpush1.msra.mxu0 %v258
  %742 = vmatprep.subr.mxu0 0.0
  %743 = vmatpush1.msra.mxu0 %v257
  %744 = vmatprep.subr.mxu0 0.0
  %745 = vmatpush1.msra.mxu0 %v256
  %746 = vmatprep.subr.mxu0 0.0
  %747 = vmatpush1.msra.mxu0 %v255
  %748 = vmatprep.subr.mxu0 0.0
  %749 = vmatpush1.msra.mxu0 %v254
  %750 = vmatprep.subr.mxu0 0.0
  %751 = vmatpush1.msra.mxu0 %v253
  %752 = vmatprep.subr.mxu0 0.0
  %753 = vmatpush1.msra.mxu0 %v252
  %754 = vmatprep.subr.mxu0 0.0
  %755 = vmatpush2.msra.mxu0 0.0
  %756 = vmatprep.subr.mxu0 0.0
  %757 = vmatpush2.msra.mxu0 0.0
  %758 = vmatprep.subr.mxu0 0.0
  %759 = vmatpush2.msra.mxu0 0.0
  %760 = vmatprep.subr.mxu0 0.0
  %761 = vmatpush2.msra.mxu0 0.0
  %762 = vmatprep.subr.mxu0 0.0
  %763 = vmatpush2.msra.mxu0 0.0
  %764 = vmatprep.subr.mxu0 0.0
  %765 = vmatpush2.msra.mxu0 0.0
  %766 = vmatprep.subr.mxu0 0.0
  %767 = vmatpush2.msra.mxu0 0.0
  %768 = vmatprep.subr.mxu0 0.0
  %769 = vmatpush2.msra.mxu0 0.0
  %770 = vmatprep.subr.mxu0 0.0
  %771 = vmatpush2.msra.mxu0 0.0
  %772 = vmatprep.subr.mxu0 0.0
  %773 = vmatpush2.msra.mxu0 0.0
  %774 = vmatprep.subr.mxu0 0.0
  %775 = vmatpush2.msra.mxu0 0.0
  %776 = vmatprep.subr.mxu0 0.0
  %777 = vmatpush2.msra.mxu0 0.0
  %778 = vmatprep.subr.mxu0 0.0
  %779 = vmatpush2.msra.mxu0 0.0
  %780 = vmatprep.subr.mxu0 0.0
  %781 = vmatpush2.msra.mxu0 0.0
  %782 = vmatprep.subr.mxu0 0.0
  %783 = vmatpush2.msra.mxu0 0.0
  %784 = vmatprep.subr.mxu0 0.0
  %785 = vmatpush2.msra.mxu0 0.0
  %786 = vmatprep.mubr.f32.mxu0 0.0
  %787 = vmatmul.mubr.f32.gmra.mxu0 %v717
  %v788 = vpop.f32.mrf.mxu0
  %v789 = vadd.f32 0.0, %v788
  %v790 = vpop.f32.mrf.mxu0
  %791 = vmatprep.mubr.f32.mxu0 0.0
  %792 = vmatmul.mubr.f32.gmra.mxu0 %v720
  %v793 = vpop.f32.mrf.mxu0
  %v794 = vadd.f32 0.0, %v793
  %v795 = vpop.f32.mrf.mxu0
  %796 = vdwg.mxu0
  %v798 = vsel %vm32, %v617, 0
  %v801 = vsel %vm32, %v622, 0
  %803 = vmatprep.subr.mxu0 0.0
  %804 = vmatpush1.msra.mxu0 0.0
  %805 = vmatprep.subr.mxu0 0.0
  %806 = vmatpush1.msra.mxu0 0.0
  %807 = vmatprep.subr.mxu0 0.0
  %808 = vmatpush1.msra.mxu0 0.0
  %809 = vmatprep.subr.mxu0 0.0
  %810 = vmatpush1.msra.mxu0 0.0
  %811 = vmatprep.subr.mxu0 0.0
  %812 = vmatpush1.msra.mxu0 0.0
  %813 = vmatprep.subr.mxu0 0.0
  %814 = vmatpush1.msra.mxu0 0.0
  %815 = vmatprep.subr.mxu0 0.0
  %816 = vmatpush1.msra.mxu0 0.0
  %817 = vmatprep.subr.mxu0 0.0
  %818 = vmatpush1.msra.mxu0 0.0
  %819 = vmatprep.subr.mxu0 0.0
  %820 = vmatpush1.msra.mxu0 %v349
  %821 = vmatprep.subr.mxu0 0.0
  %822 = vmatpush1.msra.mxu0 %v348
  %823 = vmatprep.subr.mxu0 0.0
  %824 = vmatpush1.msra.mxu0 %v347
  %825 = vmatprep.subr.mxu0 0.0
  %826 = vmatpush1.msra.mxu0 %v346
  %827 = vmatprep.subr.mxu0 0.0
  %828 = vmatpush1.msra.mxu0 %v345
  %829 = vmatprep.subr.mxu0 0.0
  %830 = vmatpush1.msra.mxu0 %v344
  %831 = vmatprep.subr.mxu0 0.0
  %832 = vmatpush1.msra.mxu0 %v343
  %833 = vmatprep.subr.mxu0 0.0
  %834 = vmatpush1.msra.mxu0 %v342
  %835 = vmatprep.subr.mxu0 0.0
  %836 = vmatpush2.msra.mxu0 0.0
  %837 = vmatprep.subr.mxu0 0.0
  %838 = vmatpush2.msra.mxu0 0.0
  %839 = vmatprep.subr.mxu0 0.0
  %840 = vmatpush2.msra.mxu0 0.0
  %841 = vmatprep.subr.mxu0 0.0
  %842 = vmatpush2.msra.mxu0 0.0
  %843 = vmatprep.subr.mxu0 0.0
  %844 = vmatpush2.msra.mxu0 0.0
  %845 = vmatprep.subr.mxu0 0.0
  %846 = vmatpush2.msra.mxu0 0.0
  %847 = vmatprep.subr.mxu0 0.0
  %848 = vmatpush2.msra.mxu0 0.0
  %849 = vmatprep.subr.mxu0 0.0
  %850 = vmatpush2.msra.mxu0 0.0
  %851 = vmatprep.subr.mxu0 0.0
  %852 = vmatpush2.msra.mxu0 0.0
  %853 = vmatprep.subr.mxu0 0.0
  %854 = vmatpush2.msra.mxu0 0.0
  %855 = vmatprep.subr.mxu0 0.0
  %856 = vmatpush2.msra.mxu0 0.0
  %857 = vmatprep.subr.mxu0 0.0
  %858 = vmatpush2.msra.mxu0 0.0
  %859 = vmatprep.subr.mxu0 0.0
  %860 = vmatpush2.msra.mxu0 0.0
  %861 = vmatprep.subr.mxu0 0.0
  %862 = vmatpush2.msra.mxu0 0.0
  %863 = vmatprep.subr.mxu0 0.0
  %864 = vmatpush2.msra.mxu0 0.0
  %865 = vmatprep.subr.mxu0 0.0
  %866 = vmatpush2.msra.mxu0 0.0
  %867 = vmatprep.mubr.f32.mxu0 0.0
  %868 = vmatmul.mubr.f32.gmra.mxu0 %v798
  %v869 = vpop.f32.mrf.mxu0
  %v870 = vadd.f32 0.0, %v869
  %v871 = vpop.f32.mrf.mxu0
  %872 = vmatprep.mubr.f32.mxu0 0.0
  %873 = vmatmul.mubr.f32.gmra.mxu0 %v801
  %v874 = vpop.f32.mrf.mxu0
  %v875 = vadd.f32 0.0, %v874
  %v876 = vpop.f32.mrf.mxu0
  %877 = vdwg.mxu0
  %v879 = vsel %vm32, %v627, 0
  %v882 = vsel %vm32, %v632, 0
  %884 = vmatprep.subr.mxu0 0.0
  %885 = vmatpush1.msra.mxu0 0.0
  %886 = vmatprep.subr.mxu0 0.0
  %887 = vmatpush1.msra.mxu0 0.0
  %888 = vmatprep.subr.mxu0 0.0
  %889 = vmatpush1.msra.mxu0 0.0
  %890 = vmatprep.subr.mxu0 0.0
  %891 = vmatpush1.msra.mxu0 0.0
  %892 = vmatprep.subr.mxu0 0.0
  %893 = vmatpush1.msra.mxu0 0.0
  %894 = vmatprep.subr.mxu0 0.0
  %895 = vmatpush1.msra.mxu0 0.0
  %896 = vmatprep.subr.mxu0 0.0
  %897 = vmatpush1.msra.mxu0 0.0
  %898 = vmatprep.subr.mxu0 0.0
  %899 = vmatpush1.msra.mxu0 0.0
  %900 = vmatprep.subr.mxu0 0.0
  %901 = vmatpush1.msra.mxu0 %v439
  %902 = vmatprep.subr.mxu0 0.0
  %903 = vmatpush1.msra.mxu0 %v438
  %904 = vmatprep.subr.mxu0 0.0
  %905 = vmatpush1.msra.mxu0 %v437
  %906 = vmatprep.subr.mxu0 0.0
  %907 = vmatpush1.msra.mxu0 %v436
  %908 = vmatprep.subr.mxu0 0.0
  %909 = vmatpush1.msra.mxu0 %v435
  %910 = vmatprep.subr.mxu0 0.0
  %911 = vmatpush1.msra.mxu0 %v434
  %912 = vmatprep.subr.mxu0 0.0
  %913 = vmatpush1.msra.mxu0 %v433
  %914 = vmatprep.subr.mxu0 0.0
  %915 = vmatpush1.msra.mxu0 %v432
  %916 = vmatprep.subr.mxu0 0.0
  %917 = vmatpush2.msra.mxu0 0.0
  %918 = vmatprep.subr.mxu0 0.0
  %919 = vmatpush2.msra.mxu0 0.0
  %920 = vmatprep.subr.mxu0 0.0
  %921 = vmatpush2.msra.mxu0 0.0
  %922 = vmatprep.subr.mxu0 0.0
  %923 = vmatpush2.msra.mxu0 0.0
  %924 = vmatprep.subr.mxu0 0.0
  %925 = vmatpush2.msra.mxu0 0.0
  %926 = vmatprep.subr.mxu0 0.0
  %927 = vmatpush2.msra.mxu0 0.0
  %928 = vmatprep.subr.mxu0 0.0
  %929 = vmatpush2.msra.mxu0 0.0
  %930 = vmatprep.subr.mxu0 0.0
  %931 = vmatpush2.msra.mxu0 0.0
  %932 = vmatprep.subr.mxu0 0.0
  %933 = vmatpush2.msra.mxu0 0.0
  %934 = vmatprep.subr.mxu0 0.0
  %935 = vmatpush2.msra.mxu0 0.0
  %936 = vmatprep.subr.mxu0 0.0
  %937 = vmatpush2.msra.mxu0 0.0
  %938 = vmatprep.subr.mxu0 0.0
  %939 = vmatpush2.msra.mxu0 0.0
  %940 = vmatprep.subr.mxu0 0.0
  %941 = vmatpush2.msra.mxu0 0.0
  %942 = vmatprep.subr.mxu0 0.0
  %943 = vmatpush2.msra.mxu0 0.0
  %944 = vmatprep.subr.mxu0 0.0
  %945 = vmatpush2.msra.mxu0 0.0
  %946 = vmatprep.subr.mxu0 0.0
  %947 = vmatpush2.msra.mxu0 0.0
  %948 = vmatprep.mubr.f32.mxu0 0.0
  %949 = vmatmul.mubr.f32.gmra.mxu0 %v879
  %v950 = vpop.f32.mrf.mxu0
  %v951 = vadd.f32 0.0, %v950
  %v952 = vpop.f32.mrf.mxu0
  %953 = vmatprep.mubr.f32.mxu0 0.0
  %954 = vmatmul.mubr.f32.gmra.mxu0 %v882
  %v955 = vpop.f32.mrf.mxu0
  %v956 = vadd.f32 0.0, %v955
  %v957 = vpop.f32.mrf.mxu0
  %958 = vdwg.mxu0
  %961 = vrot.lane.b32.xlu0 %v333, 16
  %v962 = vpop.permute.xlu0 %961
  %963 = vrot.lane.b32.xlu0 %v338, 16
  %v964 = vpop.permute.xlu0 %963
  %969 = vrot.lane.b32.xlu0 %v423, 32
  %v970 = vpop.permute.xlu0 %969
  %971 = vrot.lane.b32.xlu0 %v428, 32
  %v972 = vpop.permute.xlu0 %971
  %977 = vrot.lane.b32.xlu0 %v513, 48
  %v978 = vpop.permute.xlu0 %977
  %979 = vrot.lane.b32.xlu0 %v518, 48
  %v980 = vpop.permute.xlu0 %979
  %985 = vrot.lane.b32.xlu0 %v708, 64
  %v986 = vpop.permute.xlu0 %985
  %987 = vrot.lane.b32.xlu0 %v713, 64
  %v988 = vpop.permute.xlu0 %987
  %993 = vrot.lane.b32.xlu0 %v789, 80
  %v994 = vpop.permute.xlu0 %993
  %995 = vrot.lane.b32.xlu0 %v794, 80
  %v996 = vpop.permute.xlu0 %995
  %1001 = vrot.lane.b32.xlu0 %v870, 96
  %v1002 = vpop.permute.xlu0 %1001
  %1003 = vrot.lane.b32.xlu0 %v875, 96
  %v1004 = vpop.permute.xlu0 %1003
  %1009 = vrot.lane.b32.xlu0 %v951, 112
  %v1010 = vpop.permute.xlu0 %1009
  %1011 = vrot.lane.b32.xlu0 %v956, 112
  %v1012 = vpop.permute.xlu0 %1011
  %vm1015 = vcmask 130048
  %v1016 = vsel %vm1015, %v243, %v962
  %v1017 = vsel %vm1015, %v248, %v964
  %vm1018 = vcmask 261120
  %v1019 = vsel %vm1018, %v1016, %v970
  %v1020 = vsel %vm1018, %v1017, %v972
  %vm1021 = vcmask 392192
  %v1022 = vsel %vm1021, %v1019, %v978
  %v1023 = vsel %vm1021, %v1020, %v980
  %v1024 = vsel %vm32, %v1022, %v986
  %v1025 = vsel %vm32, %v1023, %v988
  %vm1026 = vcmask 654336
  %v1027 = vsel %vm1026, %v1024, %v994
  %v1028 = vsel %vm1026, %v1025, %v996
  %vm1029 = vcmask 785408
  %v1030 = vsel %vm1029, %v1027, %v1002
  %v1031 = vsel %vm1029, %v1028, %v1004
  %vm1032 = vcmask 916480
  %v1033 = vsel %vm1032, %v1030, %v1010
  %v1034 = vsel %vm1032, %v1031, %v1012
  %1035 = vst [vmem:[%s3] sm:$0xff] %v1033
  %1036 = vst [vmem:[%s3 + $0x8] sm:$0xff] %v1034
  %v1037 = vadd.f32 %v243, %v333
  %v1038 = vadd.f32 %v248, %v338
  %v1039 = vadd.f32 %v1037, %v423
  %v1040 = vadd.f32 %v1038, %v428
  %v1041 = vadd.f32 %v1039, %v513
  %v1042 = vadd.f32 %v1040, %v518
  %v1043 = vadd.f32 %v1041, %v708
  %v1044 = vadd.f32 %v1042, %v713
  %v1045 = vadd.f32 %v1043, %v789
  %v1046 = vadd.f32 %v1044, %v794
  %v1047 = vadd.f32 %v1045, %v870
  %v1048 = vadd.f32 %v1046, %v875
  %v1049 = vadd.f32 %v1047, %v951
  %v1050 = vadd.f32 %v1048, %v956
  %v1051 = vmul.f32 %v1049, 0.125
  %v1052 = vmul.f32 %v1050, 0.125
  %1053 = vst.msk [vmem:[%s4] sm:$0xff] %vm1015, %v1051
  %1054 = vst.msk [vmem:[%s4 + $0x8] sm:$0xff] %vm1015, %v1052
  // Predicated region
  $region14: #{bimap_0_normal_forward.4} parent=0 // pred_check
    _
  $region15: #{bimap_0_normal_forward.4} parent=0 // pred_check_branch
    %1056 = sbr.rel (0) target = $region17
  $region16: #{bimap_0_normal_forward.4} parent=0 // pred_region
    _
  $region17: #{bimap_0_normal_forward.4} parent=0 // pred_fallthru
    _
  // Predicated region
  $region18: #{bimap_0_normal_forward.4} parent=0 // pred_check
    _
  $region19: #{bimap_0_normal_forward.4} parent=0 // pred_check_branch
    %1058 = sbr.rel (0) target = $region21
  $region20: #{bimap_0_normal_forward.4} parent=0 // pred_region
    _
  $region21: #{bimap_0_normal_forward.4} parent=0 // pred_fallthru
    _
  // Predicated region
  $region22: #{bimap_0_normal_forward.4} parent=0 // pred_check
    _
  $region23: #{bimap_0_normal_forward.4} parent=0 // pred_check_branch
    %1060 = sbr.rel (0) target = $region25
  $region24: #{bimap_0_normal_forward.4} parent=0 // pred_region
    _
  $region25: #{bimap_0_normal_forward.4} parent=0 // pred_fallthru
    _
  // Predicated region
  $region26: #{bimap_0_normal_forward.4} parent=0 // pred_check
    _
  $region27: #{bimap_0_normal_forward.4} parent=0 // pred_check_branch
    %1062 = sbr.rel (0) target = $region29
  $region28: #{bimap_0_normal_forward.4} parent=0 // pred_region
    _
  $region29: #{bimap_0_normal_forward.4} parent=0 // pred_fallthru
    _

// kernel: bimap_0_normal_forward.5
$region0: #{bimap_0_normal_forward.5}
  #allocation0 [shape = 'u32[]', space=smem, size = 0x4, offset = 0x4, fixed_abs, tag = 'smem constant byte address 0x4 - core index']
  #allocation1 [shape = 'u32[144,128]{1,0:T(1,128)}', space=vmem, size = 0x12000, scoped, tag = 'internal scratch']
  %s0 = inlined_call_operand.vmem [shape: f32[16,16], index: 0, kind: input, shape index: {}]
  %s1 = inlined_call_operand.vmem [shape: f32[128,128], index: 1, kind: input, shape index: {}]
  %s2 = inlined_call_operand.vmem [shape: f32[16,128], index: 2, kind: input, shape index: {}]
  %s3 = inlined_call_operand.vmem [shape: f32[16,128], index: 3, kind: output, shape index: {}]
  %s4 = sld [smem:[#allocation0]]
  $region22: #{bimap_0_normal_forward.5} parent=0
    _
  %s6 = ssub.s32 1, %s4
  %s7 = scalar_select 0, %s6, %s4
  // Predicated region
  $region2: #{bimap_0_normal_forward.5} parent=0 // pred_check
    _
  $region3: #{bimap_0_normal_forward.5} parent=0 // pred_check_branch
    %9 = sbr.rel (0) target = $region5
  $region4: #{bimap_0_normal_forward.5} parent=0 // pred_region
    _
  $region5: #{bimap_0_normal_forward.5} parent=0 // pred_fallthru
    _
  // Predicated region
  $region6: #{bimap_0_normal_forward.5} parent=0 // pred_check
    _
  $region7: #{bimap_0_normal_forward.5} parent=0 // pred_check_branch
    %11 = sbr.rel (0) target = $region9
  $region8: #{bimap_0_normal_forward.5} parent=0 // pred_region
    _
  $region9: #{bimap_0_normal_forward.5} parent=0 // pred_fallthru
    _
  // Predicated region
  $region10: #{bimap_0_normal_forward.5} parent=0 // pred_check
    _
  $region11: #{bimap_0_normal_forward.5} parent=0 // pred_check_branch
    %13 = sbr.rel (0) target = $region13
  $region12: #{bimap_0_normal_forward.5} parent=0 // pred_region
    _
  $region13: #{bimap_0_normal_forward.5} parent=0 // pred_fallthru
    _
  %v14 = vld [vmem:[%s0] sm:$0xff]
  %v15 = vld [vmem:[%s0 + $0x8] sm:$0xff]
  %v16 = vld [vmem:[%s2] sm:$0xff]
  %v17 = vld [vmem:[%s2 + $0x8] sm:$0xff]
  %vm18 = vcmask 130048
  %v20 = vsel %vm18, %v14, 0
  %v23 = vsel %vm18, %v15, 0
  %25 = vmatprep.subr.mxu0 0.0
  %26 = vmatpush1.msra.mxu0 0.0
  %27 = vmatprep.subr.mxu0 0.0
  %28 = vmatpush1.msra.mxu0 0.0
  %29 = vmatprep.subr.mxu0 0.0
  %30 = vmatpush1.msra.mxu0 0.0
  %31 = vmatprep.subr.mxu0 0.0
  %32 = vmatpush1.msra.mxu0 0.0
  %33 = vmatprep.subr.mxu0 0.0
  %34 = vmatpush1.msra.mxu0 0.0
  %35 = vmatprep.subr.mxu0 0.0
  %36 = vmatpush1.msra.mxu0 0.0
  %37 = vmatprep.subr.mxu0 0.0
  %38 = vmatpush1.msra.mxu0 0.0
  %39 = vmatprep.subr.mxu0 0.0
  %40 = vmatpush1.msra.mxu0 0.0
  %41 = vmatprep.subr.mxu0 0.0
  %42 = vmatpush1.msra.mxu0 0.0
  %43 = vmatprep.subr.mxu0 0.0
  %44 = vmatpush1.msra.mxu0 0.0
  %45 = vmatprep.subr.mxu0 0.0
  %46 = vmatpush1.msra.mxu0 0.0
  %47 = vmatprep.subr.mxu0 0.0
  %48 = vmatpush1.msra.mxu0 0.0
  %49 = vmatprep.subr.mxu0 0.0
  %50 = vmatpush1.msra.mxu0 0.0
  %51 = vmatprep.subr.mxu0 0.0
  %52 = vmatpush1.msra.mxu0 0.0
  %53 = vmatprep.subr.mxu0 0.0
  %54 = vmatpush1.msra.mxu0 %v17
  %55 = vmatprep.subr.mxu0 0.0
  %56 = vmatpush1.msra.mxu0 %v16
  %57 = vmatprep.subr.mxu0 0.0
  %58 = vmatpush2.msra.mxu0 0.0
  %59 = vmatprep.subr.mxu0 0.0
  %60 = vmatpush2.msra.mxu0 0.0
  %61 = vmatprep.subr.mxu0 0.0
  %62 = vmatpush2.msra.mxu0 0.0
  %63 = vmatprep.subr.mxu0 0.0
  %64 = vmatpush2.msra.mxu0 0.0
  %65 = vmatprep.subr.mxu0 0.0
  %66 = vmatpush2.msra.mxu0 0.0
  %67 = vmatprep.subr.mxu0 0.0
  %68 = vmatpush2.msra.mxu0 0.0
  %69 = vmatprep.subr.mxu0 0.0
  %70 = vmatpush2.msra.mxu0 0.0
  %71 = vmatprep.subr.mxu0 0.0
  %72 = vmatpush2.msra.mxu0 0.0
  %73 = vmatprep.subr.mxu0 0.0
  %74 = vmatpush2.msra.mxu0 0.0
  %75 = vmatprep.subr.mxu0 0.0
  %76 = vmatpush2.msra.mxu0 0.0
  %77 = vmatprep.subr.mxu0 0.0
  %78 = vmatpush2.msra.mxu0 0.0
  %79 = vmatprep.subr.mxu0 0.0
  %80 = vmatpush2.msra.mxu0 0.0
  %81 = vmatprep.subr.mxu0 0.0
  %82 = vmatpush2.msra.mxu0 0.0
  %83 = vmatprep.subr.mxu0 0.0
  %84 = vmatpush2.msra.mxu0 0.0
  %85 = vmatprep.subr.mxu0 0.0
  %86 = vmatpush2.msra.mxu0 0.0
  %87 = vmatprep.subr.mxu0 0.0
  %88 = vmatpush2.msra.mxu0 0.0
  %89 = vmatprep.mubr.f32.mxu0 0.0
  %90 = vmatmul.mubr.f32.gmra.mxu0 %v20
  %v91 = vpop.f32.mrf.mxu0
  %v92 = vadd.f32 0.0, %v91
  %v93 = vpop.f32.mrf.mxu0
  %94 = vmatprep.mubr.f32.mxu0 0.0
  %95 = vmatmul.mubr.f32.gmra.mxu0 %v23
  %v96 = vpop.f32.mrf.mxu0
  %v97 = vadd.f32 0.0, %v96
  %v98 = vpop.f32.mrf.mxu0
  %99 = vdwg.mxu0
  %v100 = vld [vmem:[%s1] sm:$0xff]
  %v101 = vld [vmem:[%s1 + $0x8] sm:$0xff]
  %v102 = vld [vmem:[%s1 + $0x10] sm:$0xff]
  %v103 = vld [vmem:[%s1 + $0x18] sm:$0xff]
  %v104 = vld [vmem:[%s1 + $0x20] sm:$0xff]
  %v105 = vld [vmem:[%s1 + $0x28] sm:$0xff]
  %v106 = vld [vmem:[%s1 + $0x30] sm:$0xff]
  %v107 = vld [vmem:[%s1 + $0x38] sm:$0xff]
  %v108 = vld [vmem:[%s1 + $0x40] sm:$0xff]
  %v109 = vld [vmem:[%s1 + $0x48] sm:$0xff]
  %v110 = vld [vmem:[%s1 + $0x50] sm:$0xff]
  %v111 = vld [vmem:[%s1 + $0x58] sm:$0xff]
  %v112 = vld [vmem:[%s1 + $0x60] sm:$0xff]
  %v113 = vld [vmem:[%s1 + $0x68] sm:$0xff]
  %v114 = vld [vmem:[%s1 + $0x70] sm:$0xff]
  %v115 = vld [vmem:[%s1 + $0x78] sm:$0xff]
  %116 = vmatprep.subr.mxu0 0.0
  %117 = vmatpush1.msra.mxu0 %v115
  %118 = vmatprep.subr.mxu0 0.0
  %119 = vmatpush1.msra.mxu0 %v114
  %120 = vmatprep.subr.mxu0 0.0
  %121 = vmatpush1.msra.mxu0 %v113
  %122 = vmatprep.subr.mxu0 0.0
  %123 = vmatpush1.msra.mxu0 %v112
  %124 = vmatprep.subr.mxu0 0.0
  %125 = vmatpush1.msra.mxu0 %v111
  %126 = vmatprep.subr.mxu0 0.0
  %127 = vmatpush1.msra.mxu0 %v110
  %128 = vmatprep.subr.mxu0 0.0
  %129 = vmatpush1.msra.mxu0 %v109
  %130 = vmatprep.subr.mxu0 0.0
  %131 = vmatpush1.msra.mxu0 %v108
  %132 = vmatprep.subr.mxu0 0.0
  %133 = vmatpush1.msra.mxu0 %v107
  %134 = vmatprep.subr.mxu0 0.0
  %135 = vmatpush1.msra.mxu0 %v106
  %136 = vmatprep.subr.mxu0 0.0
  %137 = vmatpush1.msra.mxu0 %v105
  %138 = vmatprep.subr.mxu0 0.0
  %139 = vmatpush1.msra.mxu0 %v104
  %140 = vmatprep.subr.mxu0 0.0
  %141 = vmatpush1.msra.mxu0 %v103
  %142 = vmatprep.subr.mxu0 0.0
  %143 = vmatpush1.msra.mxu0 %v102
  %144 = vmatprep.subr.mxu0 0.0
  %145 = vmatpush1.msra.mxu0 %v101
  %146 = vmatprep.subr.mxu0 0.0
  %147 = vmatpush1.msra.mxu0 %v100
  %148 = vmatprep.subr.mxu0 0.0
  %149 = vmatpush2.msra.mxu0 0.0
  %150 = vmatprep.subr.mxu0 0.0
  %151 = vmatpush2.msra.mxu0 0.0
  %152 = vmatprep.subr.mxu0 0.0
  %153 = vmatpush2.msra.mxu0 0.0
  %154 = vmatprep.subr.mxu0 0.0
  %155 = vmatpush2.msra.mxu0 0.0
  %156 = vmatprep.subr.mxu0 0.0
  %157 = vmatpush2.msra.mxu0 0.0
  %158 = vmatprep.subr.mxu0 0.0
  %159 = vmatpush2.msra.mxu0 0.0
  %160 = vmatprep.subr.mxu0 0.0
  %161 = vmatpush2.msra.mxu0 0.0
  %162 = vmatprep.subr.mxu0 0.0
  %163 = vmatpush2.msra.mxu0 0.0
  %164 = vmatprep.subr.mxu0 0.0
  %165 = vmatpush2.msra.mxu0 0.0
  %166 = vmatprep.subr.mxu0 0.0
  %167 = vmatpush2.msra.mxu0 0.0
  %168 = vmatprep.subr.mxu0 0.0
  %169 = vmatpush2.msra.mxu0 0.0
  %170 = vmatprep.subr.mxu0 0.0
  %171 = vmatpush2.msra.mxu0 0.0
  %172 = vmatprep.subr.mxu0 0.0
  %173 = vmatpush2.msra.mxu0 0.0
  %174 = vmatprep.subr.mxu0 0.0
  %175 = vmatpush2.msra.mxu0 0.0
  %176 = vmatprep.subr.mxu0 0.0
  %177 = vmatpush2.msra.mxu0 0.0
  %178 = vmatprep.subr.mxu0 0.0
  %179 = vmatpush2.msra.mxu0 0.0
  %180 = vmatprep.mubr.f32.mxu0 0.0
  %181 = vmatmul.mubr.f32.gmra.mxu0 %v92
  %v182 = vpop.f32.mrf.mxu0
  %v183 = vadd.f32 0.0, %v182
  %v184 = vpop.f32.mrf.mxu0
  %185 = vmatprep.mubr.f32.mxu0 0.0
  %186 = vmatmul.mubr.f32.gmra.mxu0 %v97
  %v187 = vpop.f32.mrf.mxu0
  %v188 = vadd.f32 0.0, %v187
  %v189 = vpop.f32.mrf.mxu0
  %190 = vdwg.mxu0
  %191 = vst [vmem:[%s3] sm:$0xff] %v183
  %192 = vst [vmem:[%s3 + $0x8] sm:$0xff] %v188
  // Predicated region
  $region14: #{bimap_0_normal_forward.5} parent=0 // pred_check
    _
  $region15: #{bimap_0_normal_forward.5} parent=0 // pred_check_branch
    %194 = sbr.rel (0) target = $region17
  $region16: #{bimap_0_normal_forward.5} parent=0 // pred_region
    _
  $region17: #{bimap_0_normal_forward.5} parent=0 // pred_fallthru
    _
  // Predicated region
  $region18: #{bimap_0_normal_forward.5} parent=0 // pred_check
    _
  $region19: #{bimap_0_normal_forward.5} parent=0 // pred_check_branch
    %196 = sbr.rel (0) target = $region21
  $region20: #{bimap_0_normal_forward.5} parent=0 // pred_region
    _
  $region21: #{bimap_0_normal_forward.5} parent=0 // pred_fallthru
    _

// kernel: bimap_0_normal_forward.6
$region0: #{bimap_0_normal_forward.6}
  #allocation0 [shape = 'u32[]', space=smem, size = 0x4, offset = 0x4, fixed_abs, tag = 'smem constant byte address 0x4 - core index']
  #allocation1 [shape = 'u32[144,128]{1,0:T(1,128)}', space=vmem, size = 0x12000, scoped, tag = 'internal scratch']
  %s0 = inlined_call_operand.vmem [shape: f32[16,128], index: 0, kind: input, shape index: {}]
  %s1 = inlined_call_operand.vmem [shape: f32[1,128], index: 1, kind: input, shape index: {}]
  %s2 = inlined_call_operand.vmem [shape: f32[16,16], index: 2, kind: output, shape index: {}]
  %s3 = sld [smem:[#allocation0]]
  $region18: #{bimap_0_normal_forward.6} parent=0
    _
  %s5 = ssub.s32 1, %s3
  %s6 = scalar_select 0, %s5, %s3
  // Predicated region
  $region2: #{bimap_0_normal_forward.6} parent=0 // pred_check
    _
  $region3: #{bimap_0_normal_forward.6} parent=0 // pred_check_branch
    %8 = sbr.rel (0) target = $region5
  $region4: #{bimap_0_normal_forward.6} parent=0 // pred_region
    _
  $region5: #{bimap_0_normal_forward.6} parent=0 // pred_fallthru
    _
  // Predicated region
  $region6: #{bimap_0_normal_forward.6} parent=0 // pred_check
    _
  $region7: #{bimap_0_normal_forward.6} parent=0 // pred_check_branch
    %10 = sbr.rel (0) target = $region9
  $region8: #{bimap_0_normal_forward.6} parent=0 // pred_region
    _
  $region9: #{bimap_0_normal_forward.6} parent=0 // pred_fallthru
    _
  %v11 = vld [vmem:[%s0] sm:$0xff]
  %v12 = vld [vmem:[%s0 + $0x8] sm:$0xff]
  %v13 = vld [vmem:[%s1] sm:$0x1]
  %v15 = vlaneseq
  %v16 = vshrl.u32 %v15, 7
  %v17 = vsub.s32 0, %v16
  %v18 = vrot.slane %v13, %v17
  %v20 = vmul.f32 %v11, %v18
  %v21 = vmul.f32 %v12, %v18
  %22 = vmatprep.subr.mxu0 0.0
  %23 = vmatpush1.xpose.msra.mxu0 0.0
  %24 = vmatprep.subr.mxu0 0.0
  %25 = vmatpush1.xpose.msra.mxu0 0.0
  %26 = vmatprep.subr.mxu0 0.0
  %27 = vmatpush1.xpose.msra.mxu0 0.0
  %28 = vmatprep.subr.mxu0 0.0
  %29 = vmatpush1.xpose.msra.mxu0 0.0
  %30 = vmatprep.subr.mxu0 0.0
  %31 = vmatpush1.xpose.msra.mxu0 0.0
  %32 = vmatprep.subr.mxu0 0.0
  %33 = vmatpush1.xpose.msra.mxu0 0.0
  %34 = vmatprep.subr.mxu0 0.0
  %35 = vmatpush1.xpose.msra.mxu0 0.0
  %36 = vmatprep.subr.mxu0 0.0
  %37 = vmatpush1.xpose.msra.mxu0 0.0
  %38 = vmatprep.subr.mxu0 0.0
  %39 = vmatpush1.xpose.msra.mxu0 0.0
  %40 = vmatprep.subr.mxu0 0.0
  %41 = vmatpush1.xpose.msra.mxu0 0.0
  %42 = vmatprep.subr.mxu0 0.0
  %43 = vmatpush1.xpose.msra.mxu0 0.0
  %44 = vmatprep.subr.mxu0 0.0
  %45 = vmatpush1.xpose.msra.mxu0 0.0
  %46 = vmatprep.subr.mxu0 0.0
  %47 = vmatpush1.xpose.msra.mxu0 0.0
  %48 = vmatprep.subr.mxu0 0.0
  %49 = vmatpush1.xpose.msra.mxu0 0.0
  %50 = vmatprep.subr.mxu0 0.0
  %51 = vmatpush1.xpose.msra.mxu0 %v12
  %52 = vmatprep.subr.mxu0 0.0
  %53 = vmatpush1.xpose.msra.mxu0 %v11
  %54 = vmatprep.subr.mxu0 0.0
  %55 = vmatpush2.xpose.msra.mxu0 0.0
  %56 = vmatprep.subr.mxu0 0.0
  %57 = vmatpush2.xpose.msra.mxu0 0.0
  %58 = vmatprep.subr.mxu0 0.0
  %59 = vmatpush2.xpose.msra.mxu0 0.0
  %60 = vmatprep.subr.mxu0 0.0
  %61 = vmatpush2.xpose.msra.mxu0 0.0
  %62 = vmatprep.subr.mxu0 0.0
  %63 = vmatpush2.xpose.msra.mxu0 0.0
  %64 = vmatprep.subr.mxu0 0.0
  %65 = vmatpush2.xpose.msra.mxu0 0.0
  %66 = vmatprep.subr.mxu0 0.0
  %67 = vmatpush2.xpose.msra.mxu0 0.0
  %68 = vmatprep.subr.mxu0 0.0
  %69 = vmatpush2.xpose.msra.mxu0 0.0
  %70 = vmatprep.subr.mxu0 0.0
  %71 = vmatpush2.xpose.msra.mxu0 0.0
  %72 = vmatprep.subr.mxu0 0.0
  %73 = vmatpush2.xpose.msra.mxu0 0.0
  %74 = vmatprep.subr.mxu0 0.0
  %75 = vmatpush2.xpose.msra.mxu0 0.0
  %76 = vmatprep.subr.mxu0 0.0
  %77 = vmatpush2.xpose.msra.mxu0 0.0
  %78 = vmatprep.subr.mxu0 0.0
  %79 = vmatpush2.xpose.msra.mxu0 0.0
  %80 = vmatprep.subr.mxu0 0.0
  %81 = vmatpush2.xpose.msra.mxu0 0.0
  %82 = vmatprep.subr.mxu0 0.0
  %83 = vmatpush2.xpose.msra.mxu0 0.0
  %84 = vmatprep.subr.mxu0 0.0
  %85 = vmatpush2.xpose.msra.mxu0 0.0
  %86 = vmatprep.mubr.f32.mxu0 0.0
  %87 = vmatmul.mubr.f32.gmra.mxu0 %v20
  %v88 = vpop.f32.mrf.mxu0
  %v89 = vadd.f32 0.0, %v88
  %v90 = vpop.f32.mrf.mxu0
  %91 = vmatprep.mubr.f32.mxu0 0.0
  %92 = vmatmul.mubr.f32.gmra.mxu0 %v21
  %v93 = vpop.f32.mrf.mxu0
  %v94 = vadd.f32 0.0, %v93
  %v95 = vpop.f32.mrf.mxu0
  %96 = vdwg.mxu0
  %v97 = vmul.f32 %v89, 0.125
  %v98 = vmul.f32 %v94, 0.125
  %vm99 = vcmask 130048
  %100 = vst.msk [vmem:[%s2] sm:$0xff] %vm99, %v97
  %101 = vst.msk [vmem:[%s2 + $0x8] sm:$0xff] %vm99, %v98
  // Predicated region
  $region10: #{bimap_0_normal_forward.6} parent=0 // pred_check
    _
  $region11: #{bimap_0_normal_forward.6} parent=0 // pred_check_branch
    %103 = sbr.rel (0) target = $region13
  $region12: #{bimap_0_normal_forward.6} parent=0 // pred_region
    _
  $region13: #{bimap_0_normal_forward.6} parent=0 // pred_fallthru
    _
  // Predicated region
  $region14: #{bimap_0_normal_forward.6} parent=0 // pred_check
    _
  $region15: #{bimap_0_normal_forward.6} parent=0 // pred_check_branch
    %105 = sbr.rel (0) target = $region17
  $region16: #{bimap_0_normal_forward.6} parent=0 // pred_region
    _
  $region17: #{bimap_0_normal_forward.6} parent=0 // pred_fallthru
    _

</llo_original>
